<compile_context>
chip_gen: v5e
topology: v5e:2x2
jax: 0.10.0
libtpu: 0.0.40
codegen_flags: <defaults>
</compile_context>

<pallas_src>
import jax
import jax.numpy as jnp
from jax.experimental import pallas as pl
from jax.experimental.pallas import tpu as pltpu

C = 128            # every channel axis is zero-padded to 128 lanes
K3 = 9 * C         # 3x3-conv patch width after channel padding (1152)


# ---------------------------------------------------------------------------
# Fused Pallas kernel: whole FPNet forward for one batch element.
# ---------------------------------------------------------------------------
def _fused_fpnet_kernel(p1_ref, w1_ref, w2_ref, w3_ref, w4_ref,
                        scale_ref, shift_ref, o_ref, pad2_ref, pad3_ref):
    f32 = jnp.float32
    bf16 = jnp.bfloat16

    def affine_relu(y, layer):
        s = scale_ref[layer:layer + 1, :]          # (1, 128)
        b = shift_ref[layer:layer + 1, :]          # (1, 128)
        return jnp.maximum(y * s + b, 0.0)

    # ---- layer 1: conv4x4 s2 p1 + BN + ReLU + maxpool2 ----------------------
    # p1 rows are ordered [pool offset a*2+b (4), parity pp*2+qq (4), ph*8+qh (64)]
    y1 = jnp.dot(p1_ref[0], w1_ref[...], preferred_element_type=f32)   # (1024,128)
    y1 = affine_relu(y1, 0)
    y1 = y1.reshape(4, 4, 64, C)
    a1 = jnp.max(y1, axis=0)                       # fused 2x2 max-pool -> (4,64,128)

    # park the pooled 16x16 activation as zero-padded parity planes
    pad2_ref[...] = jnp.zeros(pad2_ref.shape, f32)
    pad2_ref[:, 1:9, 1:9, :] = a1.reshape(4, 8, 8, C)

    # ---- layer 2: conv3x3 s2 p1 + BN + ReLU + maxpool2 ----------------------
    # source index 2*i - 1 + d  ->  (parity plane, unit-stride slice start)
    tap = [(1, 0), (0, 1), (1, 1)]                 # d = 0, 1, 2
    slabs = []
    for dh in range(3):
        par_h, rs = tap[dh]
        for dw in range(3):
            par_w, cs = tap[dw]
            slabs.append(pad2_ref[2 * par_h + par_w, rs:rs + 8, cs:cs + 8, :])
    patches2 = jnp.concatenate(slabs, axis=-1).reshape(64, K3)          # (64,1152)
    y2 = jnp.dot(patches2.astype(bf16), w2_ref[...],
                 preferred_element_type=f32)                            # (64,128)
    y2 = affine_relu(y2, 1)

    # fused 2x2 max-pool (rows oh*8+ow) and single-block scatter into the
    # zero-padded layer-3 input
    y2r = y2.reshape(4, 2, 4, 2, C)                # (oh//2, oh%2, ow//2, ow%2, C)
    y2p = jnp.max(jnp.max(y2r, axis=3), axis=1)    # (4, 4, 128)
    pad3_ref[...] = jnp.zeros(pad3_ref.shape, f32)
    pad3_ref[1:5, 1:5, :] = y2p

    # ---- layer 3: conv3x3 s2 p1 + BN + ReLU + maxpool2 ----------------------
    # 2x2 output positions batched into one MXU matmul, pool is a sublane max.
    rows3 = []
    for m in range(2):
        for n in range(2):
            rows3.append(jnp.concatenate(
                [pad3_ref[2 * m + dh, 2 * n + dw:2 * n + dw + 1, :]
                 for dh in range(3) for dw in range(3)], axis=-1))      # (1,1152)
    patches3 = jnp.concatenate(rows3, axis=0).astype(bf16)              # (4,1152)
    y3 = jnp.dot(patches3, w3_ref[...], preferred_element_type=f32)     # (4,128)
    y3 = affine_relu(y3, 2)
    x3 = jnp.max(y3, axis=0, keepdims=True)        # 2x2 max-pool -> (1,128)

    # ---- layer 4: conv3x3 s2 p1 + BN + ReLU + GAP(1x1) + L2-normalize -------
    # spatial input is 1x1: only the centre tap of the zero-padded 3x3 window
    # sees data, so w4_ref holds just that (128,128) centre-tap slab.
    y4 = jnp.dot(x3.astype(bf16), w4_ref[...], preferred_element_type=f32)
    feat = affine_relu(y4, 3)                      # GAP over 1x1 == identity

    # F.normalize(p=2, dim=1, eps=1e-12) == feat * rsqrt(max(|feat|^2, eps^2))
    ssq = jnp.sum(feat * feat, axis=-1, keepdims=True)
    feat = feat * jax.lax.rsqrt(jnp.maximum(ssq, 1e-24))

    # lane-dense (8, 128) output block; wrapper keeps row 0
    o_ref[0] = jnp.broadcast_to(feat, (8, C))


# ---------------------------------------------------------------------------
# JAX wrapper: layer-1 im2col / row reordering + single pallas_call.
# ---------------------------------------------------------------------------
def fp_net_forward(x_nchw, kernel_params):
    """x_nchw: [B, 1, 64, 64] -> L2-normalized features [B, 128]."""
    w1, w2, w3, w4, scale_mat, shift_mat = kernel_params
    B = x_nchw.shape[0]
    assert x_nchw.shape[1:] == (1, 64, 64), "fused kernel specialized to 1x64x64"
    x = jnp.transpose(x_nchw, (0, 2, 3, 1)).astype(jnp.float32)         # NHWC

    # layer-1 im2col (k=4, s=2, p=1): (B, 32, 32, 16), column order (dh, dw, cin)
    xp = jnp.pad(x, ((0, 0), (1, 1), (1, 1), (0, 0)))
    cols = [xp[:, dh:dh + 64:2, dw:dw + 64:2, :]
            for dh in range(4) for dw in range(4)]
    patches = jnp.stack(cols, axis=3).reshape(B, 32, 32, 16)
    patches = jnp.pad(patches, ((0, 0), (0, 0), (0, 0), (0, C - 16)))   # K -> 128

    # reorder conv-output rows: io = 4*ph + 2*pp + a, jo = 4*qh + 2*qq + b
    t = patches.reshape(B, 8, 2, 2, 8, 2, 2, C)        # b, ph, pp, a, qh, qq, b2, K
    t = t.transpose(0, 3, 6, 2, 5, 1, 4, 7)            # b, a, b2, pp, qq, ph, qh, K
    p1 = t.reshape(B, 1024, C).astype(jnp.bfloat16)

    out = pl.pallas_call(
        _fused_fpnet_kernel,
        out_shape=jax.ShapeDtypeStruct((B, 8, C), jnp.float32),
        grid=(B,),
        in_specs=[
            pl.BlockSpec((1, 1024, C), lambda b: (b, 0, 0)),   # layer-1 patches
            pl.BlockSpec((C, C), lambda b: (0, 0)),            # w1
            pl.BlockSpec((K3, C), lambda b: (0, 0)),           # w2
            pl.BlockSpec((K3, C), lambda b: (0, 0)),           # w3
            pl.BlockSpec((C, C), lambda b: (0, 0)),            # w4 (centre tap)
            pl.BlockSpec((4, C), lambda b: (0, 0)),            # folded BN scale
            pl.BlockSpec((4, C), lambda b: (0, 0)),            # folded BN shift
        ],
        out_specs=pl.BlockSpec((1, 8, C), lambda b: (b, 0, 0)),
        scratch_shapes=[
            pltpu.VMEM((4, 9, 9, C), jnp.float32),   # layer-2 input parity planes
            pltpu.VMEM((6, 6, C), jnp.float32),      # layer-3 input (padded 4x4)
        ],
        compiler_params=pltpu.CompilerParams(
            dimension_semantics=("parallel",)),      # v7x: 1 batch elem per core
    )(p1, w1, w2, w3, w4, scale_mat, shift_mat)
    return out[:, 0, :]


# ---------------------------------------------------------------------------
# Parameters (deterministic, matching FPNet.__init__ / _initialize_weights)
# ---------------------------------------------------------------------------
def init_params(key):
    specs = [(1, 16, 4), (16, 32, 3), (32, 64, 3), (64, 128, 3)]
    eps = 1e-5
    raw = []                               # (w_hwio, scale, shift) for reference
    packed_w, scale_rows, shift_rows = [], [], []
    for li, (cin, cout, k) in enumerate(specs):
        key, wk = jax.random.split(key)
        std = (2.0 / (cout * k * k)) ** 0.5               # kaiming_normal_, fan_out
        w = std * jax.random.normal(wk, (k, k, cin, cout), jnp.float32)
        bias = jnp.zeros((cout,), jnp.float32)            # init.zeros_
        gamma = jnp.ones((cout,), jnp.float32)            # BN defaults, eval mode
        beta = jnp.zeros((cout,), jnp.float32)
        rmean = jnp.zeros((cout,), jnp.float32)
        rvar = jnp.ones((cout,), jnp.float32)
        scale = gamma / jnp.sqrt(rvar + eps)
        shift = beta + (bias - rmean) * scale
        raw.append((w, scale, shift))

        if li == 0:      # layer 1: K = 16, pad both K and Cout to 128
            w2d = w.reshape(k * k * cin, cout)
            wp = jnp.zeros((C, C), jnp.float32).at[:k * k * cin, :cout].set(w2d)
        elif li == 3:    # layer 4: 1x1 spatial input -> only centre tap matters
            wp = jnp.zeros((C, C), jnp.float32).at[:cin, :cout].set(w[1, 1])
        else:            # 3x3 layers: embed real channels in 128-padded blocks
            wp = jnp.zeros((k, k, C, C), jnp.float32).at[:, :, :cin, :cout].set(w)
            wp = wp.reshape(k * k * C, C)
        packed_w.append(wp.astype(jnp.bfloat16))
        scale_rows.append(jnp.zeros((C,), jnp.float32).at[:cout].set(scale))
        shift_rows.append(jnp.zeros((C,), jnp.float32).at[:cout].set(shift))

    kernel_params = (*packed_w,
                     jnp.stack(scale_rows, axis=0),       # (4, 128)
                     jnp.stack(shift_rows, axis=0))       # (4, 128)
    return kernel_params, raw


def reference_forward(x_nchw, raw_params):
    """Pure-XLA eval-mode reference (f32) used only for validation."""
    x = jnp.transpose(x_nchw, (0, 2, 3, 1)).astype(jnp.float32)
    for idx, (w, scale, shift) in enumerate(raw_params):
        x = jax.lax.conv_general_dilated(
            x, w, window_strides=(2, 2), padding=((1, 1), (1, 1)),
            dimension_numbers=("NHWC", "HWIO", "NHWC"))
        x = jnp.maximum(x * scale + shift, 0.0)
        if idx < 3:
            x = jax.lax.reduce_window(x, -jnp.inf, jax.lax.max,
                                      (1, 2, 2, 1), (1, 2, 2, 1), "VALID")
    feat = jnp.mean(x, axis=(1, 2))
    norm = jnp.sqrt(jnp.sum(feat * feat, axis=-1, keepdims=True))
    return feat / jnp.maximum(norm, 1e-12)


if __name__ == "__main__":
    key = jax.random.PRNGKey(0)
    pkey, xkey = jax.random.split(key)
    kernel_params, raw_params = init_params(pkey)

    # fingerprint-like input: batch=2, 1 channel, 64x64
    x = jax.random.normal(xkey, (2, 1, 64, 64), jnp.float32)

    out = jax.jit(lambda a: fp_net_forward(a, kernel_params))(x)
    out = jax.block_until_ready(out)
    assert out.shape == (2, 128), out.shape
    assert bool(jnp.all(jnp.isfinite(out)))

    # numerical check against an f32 XLA reference (kernel matmuls are bf16)
    ref = reference_forward(x, raw_params)
    err = float(jnp.max(jnp.abs(out - ref)))
    assert err < 3e-2, f"mismatch vs reference: max abs err {err}"
    print("KERNEL_OK")
</pallas_src>

<mosaic_0001>
module attributes {stable_mosaic.version = 11 : i64} {
  func.func @_fused_fpnet_kernel(%arg0: i32, %arg1: memref<1x1024x128xbf16, #tpu.memory_space<vmem>>, %arg2: memref<128x128xbf16, #tpu.memory_space<vmem>>, %arg3: memref<1152x128xbf16, #tpu.memory_space<vmem>>, %arg4: memref<1152x128xbf16, #tpu.memory_space<vmem>>, %arg5: memref<128x128xbf16, #tpu.memory_space<vmem>>, %arg6: memref<4x128xf32, #tpu.memory_space<vmem>>, %arg7: memref<4x128xf32, #tpu.memory_space<vmem>>, %arg8: memref<1x8x128xf32, #tpu.memory_space<vmem>>, %arg9: memref<4x9x9x128xf32, #tpu.memory_space<vmem>>, %arg10: memref<6x6x128xf32, #tpu.memory_space<vmem>>) attributes {dimension_semantics = [#tpu.dimension_semantics<parallel>], iteration_bounds = array<i64: 2>, scalar_prefetch = 0 : i64, scratch_operands = 2 : i64, tpu.core_type = #tpu.core_type<tc>, window_params = [{transform_indices = @transform_0, window_bounds = array<i64: 1, 1024, 128>}, {pipeline_mode = #tpu.pipeline_mode<synchronous>, transform_indices = @transform_1, window_bounds = array<i64: 128, 128>}, {pipeline_mode = #tpu.pipeline_mode<synchronous>, transform_indices = @transform_2, window_bounds = array<i64: 1152, 128>}, {pipeline_mode = #tpu.pipeline_mode<synchronous>, transform_indices = @transform_3, window_bounds = array<i64: 1152, 128>}, {pipeline_mode = #tpu.pipeline_mode<synchronous>, transform_indices = @transform_4, window_bounds = array<i64: 128, 128>}, {pipeline_mode = #tpu.pipeline_mode<synchronous>, transform_indices = @transform_5, window_bounds = array<i64: 4, 128>}, {pipeline_mode = #tpu.pipeline_mode<synchronous>, transform_indices = @transform_6, window_bounds = array<i64: 4, 128>}, {transform_indices = @transform_7, window_bounds = array<i64: 1, 8, 128>}]} {
    %c0 = arith.constant 0 : index
    %c0_0 = arith.constant 0 : index
    %c0_1 = arith.constant 0 : index
    %0 = vector.load %arg1[%c0, %c0_0, %c0_1] : memref<1x1024x128xbf16, #tpu.memory_space<vmem>>, vector<1x1024x128xbf16>
    %1 = vector.shape_cast %0 : vector<1x1024x128xbf16> to vector<1024x128xbf16>
    %c0_2 = arith.constant 0 : index
    %c0_3 = arith.constant 0 : index
    %2 = vector.load %arg2[%c0_2, %c0_3] : memref<128x128xbf16, #tpu.memory_space<vmem>>, vector<128x128xbf16>
    %cst = arith.constant dense<0.000000e+00> : vector<1024x128xf32>
    %3 = tpu.matmul %1, %2, %cst {dimension_numbers = #tpu.dot_dimension_numbers<[1], [0], [0], [1], [0, 0, 1, 1], [], []>} : vector<1024x128xbf16>, vector<128x128xbf16>, vector<1024x128xf32> -> vector<1024x128xf32>
    %c0_4 = arith.constant 0 : index
    %c0_5 = arith.constant 0 : index
    %4 = vector.load %arg6[%c0_4, %c0_5] : memref<4x128xf32, #tpu.memory_space<vmem>>, vector<1x128xf32>
    %c0_6 = arith.constant 0 : index
    %c0_7 = arith.constant 0 : index
    %5 = vector.load %arg7[%c0_6, %c0_7] : memref<4x128xf32, #tpu.memory_space<vmem>>, vector<1x128xf32>
    %6 = vector.broadcast %4 : vector<1x128xf32> to vector<1024x128xf32>
    %7 = arith.mulf %3, %6 : vector<1024x128xf32>
    %8 = vector.broadcast %5 : vector<1x128xf32> to vector<1024x128xf32>
    %9 = arith.addf %7, %8 : vector<1024x128xf32>
    %cst_8 = arith.constant 0.000000e+00 : f32
    %10 = vector.broadcast %cst_8 : f32 to vector<1024x128xf32>
    %11 = arith.maximumf %9, %10 : vector<1024x128xf32>
    %12 = vector.shape_cast %11 : vector<1024x128xf32> to vector<4x4x64x128xf32>
    %cst_9 = arith.constant dense<0xFF800000> : vector<4x64x128xf32>
    %13 = vector.multi_reduction <maximumf>, %12, %cst_9 [0] : vector<4x4x64x128xf32> to vector<4x64x128xf32>
    %cst_10 = arith.constant 0.000000e+00 : f32
    %14 = vector.broadcast %cst_10 : f32 to vector<4x9x9x128xf32>
    %c0_11 = arith.constant 0 : index
    %c0_12 = arith.constant 0 : index
    %c0_13 = arith.constant 0 : index
    %c0_14 = arith.constant 0 : index
    %15 = vector.load %arg9[%c0_11, %c0_12, %c0_13, %c0_14] : memref<4x9x9x128xf32, #tpu.memory_space<vmem>>, vector<4x9x9x128xf32>
    tpu.vector_store %arg9[%c0_11, %c0_12, %c0_13, %c0_14], %14 {strides = array<i32>} : memref<4x9x9x128xf32, #tpu.memory_space<vmem>>, vector<4x9x9x128xf32>,
    %16 = vector.shape_cast %13 : vector<4x64x128xf32> to vector<4x8x8x128xf32>
    %c0_15 = arith.constant 0 : index
    %c1 = arith.constant 1 : index
    %c1_16 = arith.constant 1 : index
    %c0_17 = arith.constant 0 : index
    %17 = vector.load %arg9[%c0_15, %c1, %c1_16, %c0_17] : memref<4x9x9x128xf32, #tpu.memory_space<vmem>>, vector<4x8x8x128xf32>
    tpu.vector_store %arg9[%c0_15, %c1, %c1_16, %c0_17], %16 {strides = array<i32>} : memref<4x9x9x128xf32, #tpu.memory_space<vmem>>, vector<4x8x8x128xf32>,
    %c3 = arith.constant 3 : index
    %c0_18 = arith.constant 0 : index
    %c0_19 = arith.constant 0 : index
    %c0_20 = arith.constant 0 : index
    %18 = vector.load %arg9[%c3, %c0_18, %c0_19, %c0_20] : memref<4x9x9x128xf32, #tpu.memory_space<vmem>>, vector<1x8x8x128xf32>
    %19 = vector.shape_cast %18 : vector<1x8x8x128xf32> to vector<8x8x128xf32>
    %c2 = arith.constant 2 : index
    %c0_21 = arith.constant 0 : index
    %c1_22 = arith.constant 1 : index
    %c0_23 = arith.constant 0 : index
    %20 = vector.load %arg9[%c2, %c0_21, %c1_22, %c0_23] : memref<4x9x9x128xf32, #tpu.memory_space<vmem>>, vector<1x8x8x128xf32>
    %21 = vector.shape_cast %20 : vector<1x8x8x128xf32> to vector<8x8x128xf32>
    %c3_24 = arith.constant 3 : index
    %c0_25 = arith.constant 0 : index
    %c1_26 = arith.constant 1 : index
    %c0_27 = arith.constant 0 : index
    %22 = vector.load %arg9[%c3_24, %c0_25, %c1_26, %c0_27] : memref<4x9x9x128xf32, #tpu.memory_space<vmem>>, vector<1x8x8x128xf32>
    %23 = vector.shape_cast %22 : vector<1x8x8x128xf32> to vector<8x8x128xf32>
    %c1_28 = arith.constant 1 : index
    %c1_29 = arith.constant 1 : index
    %c0_30 = arith.constant 0 : index
    %c0_31 = arith.constant 0 : index
    %24 = vector.load %arg9[%c1_28, %c1_29, %c0_30, %c0_31] : memref<4x9x9x128xf32, #tpu.memory_space<vmem>>, vector<1x8x8x128xf32>
    %25 = vector.shape_cast %24 : vector<1x8x8x128xf32> to vector<8x8x128xf32>
    %c0_32 = arith.constant 0 : index
    %c1_33 = arith.constant 1 : index
    %c1_34 = arith.constant 1 : index
    %c0_35 = arith.constant 0 : index
    %26 = vector.load %arg9[%c0_32, %c1_33, %c1_34, %c0_35] : memref<4x9x9x128xf32, #tpu.memory_space<vmem>>, vector<1x8x8x128xf32>
    %27 = vector.shape_cast %26 : vector<1x8x8x128xf32> to vector<8x8x128xf32>
    %c1_36 = arith.constant 1 : index
    %c1_37 = arith.constant 1 : index
    %c1_38 = arith.constant 1 : index
    %c0_39 = arith.constant 0 : index
    %28 = vector.load %arg9[%c1_36, %c1_37, %c1_38, %c0_39] : memref<4x9x9x128xf32, #tpu.memory_space<vmem>>, vector<1x8x8x128xf32>
    %29 = vector.shape_cast %28 : vector<1x8x8x128xf32> to vector<8x8x128xf32>
    %c3_40 = arith.constant 3 : index
    %c1_41 = arith.constant 1 : index
    %c0_42 = arith.constant 0 : index
    %c0_43 = arith.constant 0 : index
    %30 = vector.load %arg9[%c3_40, %c1_41, %c0_42, %c0_43] : memref<4x9x9x128xf32, #tpu.memory_space<vmem>>, vector<1x8x8x128xf32>
    %31 = vector.shape_cast %30 : vector<1x8x8x128xf32> to vector<8x8x128xf32>
    %c2_44 = arith.constant 2 : index
    %c1_45 = arith.constant 1 : index
    %c1_46 = arith.constant 1 : index
    %c0_47 = arith.constant 0 : index
    %32 = vector.load %arg9[%c2_44, %c1_45, %c1_46, %c0_47] : memref<4x9x9x128xf32, #tpu.memory_space<vmem>>, vector<1x8x8x128xf32>
    %33 = vector.shape_cast %32 : vector<1x8x8x128xf32> to vector<8x8x128xf32>
    %c3_48 = arith.constant 3 : index
    %c1_49 = arith.constant 1 : index
    %c1_50 = arith.constant 1 : index
    %c0_51 = arith.constant 0 : index
    %34 = vector.load %arg9[%c3_48, %c1_49, %c1_50, %c0_51] : memref<4x9x9x128xf32, #tpu.memory_space<vmem>>, vector<1x8x8x128xf32>
    %35 = vector.shape_cast %34 : vector<1x8x8x128xf32> to vector<8x8x128xf32>
    %36 = tpu.concatenate %19, %21, %23, %25, %27, %29, %31, %33, %35 in 2 : vector<8x8x128xf32>, vector<8x8x128xf32>, vector<8x8x128xf32>, vector<8x8x128xf32>, vector<8x8x128xf32>, vector<8x8x128xf32>, vector<8x8x128xf32>, vector<8x8x128xf32>, vector<8x8x128xf32> -> vector<8x8x1152xf32>
    %37 = vector.shape_cast %36 : vector<8x8x1152xf32> to vector<64x1152xf32>
    %38 = arith.truncf %37 : vector<64x1152xf32> to vector<64x1152xbf16>
    %c0_52 = arith.constant 0 : index
    %c0_53 = arith.constant 0 : index
    %39 = vector.load %arg3[%c0_52, %c0_53] : memref<1152x128xbf16, #tpu.memory_space<vmem>>, vector<1152x128xbf16>
    %cst_54 = arith.constant dense<0.000000e+00> : vector<64x128xf32>
    %40 = tpu.matmul %38, %39, %cst_54 {dimension_numbers = #tpu.dot_dimension_numbers<[1], [0], [0], [1], [0, 0, 1, 1], [], []>} : vector<64x1152xbf16>, vector<1152x128xbf16>, vector<64x128xf32> -> vector<64x128xf32>
    %c1_55 = arith.constant 1 : index
    %c0_56 = arith.constant 0 : index
    %41 = vector.load %arg6[%c1_55, %c0_56] : memref<4x128xf32, #tpu.memory_space<vmem>>, vector<1x128xf32>
    %c1_57 = arith.constant 1 : index
    %c0_58 = arith.constant 0 : index
    %42 = vector.load %arg7[%c1_57, %c0_58] : memref<4x128xf32, #tpu.memory_space<vmem>>, vector<1x128xf32>
    %43 = vector.broadcast %41 : vector<1x128xf32> to vector<64x128xf32>
    %44 = arith.mulf %40, %43 : vector<64x128xf32>
    %45 = vector.broadcast %42 : vector<1x128xf32> to vector<64x128xf32>
    %46 = arith.addf %44, %45 : vector<64x128xf32>
    %cst_59 = arith.constant 0.000000e+00 : f32
    %47 = vector.broadcast %cst_59 : f32 to vector<64x128xf32>
    %48 = arith.maximumf %46, %47 : vector<64x128xf32>
    %49 = vector.shape_cast %48 : vector<64x128xf32> to vector<4x2x4x2x128xf32>
    %cst_60 = arith.constant dense<0xFF800000> : vector<4x2x4x128xf32>
    %50 = vector.multi_reduction <maximumf>, %49, %cst_60 [3] : vector<4x2x4x2x128xf32> to vector<4x2x4x128xf32>
    %cst_61 = arith.constant dense<0xFF800000> : vector<4x4x128xf32>
    %51 = vector.multi_reduction <maximumf>, %50, %cst_61 [1] : vector<4x2x4x128xf32> to vector<4x4x128xf32>
    %cst_62 = arith.constant 0.000000e+00 : f32
    %52 = vector.broadcast %cst_62 : f32 to vector<6x6x128xf32>
    %c0_63 = arith.constant 0 : index
    %c0_64 = arith.constant 0 : index
    %c0_65 = arith.constant 0 : index
    %53 = vector.load %arg10[%c0_63, %c0_64, %c0_65] : memref<6x6x128xf32, #tpu.memory_space<vmem>>, vector<6x6x128xf32>
    tpu.vector_store %arg10[%c0_63, %c0_64, %c0_65], %52 {strides = array<i32>} : memref<6x6x128xf32, #tpu.memory_space<vmem>>, vector<6x6x128xf32>,
    %c1_66 = arith.constant 1 : index
    %c1_67 = arith.constant 1 : index
    %c0_68 = arith.constant 0 : index
    %54 = vector.load %arg10[%c1_66, %c1_67, %c0_68] : memref<6x6x128xf32, #tpu.memory_space<vmem>>, vector<4x4x128xf32>
    tpu.vector_store %arg10[%c1_66, %c1_67, %c0_68], %51 {strides = array<i32>} : memref<6x6x128xf32, #tpu.memory_space<vmem>>, vector<4x4x128xf32>,
    %c0_69 = arith.constant 0 : index
    %c0_70 = arith.constant 0 : index
    %c0_71 = arith.constant 0 : index
    %55 = vector.load %arg10[%c0_69, %c0_70, %c0_71] : memref<6x6x128xf32, #tpu.memory_space<vmem>>, vector<1x1x128xf32>
    %56 = vector.shape_cast %55 : vector<1x1x128xf32> to vector<1x128xf32>
    %c0_72 = arith.constant 0 : index
    %c1_73 = arith.constant 1 : index
    %c0_74 = arith.constant 0 : index
    %57 = vector.load %arg10[%c0_72, %c1_73, %c0_74] : memref<6x6x128xf32, #tpu.memory_space<vmem>>, vector<1x1x128xf32>
    %58 = vector.shape_cast %57 : vector<1x1x128xf32> to vector<1x128xf32>
    %c0_75 = arith.constant 0 : index
    %c2_76 = arith.constant 2 : index
    %c0_77 = arith.constant 0 : index
    %59 = vector.load %arg10[%c0_75, %c2_76, %c0_77] : memref<6x6x128xf32, #tpu.memory_space<vmem>>, vector<1x1x128xf32>
    %60 = vector.shape_cast %59 : vector<1x1x128xf32> to vector<1x128xf32>
    %c1_78 = arith.constant 1 : index
    %c0_79 = arith.constant 0 : index
    %c0_80 = arith.constant 0 : index
    %61 = vector.load %arg10[%c1_78, %c0_79, %c0_80] : memref<6x6x128xf32, #tpu.memory_space<vmem>>, vector<1x1x128xf32>
    %62 = vector.shape_cast %61 : vector<1x1x128xf32> to vector<1x128xf32>
    %c1_81 = arith.constant 1 : index
    %c1_82 = arith.constant 1 : index
    %c0_83 = arith.constant 0 : index
    %63 = vector.load %arg10[%c1_81, %c1_82, %c0_83] : memref<6x6x128xf32, #tpu.memory_space<vmem>>, vector<1x1x128xf32>
    %64 = vector.shape_cast %63 : vector<1x1x128xf32> to vector<1x128xf32>
    %c1_84 = arith.constant 1 : index
    %c2_85 = arith.constant 2 : index
    %c0_86 = arith.constant 0 : index
    %65 = vector.load %arg10[%c1_84, %c2_85, %c0_86] : memref<6x6x128xf32, #tpu.memory_space<vmem>>, vector<1x1x128xf32>
    %66 = vector.shape_cast %65 : vector<1x1x128xf32> to vector<1x128xf32>
    %c2_87 = arith.constant 2 : index
    %c0_88 = arith.constant 0 : index
    %c0_89 = arith.constant 0 : index
    %67 = vector.load %arg10[%c2_87, %c0_88, %c0_89] : memref<6x6x128xf32, #tpu.memory_space<vmem>>, vector<1x1x128xf32>
    %68 = vector.shape_cast %67 : vector<1x1x128xf32> to vector<1x128xf32>
    %c2_90 = arith.constant 2 : index
    %c1_91 = arith.constant 1 : index
    %c0_92 = arith.constant 0 : index
    %69 = vector.load %arg10[%c2_90, %c1_91, %c0_92] : memref<6x6x128xf32, #tpu.memory_space<vmem>>, vector<1x1x128xf32>
    %70 = vector.shape_cast %69 : vector<1x1x128xf32> to vector<1x128xf32>
    %c2_93 = arith.constant 2 : index
    %c2_94 = arith.constant 2 : index
    %c0_95 = arith.constant 0 : index
    %71 = vector.load %arg10[%c2_93, %c2_94, %c0_95] : memref<6x6x128xf32, #tpu.memory_space<vmem>>, vector<1x1x128xf32>
    %72 = vector.shape_cast %71 : vector<1x1x128xf32> to vector<1x128xf32>
    %73 = tpu.concatenate %56, %58, %60, %62, %64, %66, %68, %70, %72 in 1 : vector<1x128xf32>, vector<1x128xf32>, vector<1x128xf32>, vector<1x128xf32>, vector<1x128xf32>, vector<1x128xf32>, vector<1x128xf32>, vector<1x128xf32>, vector<1x128xf32> -> vector<1x1152xf32>
    %c0_96 = arith.constant 0 : index
    %c2_97 = arith.constant 2 : index
    %c0_98 = arith.constant 0 : index
    %74 = vector.load %arg10[%c0_96, %c2_97, %c0_98] : memref<6x6x128xf32, #tpu.memory_space<vmem>>, vector<1x1x128xf32>
    %75 = vector.shape_cast %74 : vector<1x1x128xf32> to vector<1x128xf32>
    %c0_99 = arith.constant 0 : index
    %c3_100 = arith.constant 3 : index
    %c0_101 = arith.constant 0 : index
    %76 = vector.load %arg10[%c0_99, %c3_100, %c0_101] : memref<6x6x128xf32, #tpu.memory_space<vmem>>, vector<1x1x128xf32>
    %77 = vector.shape_cast %76 : vector<1x1x128xf32> to vector<1x128xf32>
    %c0_102 = arith.constant 0 : index
    %c4 = arith.constant 4 : index
    %c0_103 = arith.constant 0 : index
    %78 = vector.load %arg10[%c0_102, %c4, %c0_103] : memref<6x6x128xf32, #tpu.memory_space<vmem>>, vector<1x1x128xf32>
    %79 = vector.shape_cast %78 : vector<1x1x128xf32> to vector<1x128xf32>
    %c1_104 = arith.constant 1 : index
    %c2_105 = arith.constant 2 : index
    %c0_106 = arith.constant 0 : index
    %80 = vector.load %arg10[%c1_104, %c2_105, %c0_106] : memref<6x6x128xf32, #tpu.memory_space<vmem>>, vector<1x1x128xf32>
    %81 = vector.shape_cast %80 : vector<1x1x128xf32> to vector<1x128xf32>
    %c1_107 = arith.constant 1 : index
    %c3_108 = arith.constant 3 : index
    %c0_109 = arith.constant 0 : index
    %82 = vector.load %arg10[%c1_107, %c3_108, %c0_109] : memref<6x6x128xf32, #tpu.memory_space<vmem>>, vector<1x1x128xf32>
    %83 = vector.shape_cast %82 : vector<1x1x128xf32> to vector<1x128xf32>
    %c1_110 = arith.constant 1 : index
    %c4_111 = arith.constant 4 : index
    %c0_112 = arith.constant 0 : index
    %84 = vector.load %arg10[%c1_110, %c4_111, %c0_112] : memref<6x6x128xf32, #tpu.memory_space<vmem>>, vector<1x1x128xf32>
    %85 = vector.shape_cast %84 : vector<1x1x128xf32> to vector<1x128xf32>
    %c2_113 = arith.constant 2 : index
    %c2_114 = arith.constant 2 : index
    %c0_115 = arith.constant 0 : index
    %86 = vector.load %arg10[%c2_113, %c2_114, %c0_115] : memref<6x6x128xf32, #tpu.memory_space<vmem>>, vector<1x1x128xf32>
    %87 = vector.shape_cast %86 : vector<1x1x128xf32> to vector<1x128xf32>
    %c2_116 = arith.constant 2 : index
    %c3_117 = arith.constant 3 : index
    %c0_118 = arith.constant 0 : index
    %88 = vector.load %arg10[%c2_116, %c3_117, %c0_118] : memref<6x6x128xf32, #tpu.memory_space<vmem>>, vector<1x1x128xf32>
    %89 = vector.shape_cast %88 : vector<1x1x128xf32> to vector<1x128xf32>
    %c2_119 = arith.constant 2 : index
    %c4_120 = arith.constant 4 : index
    %c0_121 = arith.constant 0 : index
    %90 = vector.load %arg10[%c2_119, %c4_120, %c0_121] : memref<6x6x128xf32, #tpu.memory_space<vmem>>, vector<1x1x128xf32>
    %91 = vector.shape_cast %90 : vector<1x1x128xf32> to vector<1x128xf32>
    %92 = tpu.concatenate %75, %77, %79, %81, %83, %85, %87, %89, %91 in 1 : vector<1x128xf32>, vector<1x128xf32>, vector<1x128xf32>, vector<1x128xf32>, vector<1x128xf32>, vector<1x128xf32>, vector<1x128xf32>, vector<1x128xf32>, vector<1x128xf32> -> vector<1x1152xf32>
    %c2_122 = arith.constant 2 : index
    %c0_123 = arith.constant 0 : index
    %c0_124 = arith.constant 0 : index
    %93 = vector.load %arg10[%c2_122, %c0_123, %c0_124] : memref<6x6x128xf32, #tpu.memory_space<vmem>>, vector<1x1x128xf32>
    %94 = vector.shape_cast %93 : vector<1x1x128xf32> to vector<1x128xf32>
    %c2_125 = arith.constant 2 : index
    %c1_126 = arith.constant 1 : index
    %c0_127 = arith.constant 0 : index
    %95 = vector.load %arg10[%c2_125, %c1_126, %c0_127] : memref<6x6x128xf32, #tpu.memory_space<vmem>>, vector<1x1x128xf32>
    %96 = vector.shape_cast %95 : vector<1x1x128xf32> to vector<1x128xf32>
    %c2_128 = arith.constant 2 : index
    %c2_129 = arith.constant 2 : index
    %c0_130 = arith.constant 0 : index
    %97 = vector.load %arg10[%c2_128, %c2_129, %c0_130] : memref<6x6x128xf32, #tpu.memory_space<vmem>>, vector<1x1x128xf32>
    %98 = vector.shape_cast %97 : vector<1x1x128xf32> to vector<1x128xf32>
    %c3_131 = arith.constant 3 : index
    %c0_132 = arith.constant 0 : index
    %c0_133 = arith.constant 0 : index
    %99 = vector.load %arg10[%c3_131, %c0_132, %c0_133] : memref<6x6x128xf32, #tpu.memory_space<vmem>>, vector<1x1x128xf32>
    %100 = vector.shape_cast %99 : vector<1x1x128xf32> to vector<1x128xf32>
    %c3_134 = arith.constant 3 : index
    %c1_135 = arith.constant 1 : index
    %c0_136 = arith.constant 0 : index
    %101 = vector.load %arg10[%c3_134, %c1_135, %c0_136] : memref<6x6x128xf32, #tpu.memory_space<vmem>>, vector<1x1x128xf32>
    %102 = vector.shape_cast %101 : vector<1x1x128xf32> to vector<1x128xf32>
    %c3_137 = arith.constant 3 : index
    %c2_138 = arith.constant 2 : index
    %c0_139 = arith.constant 0 : index
    %103 = vector.load %arg10[%c3_137, %c2_138, %c0_139] : memref<6x6x128xf32, #tpu.memory_space<vmem>>, vector<1x1x128xf32>
    %104 = vector.shape_cast %103 : vector<1x1x128xf32> to vector<1x128xf32>
    %c4_140 = arith.constant 4 : index
    %c0_141 = arith.constant 0 : index
    %c0_142 = arith.constant 0 : index
    %105 = vector.load %arg10[%c4_140, %c0_141, %c0_142] : memref<6x6x128xf32, #tpu.memory_space<vmem>>, vector<1x1x128xf32>
    %106 = vector.shape_cast %105 : vector<1x1x128xf32> to vector<1x128xf32>
    %c4_143 = arith.constant 4 : index
    %c1_144 = arith.constant 1 : index
    %c0_145 = arith.constant 0 : index
    %107 = vector.load %arg10[%c4_143, %c1_144, %c0_145] : memref<6x6x128xf32, #tpu.memory_space<vmem>>, vector<1x1x128xf32>
    %108 = vector.shape_cast %107 : vector<1x1x128xf32> to vector<1x128xf32>
    %c4_146 = arith.constant 4 : index
    %c2_147 = arith.constant 2 : index
    %c0_148 = arith.constant 0 : index
    %109 = vector.load %arg10[%c4_146, %c2_147, %c0_148] : memref<6x6x128xf32, #tpu.memory_space<vmem>>, vector<1x1x128xf32>
    %110 = vector.shape_cast %109 : vector<1x1x128xf32> to vector<1x128xf32>
    %111 = tpu.concatenate %94, %96, %98, %100, %102, %104, %106, %108, %110 in 1 : vector<1x128xf32>, vector<1x128xf32>, vector<1x128xf32>, vector<1x128xf32>, vector<1x128xf32>, vector<1x128xf32>, vector<1x128xf32>, vector<1x128xf32>, vector<1x128xf32> -> vector<1x1152xf32>
    %c2_149 = arith.constant 2 : index
    %c2_150 = arith.constant 2 : index
    %c0_151 = arith.constant 0 : index
    %112 = vector.load %arg10[%c2_149, %c2_150, %c0_151] : memref<6x6x128xf32, #tpu.memory_space<vmem>>, vector<1x1x128xf32>
    %113 = vector.shape_cast %112 : vector<1x1x128xf32> to vector<1x128xf32>
    %c2_152 = arith.constant 2 : index
    %c3_153 = arith.constant 3 : index
    %c0_154 = arith.constant 0 : index
    %114 = vector.load %arg10[%c2_152, %c3_153, %c0_154] : memref<6x6x128xf32, #tpu.memory_space<vmem>>, vector<1x1x128xf32>
    %115 = vector.shape_cast %114 : vector<1x1x128xf32> to vector<1x128xf32>
    %c2_155 = arith.constant 2 : index
    %c4_156 = arith.constant 4 : index
    %c0_157 = arith.constant 0 : index
    %116 = vector.load %arg10[%c2_155, %c4_156, %c0_157] : memref<6x6x128xf32, #tpu.memory_space<vmem>>, vector<1x1x128xf32>
    %117 = vector.shape_cast %116 : vector<1x1x128xf32> to vector<1x128xf32>
    %c3_158 = arith.constant 3 : index
    %c2_159 = arith.constant 2 : index
    %c0_160 = arith.constant 0 : index
    %118 = vector.load %arg10[%c3_158, %c2_159, %c0_160] : memref<6x6x128xf32, #tpu.memory_space<vmem>>, vector<1x1x128xf32>
    %119 = vector.shape_cast %118 : vector<1x1x128xf32> to vector<1x128xf32>
    %c3_161 = arith.constant 3 : index
    %c3_162 = arith.constant 3 : index
    %c0_163 = arith.constant 0 : index
    %120 = vector.load %arg10[%c3_161, %c3_162, %c0_163] : memref<6x6x128xf32, #tpu.memory_space<vmem>>, vector<1x1x128xf32>
    %121 = vector.shape_cast %120 : vector<1x1x128xf32> to vector<1x128xf32>
    %c3_164 = arith.constant 3 : index
    %c4_165 = arith.constant 4 : index
    %c0_166 = arith.constant 0 : index
    %122 = vector.load %arg10[%c3_164, %c4_165, %c0_166] : memref<6x6x128xf32, #tpu.memory_space<vmem>>, vector<1x1x128xf32>
    %123 = vector.shape_cast %122 : vector<1x1x128xf32> to vector<1x128xf32>
    %c4_167 = arith.constant 4 : index
    %c2_168 = arith.constant 2 : index
    %c0_169 = arith.constant 0 : index
    %124 = vector.load %arg10[%c4_167, %c2_168, %c0_169] : memref<6x6x128xf32, #tpu.memory_space<vmem>>, vector<1x1x128xf32>
    %125 = vector.shape_cast %124 : vector<1x1x128xf32> to vector<1x128xf32>
    %c4_170 = arith.constant 4 : index
    %c3_171 = arith.constant 3 : index
    %c0_172 = arith.constant 0 : index
    %126 = vector.load %arg10[%c4_170, %c3_171, %c0_172] : memref<6x6x128xf32, #tpu.memory_space<vmem>>, vector<1x1x128xf32>
    %127 = vector.shape_cast %126 : vector<1x1x128xf32> to vector<1x128xf32>
    %c4_173 = arith.constant 4 : index
    %c4_174 = arith.constant 4 : index
    %c0_175 = arith.constant 0 : index
    %128 = vector.load %arg10[%c4_173, %c4_174, %c0_175] : memref<6x6x128xf32, #tpu.memory_space<vmem>>, vector<1x1x128xf32>
    %129 = vector.shape_cast %128 : vector<1x1x128xf32> to vector<1x128xf32>
    %130 = tpu.concatenate %113, %115, %117, %119, %121, %123, %125, %127, %129 in 1 : vector<1x128xf32>, vector<1x128xf32>, vector<1x128xf32>, vector<1x128xf32>, vector<1x128xf32>, vector<1x128xf32>, vector<1x128xf32>, vector<1x128xf32>, vector<1x128xf32> -> vector<1x1152xf32>
    %131 = tpu.concatenate %73, %92, %111, %130 in 0 : vector<1x1152xf32>, vector<1x1152xf32>, vector<1x1152xf32>, vector<1x1152xf32> -> vector<4x1152xf32>
    %132 = arith.truncf %131 : vector<4x1152xf32> to vector<4x1152xbf16>
    %c0_176 = arith.constant 0 : index
    %c0_177 = arith.constant 0 : index
    %133 = vector.load %arg4[%c0_176, %c0_177] : memref<1152x128xbf16, #tpu.memory_space<vmem>>, vector<1152x128xbf16>
    %cst_178 = arith.constant dense<0.000000e+00> : vector<4x128xf32>
    %134 = tpu.matmul %132, %133, %cst_178 {dimension_numbers = #tpu.dot_dimension_numbers<[1], [0], [0], [1], [0, 0, 1, 1], [], []>} : vector<4x1152xbf16>, vector<1152x128xbf16>, vector<4x128xf32> -> vector<4x128xf32>
    %c2_179 = arith.constant 2 : index
    %c0_180 = arith.constant 0 : index
    %135 = vector.load %arg6[%c2_179, %c0_180] : memref<4x128xf32, #tpu.memory_space<vmem>>, vector<1x128xf32>
    %c2_181 = arith.constant 2 : index
    %c0_182 = arith.constant 0 : index
    %136 = vector.load %arg7[%c2_181, %c0_182] : memref<4x128xf32, #tpu.memory_space<vmem>>, vector<1x128xf32>
    %137 = vector.broadcast %135 : vector<1x128xf32> to vector<4x128xf32>
    %138 = arith.mulf %134, %137 : vector<4x128xf32>
    %139 = vector.broadcast %136 : vector<1x128xf32> to vector<4x128xf32>
    %140 = arith.addf %138, %139 : vector<4x128xf32>
    %cst_183 = arith.constant 0.000000e+00 : f32
    %141 = vector.broadcast %cst_183 : f32 to vector<4x128xf32>
    %142 = arith.maximumf %140, %141 : vector<4x128xf32>
    %cst_184 = arith.constant dense<0xFF800000> : vector<128xf32>
    %143 = vector.multi_reduction <maximumf>, %142, %cst_184 [0] : vector<4x128xf32> to vector<128xf32>
    %144 = vector.shape_cast %143 : vector<128xf32> to vector<1x128xf32>
    %145 = arith.truncf %144 : vector<1x128xf32> to vector<1x128xbf16>
    %c0_185 = arith.constant 0 : index
    %c0_186 = arith.constant 0 : index
    %146 = vector.load %arg5[%c0_185, %c0_186] : memref<128x128xbf16, #tpu.memory_space<vmem>>, vector<128x128xbf16>
    %cst_187 = arith.constant dense<0.000000e+00> : vector<1x128xf32>
    %147 = tpu.matmul %145, %146, %cst_187 {dimension_numbers = #tpu.dot_dimension_numbers<[1], [0], [0], [1], [0, 0, 1, 1], [], []>} : vector<1x128xbf16>, vector<128x128xbf16>, vector<1x128xf32> -> vector<1x128xf32>
    %c3_188 = arith.constant 3 : index
    %c0_189 = arith.constant 0 : index
    %148 = vector.load %arg6[%c3_188, %c0_189] : memref<4x128xf32, #tpu.memory_space<vmem>>, vector<1x128xf32>
    %c3_190 = arith.constant 3 : index
    %c0_191 = arith.constant 0 : index
    %149 = vector.load %arg7[%c3_190, %c0_191] : memref<4x128xf32, #tpu.memory_space<vmem>>, vector<1x128xf32>
    %150 = arith.mulf %147, %148 : vector<1x128xf32>
    %151 = arith.addf %150, %149 : vector<1x128xf32>
    %cst_192 = arith.constant 0.000000e+00 : f32
    %152 = vector.broadcast %cst_192 : f32 to vector<1x128xf32>
    %153 = arith.maximumf %151, %152 : vector<1x128xf32>
    %154 = arith.mulf %153, %153 : vector<1x128xf32>
    %cst_193 = arith.constant dense<0.000000e+00> : vector<1xf32>
    %155 = vector.multi_reduction <add>, %154, %cst_193 [1] : vector<1x128xf32> to vector<1xf32>
    %156 = vector.shape_cast %155 : vector<1xf32> to vector<1x1xf32>
    %cst_194 = arith.constant 1.000000e-24 : f32
    %157 = vector.broadcast %cst_194 : f32 to vector<1x1xf32>
    %158 = arith.maximumf %156, %157 : vector<1x1xf32>
    %159 = math.rsqrt %158 : vector<1x1xf32>
    %160 = vector.broadcast %159 : vector<1x1xf32> to vector<1x128xf32>
    %161 = arith.mulf %153, %160 : vector<1x128xf32>
    %162 = vector.shape_cast %161 : vector<1x128xf32> to vector<1x128xf32>
    %163 = vector.broadcast %162 : vector<1x128xf32> to vector<8x128xf32>
    %c0_195 = arith.constant 0 : index
    %c0_196 = arith.constant 0 : index
    %c0_197 = arith.constant 0 : index
    %164 = vector.load %arg8[%c0_195, %c0_196, %c0_197] : memref<1x8x128xf32, #tpu.memory_space<vmem>>, vector<1x8x128xf32>
    %165 = vector.shape_cast %164 : vector<1x8x128xf32> to vector<8x128xf32>
    %166 = vector.shape_cast %163 : vector<8x128xf32> to vector<1x8x128xf32>
    tpu.vector_store %arg8[%c0_195, %c0_196, %c0_197], %166 {strides = array<i32>} : memref<1x8x128xf32, #tpu.memory_space<vmem>>, vector<1x8x128xf32>,
    return
  }
  func.func @transform_0(%arg0: i32) -> (i32, i32, i32) {
    %c0_i32 = arith.constant 0 : i32
    %c0_i32_0 = arith.constant 0 : i32
    %c0_i32_1 = arith.constant 0 : i32
    return %arg0, %c0_i32, %c0_i32_0 : i32, i32, i32
  }
  func.func @transform_1(%arg0: i32) -> (i32, i32) {
    %c0_i32 = arith.constant 0 : i32
    %c0_i32_0 = arith.constant 0 : i32
    %c0_i32_1 = arith.constant 0 : i32
    return %c0_i32, %c0_i32_0 : i32, i32
  }
  func.func @transform_2(%arg0: i32) -> (i32, i32) {
    %c0_i32 = arith.constant 0 : i32
    %c0_i32_0 = arith.constant 0 : i32
    %c0_i32_1 = arith.constant 0 : i32
    return %c0_i32, %c0_i32_0 : i32, i32
  }
  func.func @transform_3(%arg0: i32) -> (i32, i32) {
    %c0_i32 = arith.constant 0 : i32
    %c0_i32_0 = arith.constant 0 : i32
    %c0_i32_1 = arith.constant 0 : i32
    return %c0_i32, %c0_i32_0 : i32, i32
  }
  func.func @transform_4(%arg0: i32) -> (i32, i32) {
    %c0_i32 = arith.constant 0 : i32
    %c0_i32_0 = arith.constant 0 : i32
    %c0_i32_1 = arith.constant 0 : i32
    return %c0_i32, %c0_i32_0 : i32, i32
  }
  func.func @transform_5(%arg0: i32) -> (i32, i32) {
    %c0_i32 = arith.constant 0 : i32
    %c0_i32_0 = arith.constant 0 : i32
    %c0_i32_1 = arith.constant 0 : i32
    return %c0_i32, %c0_i32_0 : i32, i32
  }
  func.func @transform_6(%arg0: i32) -> (i32, i32) {
    %c0_i32 = arith.constant 0 : i32
    %c0_i32_0 = arith.constant 0 : i32
    %c0_i32_1 = arith.constant 0 : i32
    return %c0_i32, %c0_i32_0 : i32, i32
  }
  func.func @transform_7(%arg0: i32) -> (i32, i32, i32) {
    %c0_i32 = arith.constant 0 : i32
    %c0_i32_0 = arith.constant 0 : i32
    %c0_i32_1 = arith.constant 0 : i32
    return %arg0, %c0_i32, %c0_i32_0 : i32, i32, i32
  }
}

</mosaic_0001>

<llo_original>
// kernel: _lambda_.1
$region0: #{_lambda_.1}
  #allocation0 [shape = 'u32[]', space=smem, size = 0x4, offset = 0x4, fixed_abs, tag = 'smem constant byte address 0x4 - core index']
  #allocation1 [shape = 'u32[72,128]{1,0:T(1,128)}', space=vmem, size = 0x9000, scoped, tag = 'internal scratch']
  #allocation2 [shape = 'f32[4,9,9,128]{3,2,1,0:T(8,128)}', space=vmem, size = 0x48000, scoped, tag = 'scratch operand']
  #allocation3 [shape = 'f32[6,6,128]{2,1,0:T(8,128)}', space=vmem, size = 0x6000, scoped, tag = 'scratch operand']
  %s0 = inlined_call_operand.vmem [shape: bf16[2,1024,128], index: 0, kind: input, shape index: {}]
  %s1 = inlined_call_operand.vmem [shape: bf16[128,128], index: 1, kind: input, shape index: {}]
  %s2 = inlined_call_operand.vmem [shape: bf16[1152,128], index: 2, kind: input, shape index: {}]
  %s3 = inlined_call_operand.vmem [shape: bf16[1152,128], index: 3, kind: input, shape index: {}]
  %s4 = inlined_call_operand.vmem [shape: bf16[128,128], index: 4, kind: input, shape index: {}]
  %s5 = inlined_call_operand.vmem [shape: f32[4,128], index: 5, kind: input, shape index: {}]
  %s6 = inlined_call_operand.vmem [shape: f32[4,128], index: 6, kind: input, shape index: {}]
  %s7 = inlined_call_operand.vmem [shape: f32[2,8,128], index: 7, kind: output, shape index: {}]
  %s8 = sld [smem:[#allocation0]]
  $region61: #{_lambda_.1} parent=0
    _
  %s10 = ssub.s32 1, %s8
  %s11 = scalar_select 0, %s10, %s8
  loop: start=0, step=1, limit=4
  $region2: #{_lambda_.1} parent=0 // loop_pre_header
    _
  $region3: #{_lambda_.1} parent=0 // loop_header
    %s13 = sphi 0, %s17
    %p14 = scmp.ge.s32.totalorder %s13, 4
    %s23 = sphi 0, %s25
    %s26 = sphi 0, %s23
    %s27 = sphi 0, %s26
    %s43 = sphi 0, %s27
    %s47 = sphi 0, %s47
    %s49 = sphi 0, %s47
    %s50 = sphi 0, %s49
    %s64 = sphi 0, %s50
    %s68 = sphi 0, %s68
    %s70 = sphi 0, %s68
    %s71 = sphi 0, %s70
    %s85 = sphi 0, %s71
    %s89 = sphi 0, %s89
    %s91 = sphi 0, %s89
    %s92 = sphi 0, %s91
    %s106 = sphi 0, %s92
    %s110 = sphi 0, %s110
    %s112 = sphi 0, %s110
    %s113 = sphi 0, %s112
    %s127 = sphi 0, %s113
    %s131 = sphi 0, %s131
    %s133 = sphi 0, %s131
    %s134 = sphi 0, %s133
    %s148 = sphi 0, %s134
    %s152 = sphi 0, %s152
    %s154 = sphi 0, %s152
    %s155 = sphi 0, %s154
    %s169 = sphi 0, %s155
    %s175 = sphi 0, %s177
    %s178 = sphi 0, %s175
    %s179 = sphi 0, %s178
    %s195 = sphi 0, %s179
  $region4: #{_lambda_.1} parent=0 // loop_header_branch
    %16 = sbr.rel (%p14) target = $region8
  $region5: #{_lambda_.1} parent=0 // loop_body
    %s18 = ssub.s32 %s13, 1
    %s19 = ssub.s32 %s13, 2
    %s20 = sadd.s32 %s13, 1
    %s21 = ssub.s32 %s13, %s20
    %p22 = scmp.eq.s32.totalorder %s21, 0
    %s24 = sadd.s32 %s23, 1
    %s25 = scalar_select %p22, %s23, %s24
    %p28 = pneg %p22
    %p29 = scmp.eq.s32.totalorder %s13, 1
    %p30 = por %p28, %p29
    %p31 = scmp.ne.s32.totalorder %s23, %s26
    %p32 = scmp.eq.s32.totalorder %s13, 0
    %p33 = por %p31, %p32
    %p34 = scmp.ne.s32.totalorder %s23, %s26
    %p35 = scmp.eq.s32.totalorder %s18, 1
    %p36 = por %p34, %p35
    %p37 = scmp.ne.s32.totalorder %s26, %s27
    %p38 = scmp.eq.s32.totalorder %s18, 0
    %p39 = por %p37, %p38
    %p40 = scmp.ne.s32.totalorder %s26, %s27
    %p41 = scmp.eq.s32.totalorder %s19, 1
    %p42 = por %p40, %p41
    %p44 = scmp.ne.s32.totalorder %s27, %s43
    %p45 = scmp.eq.s32.totalorder %s19, 0
    %p46 = por %p44, %p45
    %s48 = sadd.s32 %s47, 1
    %p51 = scmp.eq.s32.totalorder %s13, 1
    %p52 = scmp.ne.s32.totalorder %s47, %s49
    %p53 = scmp.eq.s32.totalorder %s13, 0
    %p54 = por %p52, %p53
    %p55 = scmp.ne.s32.totalorder %s47, %s49
    %p56 = scmp.eq.s32.totalorder %s18, 1
    %p57 = por %p55, %p56
    %p58 = scmp.ne.s32.totalorder %s49, %s50
    %p59 = scmp.eq.s32.totalorder %s18, 0
    %p60 = por %p58, %p59
    %p61 = scmp.ne.s32.totalorder %s49, %s50
    %p62 = scmp.eq.s32.totalorder %s19, 1
    %p63 = por %p61, %p62
    %p65 = scmp.ne.s32.totalorder %s50, %s64
    %p66 = scmp.eq.s32.totalorder %s19, 0
    %p67 = por %p65, %p66
    %s69 = sadd.s32 %s68, 1
    %p72 = scmp.eq.s32.totalorder %s13, 1
    %p73 = scmp.ne.s32.totalorder %s68, %s70
    %p74 = scmp.eq.s32.totalorder %s13, 0
    %p75 = por %p73, %p74
    %p76 = scmp.ne.s32.totalorder %s68, %s70
    %p77 = scmp.eq.s32.totalorder %s18, 1
    %p78 = por %p76, %p77
    %p79 = scmp.ne.s32.totalorder %s70, %s71
    %p80 = scmp.eq.s32.totalorder %s18, 0
    %p81 = por %p79, %p80
    %p82 = scmp.ne.s32.totalorder %s70, %s71
    %p83 = scmp.eq.s32.totalorder %s19, 1
    %p84 = por %p82, %p83
    %p86 = scmp.ne.s32.totalorder %s71, %s85
    %p87 = scmp.eq.s32.totalorder %s19, 0
    %p88 = por %p86, %p87
    %s90 = sadd.s32 %s89, 1
    %p93 = scmp.eq.s32.totalorder %s13, 1
    %p94 = scmp.ne.s32.totalorder %s89, %s91
    %p95 = scmp.eq.s32.totalorder %s13, 0
    %p96 = por %p94, %p95
    %p97 = scmp.ne.s32.totalorder %s89, %s91
    %p98 = scmp.eq.s32.totalorder %s18, 1
    %p99 = por %p97, %p98
    %p100 = scmp.ne.s32.totalorder %s91, %s92
    %p101 = scmp.eq.s32.totalorder %s18, 0
    %p102 = por %p100, %p101
    %p103 = scmp.ne.s32.totalorder %s91, %s92
    %p104 = scmp.eq.s32.totalorder %s19, 1
    %p105 = por %p103, %p104
    %p107 = scmp.ne.s32.totalorder %s92, %s106
    %p108 = scmp.eq.s32.totalorder %s19, 0
    %p109 = por %p107, %p108
    %s111 = sadd.s32 %s110, 1
    %p114 = scmp.eq.s32.totalorder %s13, 1
    %p115 = scmp.ne.s32.totalorder %s110, %s112
    %p116 = scmp.eq.s32.totalorder %s13, 0
    %p117 = por %p115, %p116
    %p118 = scmp.ne.s32.totalorder %s110, %s112
    %p119 = scmp.eq.s32.totalorder %s18, 1
    %p120 = por %p118, %p119
    %p121 = scmp.ne.s32.totalorder %s112, %s113
    %p122 = scmp.eq.s32.totalorder %s18, 0
    %p123 = por %p121, %p122
    %p124 = scmp.ne.s32.totalorder %s112, %s113
    %p125 = scmp.eq.s32.totalorder %s19, 1
    %p126 = por %p124, %p125
    %p128 = scmp.ne.s32.totalorder %s113, %s127
    %p129 = scmp.eq.s32.totalorder %s19, 0
    %p130 = por %p128, %p129
    %s132 = sadd.s32 %s131, 1
    %p135 = scmp.eq.s32.totalorder %s13, 1
    %p136 = scmp.ne.s32.totalorder %s131, %s133
    %p137 = scmp.eq.s32.totalorder %s13, 0
    %p138 = por %p136, %p137
    %p139 = scmp.ne.s32.totalorder %s131, %s133
    %p140 = scmp.eq.s32.totalorder %s18, 1
    %p141 = por %p139, %p140
    %p142 = scmp.ne.s32.totalorder %s133, %s134
    %p143 = scmp.eq.s32.totalorder %s18, 0
    %p144 = por %p142, %p143
    %p145 = scmp.ne.s32.totalorder %s133, %s134
    %p146 = scmp.eq.s32.totalorder %s19, 1
    %p147 = por %p145, %p146
    %p149 = scmp.ne.s32.totalorder %s134, %s148
    %p150 = scmp.eq.s32.totalorder %s19, 0
    %p151 = por %p149, %p150
    %s153 = sadd.s32 %s152, 1
    %p156 = scmp.eq.s32.totalorder %s13, 1
    %p157 = scmp.ne.s32.totalorder %s152, %s154
    %p158 = scmp.eq.s32.totalorder %s13, 0
    %p159 = por %p157, %p158
    %p160 = scmp.ne.s32.totalorder %s152, %s154
    %p161 = scmp.eq.s32.totalorder %s18, 1
    %p162 = por %p160, %p161
    %p163 = scmp.ne.s32.totalorder %s154, %s155
    %p164 = scmp.eq.s32.totalorder %s18, 0
    %p165 = por %p163, %p164
    %p166 = scmp.ne.s32.totalorder %s154, %s155
    %p167 = scmp.eq.s32.totalorder %s19, 1
    %p168 = por %p166, %p167
    %p170 = scmp.ne.s32.totalorder %s155, %s169
    %p171 = scmp.eq.s32.totalorder %s19, 0
    %p172 = por %p170, %p171
    %s173 = ssub.s32 %s13, %s20
    %p174 = scmp.eq.s32.totalorder %s173, 0
    %s176 = sadd.s32 %s175, 1
    %s177 = scalar_select %p174, %s175, %s176
    %p180 = pneg %p174
    %p181 = scmp.eq.s32.totalorder %s13, 1
    %p182 = por %p180, %p181
    %p183 = scmp.ne.s32.totalorder %s175, %s178
    %p184 = scmp.eq.s32.totalorder %s13, 0
    %p185 = por %p183, %p184
    %p186 = scmp.ne.s32.totalorder %s175, %s178
    %p187 = scmp.eq.s32.totalorder %s18, 1
    %p188 = por %p186, %p187
    %p189 = scmp.ne.s32.totalorder %s178, %s179
    %p190 = scmp.eq.s32.totalorder %s18, 0
    %p191 = por %p189, %p190
    %p192 = scmp.ne.s32.totalorder %s178, %s179
    %p193 = scmp.eq.s32.totalorder %s19, 1
    %p194 = por %p192, %p193
    %p196 = scmp.ne.s32.totalorder %s179, %s195
    %p197 = scmp.eq.s32.totalorder %s19, 0
    %p198 = por %p196, %p197
    %p199 = scmp.le.s32.totalorder 1, %s13
    %p200 = scmp.lt.s32.totalorder %s13, 3
    %p201 = pnand %p199, %p200
    %p202 = pneg %p201
    // Predicated region
    $region9: #{_lambda_.1} parent=5 // pred_check
      _
    $region10: #{_lambda_.1} parent=5 // pred_check_branch
      %204 = sbr.rel (%p201) target = $region12
    $region11: #{_lambda_.1} parent=5 // pred_region
      %s205 = ssub.s32 %s13, 1
      // Predicated region
      $region13: #{_lambda_.1} parent=11 // pred_check
        %p206 = pneg %p60
      $region14: #{_lambda_.1} parent=11 // pred_check_branch
        %208 = sbr.rel (%p206) target = $region16
      $region15: #{_lambda_.1} parent=11 // pred_region
        _
      $region16: #{_lambda_.1} parent=11 // pred_fallthru
        _
      // Predicated region
      $region17: #{_lambda_.1} parent=11 // pred_check
        %p209 = pneg %p81
      $region18: #{_lambda_.1} parent=11 // pred_check_branch
        %211 = sbr.rel (%p209) target = $region20
      $region19: #{_lambda_.1} parent=11 // pred_region
        _
      $region20: #{_lambda_.1} parent=11 // pred_fallthru
        _
      // Predicated region
      $region21: #{_lambda_.1} parent=11 // pred_check
        %p212 = pneg %p102
      $region22: #{_lambda_.1} parent=11 // pred_check_branch
        %214 = sbr.rel (%p212) target = $region24
      $region23: #{_lambda_.1} parent=11 // pred_region
        _
      $region24: #{_lambda_.1} parent=11 // pred_fallthru
        _
      // Predicated region
      $region25: #{_lambda_.1} parent=11 // pred_check
        %p215 = pneg %p123
      $region26: #{_lambda_.1} parent=11 // pred_check_branch
        %217 = sbr.rel (%p215) target = $region28
      $region27: #{_lambda_.1} parent=11 // pred_region
        _
      $region28: #{_lambda_.1} parent=11 // pred_fallthru
        _
      // Predicated region
      $region29: #{_lambda_.1} parent=11 // pred_check
        %p218 = pneg %p144
      $region30: #{_lambda_.1} parent=11 // pred_check_branch
        %220 = sbr.rel (%p218) target = $region32
      $region31: #{_lambda_.1} parent=11 // pred_region
        _
      $region32: #{_lambda_.1} parent=11 // pred_fallthru
        _
      // Predicated region
      $region33: #{_lambda_.1} parent=11 // pred_check
        %p221 = pneg %p165
      $region34: #{_lambda_.1} parent=11 // pred_check_branch
        %223 = sbr.rel (%p221) target = $region36
      $region35: #{_lambda_.1} parent=11 // pred_region
        _
      $region36: #{_lambda_.1} parent=11 // pred_fallthru
        _
    $region12: #{_lambda_.1} parent=5 // pred_fallthru
      _
    %p224 = scmp.lt.s32.totalorder %s13, 2
    // Predicated region
    $region37: #{_lambda_.1} parent=5 // pred_check
      %p225 = pneg %p224
    $region38: #{_lambda_.1} parent=5 // pred_check_branch
      %227 = sbr.rel (%p225) target = $region40
    $region39: #{_lambda_.1} parent=5 // pred_region
      // Predicated region
      $region41: #{_lambda_.1} parent=39 // pred_check
        %p228 = pneg %p33
      $region42: #{_lambda_.1} parent=39 // pred_check_branch
        %230 = sbr.rel (%p228) target = $region44
      $region43: #{_lambda_.1} parent=39 // pred_region
        %p231 = scmp.lt.s32.totalorder %s13, 1
        %s232 = scalar_select %p231, %s13, 1
        %s233 = smul.addr %s232, 128
        %s234 = smul.addr %s233, 4
        %s235 = scalar_lea.vmem %s0, %s234
      $region44: #{_lambda_.1} parent=39 // pred_fallthru
        _
    $region40: #{_lambda_.1} parent=5 // pred_fallthru
      _
    %p236 = scmp.le.s32.totalorder 1, %s13
    %p237 = scmp.lt.s32.totalorder %s13, 3
    %p238 = pnand %p236, %p237
    %p239 = pneg %p238
    // Predicated region
    $region45: #{_lambda_.1} parent=5 // pred_check
      _
    $region46: #{_lambda_.1} parent=5 // pred_check_branch
      %241 = sbr.rel (%p238) target = $region48
    $region47: #{_lambda_.1} parent=5 // pred_region
      %s242 = ssub.s32 %s13, 1
      %p243 = scmp.lt.s32.totalorder %s18, 1
      %s244 = scalar_select %p243, %s18, 1
      %s245 = smul.addr %s244, 128
      %s246 = smul.addr %s245, 4
      %s247 = scalar_lea.vmem %s0, %s246
      %p248 = pneg %p39
      %p249 = pneg %p36
      %p250 = pneg %p60
      %p251 = pneg %p57
      %p252 = pneg %p81
      %p253 = pneg %p78
      %p254 = pneg %p102
      %p255 = pneg %p99
      %p256 = pneg %p123
      %p257 = pneg %p120
      %p258 = pneg %p144
      %p259 = pneg %p141
      %p260 = pneg %p165
      %p261 = pneg %p162
      %p262 = pneg %p191
      %p263 = pneg %p188
      %p264 = scmp.lt.s32.totalorder %s18, 1
      %s265 = scalar_select %p264, %s18, 1
      %s266 = smul.addr %s265, 8
      %s267 = scalar_lea.vmem %s7, %s266
      %p268 = scmp.lt.s32.totalorder %s18, 1
      %s269 = scalar_select %p268, %s18, 1
      %s270 = smul.addr %s269, 128
      %s271 = smul.addr %s270, 4
      %s272 = scalar_lea.vmem %s0, %s271
      %p273 = scmp.lt.s32.totalorder %s18, 1
      %s274 = scalar_select %p273, %s18, 1
      %s275 = smul.addr %s274, 8
      %s276 = scalar_lea.vmem %s7, %s275
      %v277 = vld [vmem:[%s272] sm:$0xf]
      %v278 = vld [vmem:[%s272 + $0x4] sm:$0xf]
      %v279 = vld [vmem:[%s272 + $0x8] sm:$0xf]
      %v280 = vld [vmem:[%s272 + $0xc] sm:$0xf]
      %v281 = vld [vmem:[%s272 + $0x10] sm:$0xf]
      %v282 = vld [vmem:[%s272 + $0x14] sm:$0xf]
      %v283 = vld [vmem:[%s272 + $0x18] sm:$0xf]
      %v284 = vld [vmem:[%s272 + $0x1c] sm:$0xf]
      %v285 = vld [vmem:[%s272 + $0x20] sm:$0xf]
      %v286 = vld [vmem:[%s272 + $0x24] sm:$0xf]
      %v287 = vld [vmem:[%s272 + $0x28] sm:$0xf]
      %v288 = vld [vmem:[%s272 + $0x2c] sm:$0xf]
      %v289 = vld [vmem:[%s272 + $0x30] sm:$0xf]
      %v290 = vld [vmem:[%s272 + $0x34] sm:$0xf]
      %v291 = vld [vmem:[%s272 + $0x38] sm:$0xf]
      %v292 = vld [vmem:[%s272 + $0x3c] sm:$0xf]
      %v293 = vld [vmem:[%s272 + $0x40] sm:$0xf]
      %v294 = vld [vmem:[%s272 + $0x44] sm:$0xf]
      %v295 = vld [vmem:[%s272 + $0x48] sm:$0xf]
      %v296 = vld [vmem:[%s272 + $0x4c] sm:$0xf]
      %v297 = vld [vmem:[%s272 + $0x50] sm:$0xf]
      %v298 = vld [vmem:[%s272 + $0x54] sm:$0xf]
      %v299 = vld [vmem:[%s272 + $0x58] sm:$0xf]
      %v300 = vld [vmem:[%s272 + $0x5c] sm:$0xf]
      %v301 = vld [vmem:[%s272 + $0x60] sm:$0xf]
      %v302 = vld [vmem:[%s272 + $0x64] sm:$0xf]
      %v303 = vld [vmem:[%s272 + $0x68] sm:$0xf]
      %v304 = vld [vmem:[%s272 + $0x6c] sm:$0xf]
      %v305 = vld [vmem:[%s272 + $0x70] sm:$0xf]
      %v306 = vld [vmem:[%s272 + $0x74] sm:$0xf]
      %v307 = vld [vmem:[%s272 + $0x78] sm:$0xf]
      %v308 = vld [vmem:[%s272 + $0x7c] sm:$0xf]
      %v309 = vld [vmem:[%s272 + $0x80] sm:$0xf]
      %v310 = vld [vmem:[%s272 + $0x84] sm:$0xf]
      %v311 = vld [vmem:[%s272 + $0x88] sm:$0xf]
      %v312 = vld [vmem:[%s272 + $0x8c] sm:$0xf]
      %v313 = vld [vmem:[%s272 + $0x90] sm:$0xf]
      %v314 = vld [vmem:[%s272 + $0x94] sm:$0xf]
      %v315 = vld [vmem:[%s272 + $0x98] sm:$0xf]
      %v316 = vld [vmem:[%s272 + $0x9c] sm:$0xf]
      %v317 = vld [vmem:[%s272 + $0xa0] sm:$0xf]
      %v318 = vld [vmem:[%s272 + $0xa4] sm:$0xf]
      %v319 = vld [vmem:[%s272 + $0xa8] sm:$0xf]
      %v320 = vld [vmem:[%s272 + $0xac] sm:$0xf]
      %v321 = vld [vmem:[%s272 + $0xb0] sm:$0xf]
      %v322 = vld [vmem:[%s272 + $0xb4] sm:$0xf]
      %v323 = vld [vmem:[%s272 + $0xb8] sm:$0xf]
      %v324 = vld [vmem:[%s272 + $0xbc] sm:$0xf]
      %v325 = vld [vmem:[%s272 + $0xc0] sm:$0xf]
      %v326 = vld [vmem:[%s272 + $0xc4] sm:$0xf]
      %v327 = vld [vmem:[%s272 + $0xc8] sm:$0xf]
      %v328 = vld [vmem:[%s272 + $0xcc] sm:$0xf]
      %v329 = vld [vmem:[%s272 + $0xd0] sm:$0xf]
      %v330 = vld [vmem:[%s272 + $0xd4] sm:$0xf]
      %v331 = vld [vmem:[%s272 + $0xd8] sm:$0xf]
      %v332 = vld [vmem:[%s272 + $0xdc] sm:$0xf]
      %v333 = vld [vmem:[%s272 + $0xe0] sm:$0xf]
      %v334 = vld [vmem:[%s272 + $0xe4] sm:$0xf]
      %v335 = vld [vmem:[%s272 + $0xe8] sm:$0xf]
      %v336 = vld [vmem:[%s272 + $0xec] sm:$0xf]
      %v337 = vld [vmem:[%s272 + $0xf0] sm:$0xf]
      %v338 = vld [vmem:[%s272 + $0xf4] sm:$0xf]
      %v339 = vld [vmem:[%s272 + $0xf8] sm:$0xf]
      %v340 = vld [vmem:[%s272 + $0xfc] sm:$0xf]
      %v341 = vld [vmem:[%s272 + $0x100] sm:$0xf]
      %v342 = vld [vmem:[%s272 + $0x104] sm:$0xf]
      %v343 = vld [vmem:[%s272 + $0x108] sm:$0xf]
      %v344 = vld [vmem:[%s272 + $0x10c] sm:$0xf]
      %v345 = vld [vmem:[%s272 + $0x110] sm:$0xf]
      %v346 = vld [vmem:[%s272 + $0x114] sm:$0xf]
      %v347 = vld [vmem:[%s272 + $0x118] sm:$0xf]
      %v348 = vld [vmem:[%s272 + $0x11c] sm:$0xf]
      %v349 = vld [vmem:[%s272 + $0x120] sm:$0xf]
      %v350 = vld [vmem:[%s272 + $0x124] sm:$0xf]
      %v351 = vld [vmem:[%s272 + $0x128] sm:$0xf]
      %v352 = vld [vmem:[%s272 + $0x12c] sm:$0xf]
      %v353 = vld [vmem:[%s272 + $0x130] sm:$0xf]
      %v354 = vld [vmem:[%s272 + $0x134] sm:$0xf]
      %v355 = vld [vmem:[%s272 + $0x138] sm:$0xf]
      %v356 = vld [vmem:[%s272 + $0x13c] sm:$0xf]
      %v357 = vld [vmem:[%s272 + $0x140] sm:$0xf]
      %v358 = vld [vmem:[%s272 + $0x144] sm:$0xf]
      %v359 = vld [vmem:[%s272 + $0x148] sm:$0xf]
      %v360 = vld [vmem:[%s272 + $0x14c] sm:$0xf]
      %v361 = vld [vmem:[%s272 + $0x150] sm:$0xf]
      %v362 = vld [vmem:[%s272 + $0x154] sm:$0xf]
      %v363 = vld [vmem:[%s272 + $0x158] sm:$0xf]
      %v364 = vld [vmem:[%s272 + $0x15c] sm:$0xf]
      %v365 = vld [vmem:[%s272 + $0x160] sm:$0xf]
      %v366 = vld [vmem:[%s272 + $0x164] sm:$0xf]
      %v367 = vld [vmem:[%s272 + $0x168] sm:$0xf]
      %v368 = vld [vmem:[%s272 + $0x16c] sm:$0xf]
      %v369 = vld [vmem:[%s272 + $0x170] sm:$0xf]
      %v370 = vld [vmem:[%s272 + $0x174] sm:$0xf]
      %v371 = vld [vmem:[%s272 + $0x178] sm:$0xf]
      %v372 = vld [vmem:[%s272 + $0x17c] sm:$0xf]
      %v373 = vld [vmem:[%s272 + $0x180] sm:$0xf]
      %v374 = vld [vmem:[%s272 + $0x184] sm:$0xf]
      %v375 = vld [vmem:[%s272 + $0x188] sm:$0xf]
      %v376 = vld [vmem:[%s272 + $0x18c] sm:$0xf]
      %v377 = vld [vmem:[%s272 + $0x190] sm:$0xf]
      %v378 = vld [vmem:[%s272 + $0x194] sm:$0xf]
      %v379 = vld [vmem:[%s272 + $0x198] sm:$0xf]
      %v380 = vld [vmem:[%s272 + $0x19c] sm:$0xf]
      %v381 = vld [vmem:[%s272 + $0x1a0] sm:$0xf]
      %v382 = vld [vmem:[%s272 + $0x1a4] sm:$0xf]
      %v383 = vld [vmem:[%s272 + $0x1a8] sm:$0xf]
      %v384 = vld [vmem:[%s272 + $0x1ac] sm:$0xf]
      %v385 = vld [vmem:[%s272 + $0x1b0] sm:$0xf]
      %v386 = vld [vmem:[%s272 + $0x1b4] sm:$0xf]
      %v387 = vld [vmem:[%s272 + $0x1b8] sm:$0xf]
      %v388 = vld [vmem:[%s272 + $0x1bc] sm:$0xf]
      %v389 = vld [vmem:[%s272 + $0x1c0] sm:$0xf]
      %v390 = vld [vmem:[%s272 + $0x1c4] sm:$0xf]
      %v391 = vld [vmem:[%s272 + $0x1c8] sm:$0xf]
      %v392 = vld [vmem:[%s272 + $0x1cc] sm:$0xf]
      %v393 = vld [vmem:[%s272 + $0x1d0] sm:$0xf]
      %v394 = vld [vmem:[%s272 + $0x1d4] sm:$0xf]
      %v395 = vld [vmem:[%s272 + $0x1d8] sm:$0xf]
      %v396 = vld [vmem:[%s272 + $0x1dc] sm:$0xf]
      %v397 = vld [vmem:[%s272 + $0x1e0] sm:$0xf]
      %v398 = vld [vmem:[%s272 + $0x1e4] sm:$0xf]
      %v399 = vld [vmem:[%s272 + $0x1e8] sm:$0xf]
      %v400 = vld [vmem:[%s272 + $0x1ec] sm:$0xf]
      %v401 = vld [vmem:[%s272 + $0x1f0] sm:$0xf]
      %v402 = vld [vmem:[%s272 + $0x1f4] sm:$0xf]
      %v403 = vld [vmem:[%s272 + $0x1f8] sm:$0xf]
      %v404 = vld [vmem:[%s272 + $0x1fc] sm:$0xf]
      %v405 = vld [vmem:[%s1] sm:$0xf]
      %v406 = vld [vmem:[%s1 + $0x4] sm:$0xf]
      %v407 = vld [vmem:[%s1 + $0x8] sm:$0xf]
      %v408 = vld [vmem:[%s1 + $0xc] sm:$0xf]
      %v409 = vld [vmem:[%s1 + $0x10] sm:$0xf]
      %v410 = vld [vmem:[%s1 + $0x14] sm:$0xf]
      %v411 = vld [vmem:[%s1 + $0x18] sm:$0xf]
      %v412 = vld [vmem:[%s1 + $0x1c] sm:$0xf]
      %v413 = vld [vmem:[%s1 + $0x20] sm:$0xf]
      %v414 = vld [vmem:[%s1 + $0x24] sm:$0xf]
      %v415 = vld [vmem:[%s1 + $0x28] sm:$0xf]
      %v416 = vld [vmem:[%s1 + $0x2c] sm:$0xf]
      %v417 = vld [vmem:[%s1 + $0x30] sm:$0xf]
      %v418 = vld [vmem:[%s1 + $0x34] sm:$0xf]
      %v419 = vld [vmem:[%s1 + $0x38] sm:$0xf]
      %v420 = vld [vmem:[%s1 + $0x3c] sm:$0xf]
      %v549 = vunpack.c.l.b16 %v277
      %v550 = vunpack.c.l.b16 %v278
      %v551 = vunpack.c.l.b16 %v279
      %v552 = vunpack.c.l.b16 %v280
      %v553 = vunpack.c.l.b16 %v281
      %v554 = vunpack.c.l.b16 %v282
      %v555 = vunpack.c.l.b16 %v283
      %v556 = vunpack.c.l.b16 %v284
      %v557 = vunpack.c.l.b16 %v285
      %v558 = vunpack.c.l.b16 %v286
      %v559 = vunpack.c.l.b16 %v287
      %v560 = vunpack.c.l.b16 %v288
      %v561 = vunpack.c.l.b16 %v289
      %v562 = vunpack.c.l.b16 %v290
      %v563 = vunpack.c.l.b16 %v291
      %v564 = vunpack.c.l.b16 %v292
      %v565 = vunpack.c.l.b16 %v293
      %v566 = vunpack.c.l.b16 %v294
      %v567 = vunpack.c.l.b16 %v295
      %v568 = vunpack.c.l.b16 %v296
      %v569 = vunpack.c.l.b16 %v297
      %v570 = vunpack.c.l.b16 %v298
      %v571 = vunpack.c.l.b16 %v299
      %v572 = vunpack.c.l.b16 %v300
      %v573 = vunpack.c.l.b16 %v301
      %v574 = vunpack.c.l.b16 %v302
      %v575 = vunpack.c.l.b16 %v303
      %v576 = vunpack.c.l.b16 %v304
      %v577 = vunpack.c.l.b16 %v305
      %v578 = vunpack.c.l.b16 %v306
      %v579 = vunpack.c.l.b16 %v307
      %v580 = vunpack.c.l.b16 %v308
      %v581 = vunpack.c.l.b16 %v309
      %v582 = vunpack.c.l.b16 %v310
      %v583 = vunpack.c.l.b16 %v311
      %v584 = vunpack.c.l.b16 %v312
      %v585 = vunpack.c.l.b16 %v313
      %v586 = vunpack.c.l.b16 %v314
      %v587 = vunpack.c.l.b16 %v315
      %v588 = vunpack.c.l.b16 %v316
      %v589 = vunpack.c.l.b16 %v317
      %v590 = vunpack.c.l.b16 %v318
      %v591 = vunpack.c.l.b16 %v319
      %v592 = vunpack.c.l.b16 %v320
      %v593 = vunpack.c.l.b16 %v321
      %v594 = vunpack.c.l.b16 %v322
      %v595 = vunpack.c.l.b16 %v323
      %v596 = vunpack.c.l.b16 %v324
      %v597 = vunpack.c.l.b16 %v325
      %v598 = vunpack.c.l.b16 %v326
      %v599 = vunpack.c.l.b16 %v327
      %v600 = vunpack.c.l.b16 %v328
      %v601 = vunpack.c.l.b16 %v329
      %v602 = vunpack.c.l.b16 %v330
      %v603 = vunpack.c.l.b16 %v331
      %v604 = vunpack.c.l.b16 %v332
      %v605 = vunpack.c.l.b16 %v333
      %v606 = vunpack.c.l.b16 %v334
      %v607 = vunpack.c.l.b16 %v335
      %v608 = vunpack.c.l.b16 %v336
      %v609 = vunpack.c.l.b16 %v337
      %v610 = vunpack.c.l.b16 %v338
      %v611 = vunpack.c.l.b16 %v339
      %v612 = vunpack.c.l.b16 %v340
      %v613 = vunpack.c.l.b16 %v341
      %v614 = vunpack.c.l.b16 %v342
      %v615 = vunpack.c.l.b16 %v343
      %v616 = vunpack.c.l.b16 %v344
      %v617 = vunpack.c.l.b16 %v345
      %v618 = vunpack.c.l.b16 %v346
      %v619 = vunpack.c.l.b16 %v347
      %v620 = vunpack.c.l.b16 %v348
      %v621 = vunpack.c.l.b16 %v349
      %v622 = vunpack.c.l.b16 %v350
      %v623 = vunpack.c.l.b16 %v351
      %v624 = vunpack.c.l.b16 %v352
      %v625 = vunpack.c.l.b16 %v353
      %v626 = vunpack.c.l.b16 %v354
      %v627 = vunpack.c.l.b16 %v355
      %v628 = vunpack.c.l.b16 %v356
      %v629 = vunpack.c.l.b16 %v357
      %v630 = vunpack.c.l.b16 %v358
      %v631 = vunpack.c.l.b16 %v359
      %v632 = vunpack.c.l.b16 %v360
      %v633 = vunpack.c.l.b16 %v361
      %v634 = vunpack.c.l.b16 %v362
      %v635 = vunpack.c.l.b16 %v363
      %v636 = vunpack.c.l.b16 %v364
      %v637 = vunpack.c.l.b16 %v365
      %v638 = vunpack.c.l.b16 %v366
      %v639 = vunpack.c.l.b16 %v367
      %v640 = vunpack.c.l.b16 %v368
      %v641 = vunpack.c.l.b16 %v369
      %v642 = vunpack.c.l.b16 %v370
      %v643 = vunpack.c.l.b16 %v371
      %v644 = vunpack.c.l.b16 %v372
      %v645 = vunpack.c.l.b16 %v373
      %v646 = vunpack.c.l.b16 %v374
      %v647 = vunpack.c.l.b16 %v375
      %v648 = vunpack.c.l.b16 %v376
      %v649 = vunpack.c.l.b16 %v377
      %v650 = vunpack.c.l.b16 %v378
      %v651 = vunpack.c.l.b16 %v379
      %v652 = vunpack.c.l.b16 %v380
      %v653 = vunpack.c.l.b16 %v381
      %v654 = vunpack.c.l.b16 %v382
      %v655 = vunpack.c.l.b16 %v383
      %v656 = vunpack.c.l.b16 %v384
      %v657 = vunpack.c.l.b16 %v385
      %v658 = vunpack.c.l.b16 %v386
      %v659 = vunpack.c.l.b16 %v387
      %v660 = vunpack.c.l.b16 %v388
      %v661 = vunpack.c.l.b16 %v389
      %v662 = vunpack.c.l.b16 %v390
      %v663 = vunpack.c.l.b16 %v391
      %v664 = vunpack.c.l.b16 %v392
      %v665 = vunpack.c.l.b16 %v393
      %v666 = vunpack.c.l.b16 %v394
      %v667 = vunpack.c.l.b16 %v395
      %v668 = vunpack.c.l.b16 %v396
      %v669 = vunpack.c.l.b16 %v397
      %v670 = vunpack.c.l.b16 %v398
      %v671 = vunpack.c.l.b16 %v399
      %v672 = vunpack.c.l.b16 %v400
      %v673 = vunpack.c.l.b16 %v401
      %v674 = vunpack.c.l.b16 %v402
      %v675 = vunpack.c.l.b16 %v403
      %v676 = vunpack.c.l.b16 %v404
      %v677 = vpack.c.b16 %v550, %v549
      %v678 = vpack.c.b16 %v552, %v551
      %v679 = vpack.c.b16 %v554, %v553
      %v680 = vpack.c.b16 %v556, %v555
      %v681 = vpack.c.b16 %v558, %v557
      %v682 = vpack.c.b16 %v560, %v559
      %v683 = vpack.c.b16 %v562, %v561
      %v684 = vpack.c.b16 %v564, %v563
      %v685 = vpack.c.b16 %v566, %v565
      %v686 = vpack.c.b16 %v568, %v567
      %v687 = vpack.c.b16 %v570, %v569
      %v688 = vpack.c.b16 %v572, %v571
      %v689 = vpack.c.b16 %v574, %v573
      %v690 = vpack.c.b16 %v576, %v575
      %v691 = vpack.c.b16 %v578, %v577
      %v692 = vpack.c.b16 %v580, %v579
      %v693 = vpack.c.b16 %v582, %v581
      %v694 = vpack.c.b16 %v584, %v583
      %v695 = vpack.c.b16 %v586, %v585
      %v696 = vpack.c.b16 %v588, %v587
      %v697 = vpack.c.b16 %v590, %v589
      %v698 = vpack.c.b16 %v592, %v591
      %v699 = vpack.c.b16 %v594, %v593
      %v700 = vpack.c.b16 %v596, %v595
      %v701 = vpack.c.b16 %v598, %v597
      %v702 = vpack.c.b16 %v600, %v599
      %v703 = vpack.c.b16 %v602, %v601
      %v704 = vpack.c.b16 %v604, %v603
      %v705 = vpack.c.b16 %v606, %v605
      %v706 = vpack.c.b16 %v608, %v607
      %v707 = vpack.c.b16 %v610, %v609
      %v708 = vpack.c.b16 %v612, %v611
      %v709 = vpack.c.b16 %v614, %v613
      %v710 = vpack.c.b16 %v616, %v615
      %v711 = vpack.c.b16 %v618, %v617
      %v712 = vpack.c.b16 %v620, %v619
      %v713 = vpack.c.b16 %v622, %v621
      %v714 = vpack.c.b16 %v624, %v623
      %v715 = vpack.c.b16 %v626, %v625
      %v716 = vpack.c.b16 %v628, %v627
      %v717 = vpack.c.b16 %v630, %v629
      %v718 = vpack.c.b16 %v632, %v631
      %v719 = vpack.c.b16 %v634, %v633
      %v720 = vpack.c.b16 %v636, %v635
      %v721 = vpack.c.b16 %v638, %v637
      %v722 = vpack.c.b16 %v640, %v639
      %v723 = vpack.c.b16 %v642, %v641
      %v724 = vpack.c.b16 %v644, %v643
      %v725 = vpack.c.b16 %v646, %v645
      %v726 = vpack.c.b16 %v648, %v647
      %v727 = vpack.c.b16 %v650, %v649
      %v728 = vpack.c.b16 %v652, %v651
      %v729 = vpack.c.b16 %v654, %v653
      %v730 = vpack.c.b16 %v656, %v655
      %v731 = vpack.c.b16 %v658, %v657
      %v732 = vpack.c.b16 %v660, %v659
      %v733 = vpack.c.b16 %v662, %v661
      %v734 = vpack.c.b16 %v664, %v663
      %v735 = vpack.c.b16 %v666, %v665
      %v736 = vpack.c.b16 %v668, %v667
      %v737 = vpack.c.b16 %v670, %v669
      %v738 = vpack.c.b16 %v672, %v671
      %v739 = vpack.c.b16 %v674, %v673
      %v740 = vpack.c.b16 %v676, %v675
      %v821 = vunpack.c.l.b16 %v405
      %v822 = vunpack.c.l.b16 %v406
      %v823 = vunpack.c.l.b16 %v407
      %v824 = vunpack.c.l.b16 %v408
      %v825 = vunpack.c.l.b16 %v409
      %v826 = vunpack.c.l.b16 %v410
      %v827 = vunpack.c.l.b16 %v411
      %v828 = vunpack.c.l.b16 %v412
      %v829 = vunpack.c.l.b16 %v413
      %v830 = vunpack.c.l.b16 %v414
      %v831 = vunpack.c.l.b16 %v415
      %v832 = vunpack.c.l.b16 %v416
      %v833 = vunpack.c.l.b16 %v417
      %v834 = vunpack.c.l.b16 %v418
      %v835 = vunpack.c.l.b16 %v419
      %v836 = vunpack.c.l.b16 %v420
      %v837 = vpack.c.b16 %v822, %v821
      %v838 = vpack.c.b16 %v824, %v823
      %v839 = vpack.c.b16 %v826, %v825
      %v840 = vpack.c.b16 %v828, %v827
      %v841 = vpack.c.b16 %v830, %v829
      %v842 = vpack.c.b16 %v832, %v831
      %v843 = vpack.c.b16 %v834, %v833
      %v844 = vpack.c.b16 %v836, %v835
      %853 = vmatpush.bf16.msra.mxu0 %v844
      %854 = vmatpush.bf16.msra.mxu0 %v843
      %855 = vmatpush.bf16.msra.mxu0 %v842
      %856 = vmatpush.bf16.msra.mxu0 %v841
      %857 = vmatpush.bf16.msra.mxu0 %v840
      %858 = vmatpush.bf16.msra.mxu0 %v839
      %859 = vmatpush.bf16.msra.mxu0 %v838
      %860 = vmatpush.bf16.msra.mxu0 %v837
      %861 = vmatmul.bf16.gmra.mxu0 %v677
      %v862 = vpop.f32.mrf.mxu0
      %v863 = vadd.f32 0.0, %v862
      %v864 = vpop.f32.mrf.mxu0
      %v865 = vadd.f32 0.0, %v864
      %866 = vmatmul.bf16.gmra.mxu0 %v678
      %v867 = vpop.f32.mrf.mxu0
      %v868 = vadd.f32 0.0, %v867
      %v869 = vpop.f32.mrf.mxu0
      %v870 = vadd.f32 0.0, %v869
      %871 = vmatmul.bf16.gmra.mxu0 %v679
      %v872 = vpop.f32.mrf.mxu0
      %v873 = vadd.f32 0.0, %v872
      %v874 = vpop.f32.mrf.mxu0
      %v875 = vadd.f32 0.0, %v874
      %876 = vmatmul.bf16.gmra.mxu0 %v680
      %v877 = vpop.f32.mrf.mxu0
      %v878 = vadd.f32 0.0, %v877
      %v879 = vpop.f32.mrf.mxu0
      %v880 = vadd.f32 0.0, %v879
      %881 = vmatmul.bf16.gmra.mxu0 %v681
      %v882 = vpop.f32.mrf.mxu0
      %v883 = vadd.f32 0.0, %v882
      %v884 = vpop.f32.mrf.mxu0
      %v885 = vadd.f32 0.0, %v884
      %886 = vmatmul.bf16.gmra.mxu0 %v682
      %v887 = vpop.f32.mrf.mxu0
      %v888 = vadd.f32 0.0, %v887
      %v889 = vpop.f32.mrf.mxu0
      %v890 = vadd.f32 0.0, %v889
      %891 = vmatmul.bf16.gmra.mxu0 %v683
      %v892 = vpop.f32.mrf.mxu0
      %v893 = vadd.f32 0.0, %v892
      %v894 = vpop.f32.mrf.mxu0
      %v895 = vadd.f32 0.0, %v894
      %896 = vmatmul.bf16.gmra.mxu0 %v684
      %v897 = vpop.f32.mrf.mxu0
      %v898 = vadd.f32 0.0, %v897
      %v899 = vpop.f32.mrf.mxu0
      %v900 = vadd.f32 0.0, %v899
      %901 = vmatmul.bf16.gmra.mxu0 %v685
      %v902 = vpop.f32.mrf.mxu0
      %v903 = vadd.f32 0.0, %v902
      %v904 = vpop.f32.mrf.mxu0
      %v905 = vadd.f32 0.0, %v904
      %906 = vmatmul.bf16.gmra.mxu0 %v686
      %v907 = vpop.f32.mrf.mxu0
      %v908 = vadd.f32 0.0, %v907
      %v909 = vpop.f32.mrf.mxu0
      %v910 = vadd.f32 0.0, %v909
      %911 = vmatmul.bf16.gmra.mxu0 %v687
      %v912 = vpop.f32.mrf.mxu0
      %v913 = vadd.f32 0.0, %v912
      %v914 = vpop.f32.mrf.mxu0
      %v915 = vadd.f32 0.0, %v914
      %916 = vmatmul.bf16.gmra.mxu0 %v688
      %v917 = vpop.f32.mrf.mxu0
      %v918 = vadd.f32 0.0, %v917
      %v919 = vpop.f32.mrf.mxu0
      %v920 = vadd.f32 0.0, %v919
      %921 = vmatmul.bf16.gmra.mxu0 %v689
      %v922 = vpop.f32.mrf.mxu0
      %v923 = vadd.f32 0.0, %v922
      %v924 = vpop.f32.mrf.mxu0
      %v925 = vadd.f32 0.0, %v924
      %926 = vmatmul.bf16.gmra.mxu0 %v690
      %v927 = vpop.f32.mrf.mxu0
      %v928 = vadd.f32 0.0, %v927
      %v929 = vpop.f32.mrf.mxu0
      %v930 = vadd.f32 0.0, %v929
      %931 = vmatmul.bf16.gmra.mxu0 %v691
      %v932 = vpop.f32.mrf.mxu0
      %v933 = vadd.f32 0.0, %v932
      %v934 = vpop.f32.mrf.mxu0
      %v935 = vadd.f32 0.0, %v934
      %936 = vmatmul.bf16.gmra.mxu0 %v692
      %v937 = vpop.f32.mrf.mxu0
      %v938 = vadd.f32 0.0, %v937
      %v939 = vpop.f32.mrf.mxu0
      %v940 = vadd.f32 0.0, %v939
      %941 = vmatmul.bf16.gmra.mxu0 %v693
      %v942 = vpop.f32.mrf.mxu0
      %v943 = vadd.f32 0.0, %v942
      %v944 = vpop.f32.mrf.mxu0
      %v945 = vadd.f32 0.0, %v944
      %946 = vmatmul.bf16.gmra.mxu0 %v694
      %v947 = vpop.f32.mrf.mxu0
      %v948 = vadd.f32 0.0, %v947
      %v949 = vpop.f32.mrf.mxu0
      %v950 = vadd.f32 0.0, %v949
      %951 = vmatmul.bf16.gmra.mxu0 %v695
      %v952 = vpop.f32.mrf.mxu0
      %v953 = vadd.f32 0.0, %v952
      %v954 = vpop.f32.mrf.mxu0
      %v955 = vadd.f32 0.0, %v954
      %956 = vmatmul.bf16.gmra.mxu0 %v696
      %v957 = vpop.f32.mrf.mxu0
      %v958 = vadd.f32 0.0, %v957
      %v959 = vpop.f32.mrf.mxu0
      %v960 = vadd.f32 0.0, %v959
      %961 = vmatmul.bf16.gmra.mxu0 %v697
      %v962 = vpop.f32.mrf.mxu0
      %v963 = vadd.f32 0.0, %v962
      %v964 = vpop.f32.mrf.mxu0
      %v965 = vadd.f32 0.0, %v964
      %966 = vmatmul.bf16.gmra.mxu0 %v698
      %v967 = vpop.f32.mrf.mxu0
      %v968 = vadd.f32 0.0, %v967
      %v969 = vpop.f32.mrf.mxu0
      %v970 = vadd.f32 0.0, %v969
      %971 = vmatmul.bf16.gmra.mxu0 %v699
      %v972 = vpop.f32.mrf.mxu0
      %v973 = vadd.f32 0.0, %v972
      %v974 = vpop.f32.mrf.mxu0
      %v975 = vadd.f32 0.0, %v974
      %976 = vmatmul.bf16.gmra.mxu0 %v700
      %v977 = vpop.f32.mrf.mxu0
      %v978 = vadd.f32 0.0, %v977
      %v979 = vpop.f32.mrf.mxu0
      %v980 = vadd.f32 0.0, %v979
      %981 = vmatmul.bf16.gmra.mxu0 %v701
      %v982 = vpop.f32.mrf.mxu0
      %v983 = vadd.f32 0.0, %v982
      %v984 = vpop.f32.mrf.mxu0
      %v985 = vadd.f32 0.0, %v984
      %986 = vmatmul.bf16.gmra.mxu0 %v702
      %v987 = vpop.f32.mrf.mxu0
      %v988 = vadd.f32 0.0, %v987
      %v989 = vpop.f32.mrf.mxu0
      %v990 = vadd.f32 0.0, %v989
      %991 = vmatmul.bf16.gmra.mxu0 %v703
      %v992 = vpop.f32.mrf.mxu0
      %v993 = vadd.f32 0.0, %v992
      %v994 = vpop.f32.mrf.mxu0
      %v995 = vadd.f32 0.0, %v994
      %996 = vmatmul.bf16.gmra.mxu0 %v704
      %v997 = vpop.f32.mrf.mxu0
      %v998 = vadd.f32 0.0, %v997
      %v999 = vpop.f32.mrf.mxu0
      %v1000 = vadd.f32 0.0, %v999
      %1001 = vmatmul.bf16.gmra.mxu0 %v705
      %v1002 = vpop.f32.mrf.mxu0
      %v1003 = vadd.f32 0.0, %v1002
      %v1004 = vpop.f32.mrf.mxu0
      %v1005 = vadd.f32 0.0, %v1004
      %1006 = vmatmul.bf16.gmra.mxu0 %v706
      %v1007 = vpop.f32.mrf.mxu0
      %v1008 = vadd.f32 0.0, %v1007
      %v1009 = vpop.f32.mrf.mxu0
      %v1010 = vadd.f32 0.0, %v1009
      %1011 = vmatmul.bf16.gmra.mxu0 %v707
      %v1012 = vpop.f32.mrf.mxu0
      %v1013 = vadd.f32 0.0, %v1012
      %v1014 = vpop.f32.mrf.mxu0
      %v1015 = vadd.f32 0.0, %v1014
      %1016 = vmatmul.bf16.gmra.mxu0 %v708
      %v1017 = vpop.f32.mrf.mxu0
      %v1018 = vadd.f32 0.0, %v1017
      %v1019 = vpop.f32.mrf.mxu0
      %v1020 = vadd.f32 0.0, %v1019
      %1021 = vmatmul.bf16.gmra.mxu0 %v709
      %v1022 = vpop.f32.mrf.mxu0
      %v1023 = vadd.f32 0.0, %v1022
      %v1024 = vpop.f32.mrf.mxu0
      %v1025 = vadd.f32 0.0, %v1024
      %1026 = vmatmul.bf16.gmra.mxu0 %v710
      %v1027 = vpop.f32.mrf.mxu0
      %v1028 = vadd.f32 0.0, %v1027
      %v1029 = vpop.f32.mrf.mxu0
      %v1030 = vadd.f32 0.0, %v1029
      %1031 = vmatmul.bf16.gmra.mxu0 %v711
      %v1032 = vpop.f32.mrf.mxu0
      %v1033 = vadd.f32 0.0, %v1032
      %v1034 = vpop.f32.mrf.mxu0
      %v1035 = vadd.f32 0.0, %v1034
      %1036 = vmatmul.bf16.gmra.mxu0 %v712
      %v1037 = vpop.f32.mrf.mxu0
      %v1038 = vadd.f32 0.0, %v1037
      %v1039 = vpop.f32.mrf.mxu0
      %v1040 = vadd.f32 0.0, %v1039
      %1041 = vmatmul.bf16.gmra.mxu0 %v713
      %v1042 = vpop.f32.mrf.mxu0
      %v1043 = vadd.f32 0.0, %v1042
      %v1044 = vpop.f32.mrf.mxu0
      %v1045 = vadd.f32 0.0, %v1044
      %1046 = vmatmul.bf16.gmra.mxu0 %v714
      %v1047 = vpop.f32.mrf.mxu0
      %v1048 = vadd.f32 0.0, %v1047
      %v1049 = vpop.f32.mrf.mxu0
      %v1050 = vadd.f32 0.0, %v1049
      %1051 = vmatmul.bf16.gmra.mxu0 %v715
      %v1052 = vpop.f32.mrf.mxu0
      %v1053 = vadd.f32 0.0, %v1052
      %v1054 = vpop.f32.mrf.mxu0
      %v1055 = vadd.f32 0.0, %v1054
      %1056 = vmatmul.bf16.gmra.mxu0 %v716
      %v1057 = vpop.f32.mrf.mxu0
      %v1058 = vadd.f32 0.0, %v1057
      %v1059 = vpop.f32.mrf.mxu0
      %v1060 = vadd.f32 0.0, %v1059
      %1061 = vmatmul.bf16.gmra.mxu0 %v717
      %v1062 = vpop.f32.mrf.mxu0
      %v1063 = vadd.f32 0.0, %v1062
      %v1064 = vpop.f32.mrf.mxu0
      %v1065 = vadd.f32 0.0, %v1064
      %1066 = vmatmul.bf16.gmra.mxu0 %v718
      %v1067 = vpop.f32.mrf.mxu0
      %v1068 = vadd.f32 0.0, %v1067
      %v1069 = vpop.f32.mrf.mxu0
      %v1070 = vadd.f32 0.0, %v1069
      %1071 = vmatmul.bf16.gmra.mxu0 %v719
      %v1072 = vpop.f32.mrf.mxu0
      %v1073 = vadd.f32 0.0, %v1072
      %v1074 = vpop.f32.mrf.mxu0
      %v1075 = vadd.f32 0.0, %v1074
      %1076 = vmatmul.bf16.gmra.mxu0 %v720
      %v1077 = vpop.f32.mrf.mxu0
      %v1078 = vadd.f32 0.0, %v1077
      %v1079 = vpop.f32.mrf.mxu0
      %v1080 = vadd.f32 0.0, %v1079
      %1081 = vmatmul.bf16.gmra.mxu0 %v721
      %v1082 = vpop.f32.mrf.mxu0
      %v1083 = vadd.f32 0.0, %v1082
      %v1084 = vpop.f32.mrf.mxu0
      %v1085 = vadd.f32 0.0, %v1084
      %1086 = vmatmul.bf16.gmra.mxu0 %v722
      %v1087 = vpop.f32.mrf.mxu0
      %v1088 = vadd.f32 0.0, %v1087
      %v1089 = vpop.f32.mrf.mxu0
      %v1090 = vadd.f32 0.0, %v1089
      %1091 = vmatmul.bf16.gmra.mxu0 %v723
      %v1092 = vpop.f32.mrf.mxu0
      %v1093 = vadd.f32 0.0, %v1092
      %v1094 = vpop.f32.mrf.mxu0
      %v1095 = vadd.f32 0.0, %v1094
      %1096 = vmatmul.bf16.gmra.mxu0 %v724
      %v1097 = vpop.f32.mrf.mxu0
      %v1098 = vadd.f32 0.0, %v1097
      %v1099 = vpop.f32.mrf.mxu0
      %v1100 = vadd.f32 0.0, %v1099
      %1101 = vmatmul.bf16.gmra.mxu0 %v725
      %v1102 = vpop.f32.mrf.mxu0
      %v1103 = vadd.f32 0.0, %v1102
      %v1104 = vpop.f32.mrf.mxu0
      %v1105 = vadd.f32 0.0, %v1104
      %1106 = vmatmul.bf16.gmra.mxu0 %v726
      %v1107 = vpop.f32.mrf.mxu0
      %v1108 = vadd.f32 0.0, %v1107
      %v1109 = vpop.f32.mrf.mxu0
      %v1110 = vadd.f32 0.0, %v1109
      %1111 = vmatmul.bf16.gmra.mxu0 %v727
      %v1112 = vpop.f32.mrf.mxu0
      %v1113 = vadd.f32 0.0, %v1112
      %v1114 = vpop.f32.mrf.mxu0
      %v1115 = vadd.f32 0.0, %v1114
      %1116 = vmatmul.bf16.gmra.mxu0 %v728
      %v1117 = vpop.f32.mrf.mxu0
      %v1118 = vadd.f32 0.0, %v1117
      %v1119 = vpop.f32.mrf.mxu0
      %v1120 = vadd.f32 0.0, %v1119
      %1121 = vmatmul.bf16.gmra.mxu0 %v729
      %v1122 = vpop.f32.mrf.mxu0
      %v1123 = vadd.f32 0.0, %v1122
      %v1124 = vpop.f32.mrf.mxu0
      %v1125 = vadd.f32 0.0, %v1124
      %1126 = vmatmul.bf16.gmra.mxu0 %v730
      %v1127 = vpop.f32.mrf.mxu0
      %v1128 = vadd.f32 0.0, %v1127
      %v1129 = vpop.f32.mrf.mxu0
      %v1130 = vadd.f32 0.0, %v1129
      %1131 = vmatmul.bf16.gmra.mxu0 %v731
      %v1132 = vpop.f32.mrf.mxu0
      %v1133 = vadd.f32 0.0, %v1132
      %v1134 = vpop.f32.mrf.mxu0
      %v1135 = vadd.f32 0.0, %v1134
      %1136 = vmatmul.bf16.gmra.mxu0 %v732
      %v1137 = vpop.f32.mrf.mxu0
      %v1138 = vadd.f32 0.0, %v1137
      %v1139 = vpop.f32.mrf.mxu0
      %v1140 = vadd.f32 0.0, %v1139
      %1141 = vmatmul.bf16.gmra.mxu0 %v733
      %v1142 = vpop.f32.mrf.mxu0
      %v1143 = vadd.f32 0.0, %v1142
      %v1144 = vpop.f32.mrf.mxu0
      %v1145 = vadd.f32 0.0, %v1144
      %1146 = vmatmul.bf16.gmra.mxu0 %v734
      %v1147 = vpop.f32.mrf.mxu0
      %v1148 = vadd.f32 0.0, %v1147
      %v1149 = vpop.f32.mrf.mxu0
      %v1150 = vadd.f32 0.0, %v1149
      %1151 = vmatmul.bf16.gmra.mxu0 %v735
      %v1152 = vpop.f32.mrf.mxu0
      %v1153 = vadd.f32 0.0, %v1152
      %v1154 = vpop.f32.mrf.mxu0
      %v1155 = vadd.f32 0.0, %v1154
      %1156 = vmatmul.bf16.gmra.mxu0 %v736
      %v1157 = vpop.f32.mrf.mxu0
      %v1158 = vadd.f32 0.0, %v1157
      %v1159 = vpop.f32.mrf.mxu0
      %v1160 = vadd.f32 0.0, %v1159
      %1161 = vmatmul.bf16.gmra.mxu0 %v737
      %v1162 = vpop.f32.mrf.mxu0
      %v1163 = vadd.f32 0.0, %v1162
      %v1164 = vpop.f32.mrf.mxu0
      %v1165 = vadd.f32 0.0, %v1164
      %1166 = vmatmul.bf16.gmra.mxu0 %v738
      %v1167 = vpop.f32.mrf.mxu0
      %v1168 = vadd.f32 0.0, %v1167
      %v1169 = vpop.f32.mrf.mxu0
      %v1170 = vadd.f32 0.0, %v1169
      %1171 = vmatmul.bf16.gmra.mxu0 %v739
      %v1172 = vpop.f32.mrf.mxu0
      %v1173 = vadd.f32 0.0, %v1172
      %v1174 = vpop.f32.mrf.mxu0
      %v1175 = vadd.f32 0.0, %v1174
      %1176 = vmatmul.bf16.gmra.mxu0 %v740
      %v1177 = vpop.f32.mrf.mxu0
      %v1178 = vadd.f32 0.0, %v1177
      %v1179 = vpop.f32.mrf.mxu0
      %v1180 = vadd.f32 0.0, %v1179
      %1181 = vdwg.mxu0
      %v1182 = vld [vmem:[%s5] sm:$0x1]
      %v1183 = vld [vmem:[%s6] sm:$0x1]
      %v1184 = vperm.slane %v1182, 0
      %v1185 = vmul.f32 %v863, %v1184
      %v1186 = vmul.f32 %v865, %v1184
      %v1187 = vmul.f32 %v868, %v1184
      %v1188 = vmul.f32 %v870, %v1184
      %v1189 = vmul.f32 %v873, %v1184
      %v1190 = vmul.f32 %v875, %v1184
      %v1191 = vmul.f32 %v878, %v1184
      %v1192 = vmul.f32 %v880, %v1184
      %v1193 = vmul.f32 %v883, %v1184
      %v1194 = vmul.f32 %v885, %v1184
      %v1195 = vmul.f32 %v888, %v1184
      %v1196 = vmul.f32 %v890, %v1184
      %v1197 = vmul.f32 %v893, %v1184
      %v1198 = vmul.f32 %v895, %v1184
      %v1199 = vmul.f32 %v898, %v1184
      %v1200 = vmul.f32 %v900, %v1184
      %v1201 = vmul.f32 %v903, %v1184
      %v1202 = vmul.f32 %v905, %v1184
      %v1203 = vmul.f32 %v908, %v1184
      %v1204 = vmul.f32 %v910, %v1184
      %v1205 = vmul.f32 %v913, %v1184
      %v1206 = vmul.f32 %v915, %v1184
      %v1207 = vmul.f32 %v918, %v1184
      %v1208 = vmul.f32 %v920, %v1184
      %v1209 = vmul.f32 %v923, %v1184
      %v1210 = vmul.f32 %v925, %v1184
      %v1211 = vmul.f32 %v928, %v1184
      %v1212 = vmul.f32 %v930, %v1184
      %v1213 = vmul.f32 %v933, %v1184
      %v1214 = vmul.f32 %v935, %v1184
      %v1215 = vmul.f32 %v938, %v1184
      %v1216 = vmul.f32 %v940, %v1184
      %v1217 = vmul.f32 %v943, %v1184
      %v1218 = vmul.f32 %v945, %v1184
      %v1219 = vmul.f32 %v948, %v1184
      %v1220 = vmul.f32 %v950, %v1184
      %v1221 = vmul.f32 %v953, %v1184
      %v1222 = vmul.f32 %v955, %v1184
      %v1223 = vmul.f32 %v958, %v1184
      %v1224 = vmul.f32 %v960, %v1184
      %v1225 = vmul.f32 %v963, %v1184
      %v1226 = vmul.f32 %v965, %v1184
      %v1227 = vmul.f32 %v968, %v1184
      %v1228 = vmul.f32 %v970, %v1184
      %v1229 = vmul.f32 %v973, %v1184
      %v1230 = vmul.f32 %v975, %v1184
      %v1231 = vmul.f32 %v978, %v1184
      %v1232 = vmul.f32 %v980, %v1184
      %v1233 = vmul.f32 %v983, %v1184
      %v1234 = vmul.f32 %v985, %v1184
      %v1235 = vmul.f32 %v988, %v1184
      %v1236 = vmul.f32 %v990, %v1184
      %v1237 = vmul.f32 %v993, %v1184
      %v1238 = vmul.f32 %v995, %v1184
      %v1239 = vmul.f32 %v998, %v1184
      %v1240 = vmul.f32 %v1000, %v1184
      %v1241 = vmul.f32 %v1003, %v1184
      %v1242 = vmul.f32 %v1005, %v1184
      %v1243 = vmul.f32 %v1008, %v1184
      %v1244 = vmul.f32 %v1010, %v1184
      %v1245 = vmul.f32 %v1013, %v1184
      %v1246 = vmul.f32 %v1015, %v1184
      %v1247 = vmul.f32 %v1018, %v1184
      %v1248 = vmul.f32 %v1020, %v1184
      %v1249 = vmul.f32 %v1023, %v1184
      %v1250 = vmul.f32 %v1025, %v1184
      %v1251 = vmul.f32 %v1028, %v1184
      %v1252 = vmul.f32 %v1030, %v1184
      %v1253 = vmul.f32 %v1033, %v1184
      %v1254 = vmul.f32 %v1035, %v1184
      %v1255 = vmul.f32 %v1038, %v1184
      %v1256 = vmul.f32 %v1040, %v1184
      %v1257 = vmul.f32 %v1043, %v1184
      %v1258 = vmul.f32 %v1045, %v1184
      %v1259 = vmul.f32 %v1048, %v1184
      %v1260 = vmul.f32 %v1050, %v1184
      %v1261 = vmul.f32 %v1053, %v1184
      %v1262 = vmul.f32 %v1055, %v1184
      %v1263 = vmul.f32 %v1058, %v1184
      %v1264 = vmul.f32 %v1060, %v1184
      %v1265 = vmul.f32 %v1063, %v1184
      %v1266 = vmul.f32 %v1065, %v1184
      %v1267 = vmul.f32 %v1068, %v1184
      %v1268 = vmul.f32 %v1070, %v1184
      %v1269 = vmul.f32 %v1073, %v1184
      %v1270 = vmul.f32 %v1075, %v1184
      %v1271 = vmul.f32 %v1078, %v1184
      %v1272 = vmul.f32 %v1080, %v1184
      %v1273 = vmul.f32 %v1083, %v1184
      %v1274 = vmul.f32 %v1085, %v1184
      %v1275 = vmul.f32 %v1088, %v1184
      %v1276 = vmul.f32 %v1090, %v1184
      %v1277 = vmul.f32 %v1093, %v1184
      %v1278 = vmul.f32 %v1095, %v1184
      %v1279 = vmul.f32 %v1098, %v1184
      %v1280 = vmul.f32 %v1100, %v1184
      %v1281 = vmul.f32 %v1103, %v1184
      %v1282 = vmul.f32 %v1105, %v1184
      %v1283 = vmul.f32 %v1108, %v1184
      %v1284 = vmul.f32 %v1110, %v1184
      %v1285 = vmul.f32 %v1113, %v1184
      %v1286 = vmul.f32 %v1115, %v1184
      %v1287 = vmul.f32 %v1118, %v1184
      %v1288 = vmul.f32 %v1120, %v1184
      %v1289 = vmul.f32 %v1123, %v1184
      %v1290 = vmul.f32 %v1125, %v1184
      %v1291 = vmul.f32 %v1128, %v1184
      %v1292 = vmul.f32 %v1130, %v1184
      %v1293 = vmul.f32 %v1133, %v1184
      %v1294 = vmul.f32 %v1135, %v1184
      %v1295 = vmul.f32 %v1138, %v1184
      %v1296 = vmul.f32 %v1140, %v1184
      %v1297 = vmul.f32 %v1143, %v1184
      %v1298 = vmul.f32 %v1145, %v1184
      %v1299 = vmul.f32 %v1148, %v1184
      %v1300 = vmul.f32 %v1150, %v1184
      %v1301 = vmul.f32 %v1153, %v1184
      %v1302 = vmul.f32 %v1155, %v1184
      %v1303 = vmul.f32 %v1158, %v1184
      %v1304 = vmul.f32 %v1160, %v1184
      %v1305 = vmul.f32 %v1163, %v1184
      %v1306 = vmul.f32 %v1165, %v1184
      %v1307 = vmul.f32 %v1168, %v1184
      %v1308 = vmul.f32 %v1170, %v1184
      %v1309 = vmul.f32 %v1173, %v1184
      %v1310 = vmul.f32 %v1175, %v1184
      %v1311 = vmul.f32 %v1178, %v1184
      %v1312 = vmul.f32 %v1180, %v1184
      %v1313 = vperm.slane %v1183, 0
      %v1314 = vadd.f32 %v1185, %v1313
      %v1315 = vadd.f32 %v1186, %v1313
      %v1316 = vadd.f32 %v1187, %v1313
      %v1317 = vadd.f32 %v1188, %v1313
      %v1318 = vadd.f32 %v1189, %v1313
      %v1319 = vadd.f32 %v1190, %v1313
      %v1320 = vadd.f32 %v1191, %v1313
      %v1321 = vadd.f32 %v1192, %v1313
      %v1322 = vadd.f32 %v1193, %v1313
      %v1323 = vadd.f32 %v1194, %v1313
      %v1324 = vadd.f32 %v1195, %v1313
      %v1325 = vadd.f32 %v1196, %v1313
      %v1326 = vadd.f32 %v1197, %v1313
      %v1327 = vadd.f32 %v1198, %v1313
      %v1328 = vadd.f32 %v1199, %v1313
      %v1329 = vadd.f32 %v1200, %v1313
      %v1330 = vadd.f32 %v1201, %v1313
      %v1331 = vadd.f32 %v1202, %v1313
      %v1332 = vadd.f32 %v1203, %v1313
      %v1333 = vadd.f32 %v1204, %v1313
      %v1334 = vadd.f32 %v1205, %v1313
      %v1335 = vadd.f32 %v1206, %v1313
      %v1336 = vadd.f32 %v1207, %v1313
      %v1337 = vadd.f32 %v1208, %v1313
      %v1338 = vadd.f32 %v1209, %v1313
      %v1339 = vadd.f32 %v1210, %v1313
      %v1340 = vadd.f32 %v1211, %v1313
      %v1341 = vadd.f32 %v1212, %v1313
      %v1342 = vadd.f32 %v1213, %v1313
      %v1343 = vadd.f32 %v1214, %v1313
      %v1344 = vadd.f32 %v1215, %v1313
      %v1345 = vadd.f32 %v1216, %v1313
      %v1346 = vadd.f32 %v1217, %v1313
      %v1347 = vadd.f32 %v1218, %v1313
      %v1348 = vadd.f32 %v1219, %v1313
      %v1349 = vadd.f32 %v1220, %v1313
      %v1350 = vadd.f32 %v1221, %v1313
      %v1351 = vadd.f32 %v1222, %v1313
      %v1352 = vadd.f32 %v1223, %v1313
      %v1353 = vadd.f32 %v1224, %v1313
      %v1354 = vadd.f32 %v1225, %v1313
      %v1355 = vadd.f32 %v1226, %v1313
      %v1356 = vadd.f32 %v1227, %v1313
      %v1357 = vadd.f32 %v1228, %v1313
      %v1358 = vadd.f32 %v1229, %v1313
      %v1359 = vadd.f32 %v1230, %v1313
      %v1360 = vadd.f32 %v1231, %v1313
      %v1361 = vadd.f32 %v1232, %v1313
      %v1362 = vadd.f32 %v1233, %v1313
      %v1363 = vadd.f32 %v1234, %v1313
      %v1364 = vadd.f32 %v1235, %v1313
      %v1365 = vadd.f32 %v1236, %v1313
      %v1366 = vadd.f32 %v1237, %v1313
      %v1367 = vadd.f32 %v1238, %v1313
      %v1368 = vadd.f32 %v1239, %v1313
      %v1369 = vadd.f32 %v1240, %v1313
      %v1370 = vadd.f32 %v1241, %v1313
      %v1371 = vadd.f32 %v1242, %v1313
      %v1372 = vadd.f32 %v1243, %v1313
      %v1373 = vadd.f32 %v1244, %v1313
      %v1374 = vadd.f32 %v1245, %v1313
      %v1375 = vadd.f32 %v1246, %v1313
      %v1376 = vadd.f32 %v1247, %v1313
      %v1377 = vadd.f32 %v1248, %v1313
      %v1378 = vadd.f32 %v1249, %v1313
      %v1379 = vadd.f32 %v1250, %v1313
      %v1380 = vadd.f32 %v1251, %v1313
      %v1381 = vadd.f32 %v1252, %v1313
      %v1382 = vadd.f32 %v1253, %v1313
      %v1383 = vadd.f32 %v1254, %v1313
      %v1384 = vadd.f32 %v1255, %v1313
      %v1385 = vadd.f32 %v1256, %v1313
      %v1386 = vadd.f32 %v1257, %v1313
      %v1387 = vadd.f32 %v1258, %v1313
      %v1388 = vadd.f32 %v1259, %v1313
      %v1389 = vadd.f32 %v1260, %v1313
      %v1390 = vadd.f32 %v1261, %v1313
      %v1391 = vadd.f32 %v1262, %v1313
      %v1392 = vadd.f32 %v1263, %v1313
      %v1393 = vadd.f32 %v1264, %v1313
      %v1394 = vadd.f32 %v1265, %v1313
      %v1395 = vadd.f32 %v1266, %v1313
      %v1396 = vadd.f32 %v1267, %v1313
      %v1397 = vadd.f32 %v1268, %v1313
      %v1398 = vadd.f32 %v1269, %v1313
      %v1399 = vadd.f32 %v1270, %v1313
      %v1400 = vadd.f32 %v1271, %v1313
      %v1401 = vadd.f32 %v1272, %v1313
      %v1402 = vadd.f32 %v1273, %v1313
      %v1403 = vadd.f32 %v1274, %v1313
      %v1404 = vadd.f32 %v1275, %v1313
      %v1405 = vadd.f32 %v1276, %v1313
      %v1406 = vadd.f32 %v1277, %v1313
      %v1407 = vadd.f32 %v1278, %v1313
      %v1408 = vadd.f32 %v1279, %v1313
      %v1409 = vadd.f32 %v1280, %v1313
      %v1410 = vadd.f32 %v1281, %v1313
      %v1411 = vadd.f32 %v1282, %v1313
      %v1412 = vadd.f32 %v1283, %v1313
      %v1413 = vadd.f32 %v1284, %v1313
      %v1414 = vadd.f32 %v1285, %v1313
      %v1415 = vadd.f32 %v1286, %v1313
      %v1416 = vadd.f32 %v1287, %v1313
      %v1417 = vadd.f32 %v1288, %v1313
      %v1418 = vadd.f32 %v1289, %v1313
      %v1419 = vadd.f32 %v1290, %v1313
      %v1420 = vadd.f32 %v1291, %v1313
      %v1421 = vadd.f32 %v1292, %v1313
      %v1422 = vadd.f32 %v1293, %v1313
      %v1423 = vadd.f32 %v1294, %v1313
      %v1424 = vadd.f32 %v1295, %v1313
      %v1425 = vadd.f32 %v1296, %v1313
      %v1426 = vadd.f32 %v1297, %v1313
      %v1427 = vadd.f32 %v1298, %v1313
      %v1428 = vadd.f32 %v1299, %v1313
      %v1429 = vadd.f32 %v1300, %v1313
      %v1430 = vadd.f32 %v1301, %v1313
      %v1431 = vadd.f32 %v1302, %v1313
      %v1432 = vadd.f32 %v1303, %v1313
      %v1433 = vadd.f32 %v1304, %v1313
      %v1434 = vadd.f32 %v1305, %v1313
      %v1435 = vadd.f32 %v1306, %v1313
      %v1436 = vadd.f32 %v1307, %v1313
      %v1437 = vadd.f32 %v1308, %v1313
      %v1438 = vadd.f32 %v1309, %v1313
      %v1439 = vadd.f32 %v1310, %v1313
      %v1440 = vadd.f32 %v1311, %v1313
      %v1441 = vadd.f32 %v1312, %v1313
      %v1442 = vmax.f32 %v1314, 0.0
      %v1443 = vmax.f32 %v1315, 0.0
      %v1444 = vmax.f32 %v1316, 0.0
      %v1445 = vmax.f32 %v1317, 0.0
      %v1446 = vmax.f32 %v1318, 0.0
      %v1447 = vmax.f32 %v1319, 0.0
      %v1448 = vmax.f32 %v1320, 0.0
      %v1449 = vmax.f32 %v1321, 0.0
      %v1450 = vmax.f32 %v1322, 0.0
      %v1451 = vmax.f32 %v1323, 0.0
      %v1452 = vmax.f32 %v1324, 0.0
      %v1453 = vmax.f32 %v1325, 0.0
      %v1454 = vmax.f32 %v1326, 0.0
      %v1455 = vmax.f32 %v1327, 0.0
      %v1456 = vmax.f32 %v1328, 0.0
      %v1457 = vmax.f32 %v1329, 0.0
      %v1458 = vmax.f32 %v1330, 0.0
      %v1459 = vmax.f32 %v1331, 0.0
      %v1460 = vmax.f32 %v1332, 0.0
      %v1461 = vmax.f32 %v1333, 0.0
      %v1462 = vmax.f32 %v1334, 0.0
      %v1463 = vmax.f32 %v1335, 0.0
      %v1464 = vmax.f32 %v1336, 0.0
      %v1465 = vmax.f32 %v1337, 0.0
      %v1466 = vmax.f32 %v1338, 0.0
      %v1467 = vmax.f32 %v1339, 0.0
      %v1468 = vmax.f32 %v1340, 0.0
      %v1469 = vmax.f32 %v1341, 0.0
      %v1470 = vmax.f32 %v1342, 0.0
      %v1471 = vmax.f32 %v1343, 0.0
      %v1472 = vmax.f32 %v1344, 0.0
      %v1473 = vmax.f32 %v1345, 0.0
      %v1474 = vmax.f32 %v1346, 0.0
      %v1475 = vmax.f32 %v1347, 0.0
      %v1476 = vmax.f32 %v1348, 0.0
      %v1477 = vmax.f32 %v1349, 0.0
      %v1478 = vmax.f32 %v1350, 0.0
      %v1479 = vmax.f32 %v1351, 0.0
      %v1480 = vmax.f32 %v1352, 0.0
      %v1481 = vmax.f32 %v1353, 0.0
      %v1482 = vmax.f32 %v1354, 0.0
      %v1483 = vmax.f32 %v1355, 0.0
      %v1484 = vmax.f32 %v1356, 0.0
      %v1485 = vmax.f32 %v1357, 0.0
      %v1486 = vmax.f32 %v1358, 0.0
      %v1487 = vmax.f32 %v1359, 0.0
      %v1488 = vmax.f32 %v1360, 0.0
      %v1489 = vmax.f32 %v1361, 0.0
      %v1490 = vmax.f32 %v1362, 0.0
      %v1491 = vmax.f32 %v1363, 0.0
      %v1492 = vmax.f32 %v1364, 0.0
      %v1493 = vmax.f32 %v1365, 0.0
      %v1494 = vmax.f32 %v1366, 0.0
      %v1495 = vmax.f32 %v1367, 0.0
      %v1496 = vmax.f32 %v1368, 0.0
      %v1497 = vmax.f32 %v1369, 0.0
      %v1498 = vmax.f32 %v1370, 0.0
      %v1499 = vmax.f32 %v1371, 0.0
      %v1500 = vmax.f32 %v1372, 0.0
      %v1501 = vmax.f32 %v1373, 0.0
      %v1502 = vmax.f32 %v1374, 0.0
      %v1503 = vmax.f32 %v1375, 0.0
      %v1504 = vmax.f32 %v1376, 0.0
      %v1505 = vmax.f32 %v1377, 0.0
      %v1506 = vmax.f32 %v1378, 0.0
      %v1507 = vmax.f32 %v1379, 0.0
      %v1508 = vmax.f32 %v1380, 0.0
      %v1509 = vmax.f32 %v1381, 0.0
      %v1510 = vmax.f32 %v1382, 0.0
      %v1511 = vmax.f32 %v1383, 0.0
      %v1512 = vmax.f32 %v1384, 0.0
      %v1513 = vmax.f32 %v1385, 0.0
      %v1514 = vmax.f32 %v1386, 0.0
      %v1515 = vmax.f32 %v1387, 0.0
      %v1516 = vmax.f32 %v1388, 0.0
      %v1517 = vmax.f32 %v1389, 0.0
      %v1518 = vmax.f32 %v1390, 0.0
      %v1519 = vmax.f32 %v1391, 0.0
      %v1520 = vmax.f32 %v1392, 0.0
      %v1521 = vmax.f32 %v1393, 0.0
      %v1522 = vmax.f32 %v1394, 0.0
      %v1523 = vmax.f32 %v1395, 0.0
      %v1524 = vmax.f32 %v1396, 0.0
      %v1525 = vmax.f32 %v1397, 0.0
      %v1526 = vmax.f32 %v1398, 0.0
      %v1527 = vmax.f32 %v1399, 0.0
      %v1528 = vmax.f32 %v1400, 0.0
      %v1529 = vmax.f32 %v1401, 0.0
      %v1530 = vmax.f32 %v1402, 0.0
      %v1531 = vmax.f32 %v1403, 0.0
      %v1532 = vmax.f32 %v1404, 0.0
      %v1533 = vmax.f32 %v1405, 0.0
      %v1534 = vmax.f32 %v1406, 0.0
      %v1535 = vmax.f32 %v1407, 0.0
      %v1536 = vmax.f32 %v1408, 0.0
      %v1537 = vmax.f32 %v1409, 0.0
      %v1538 = vmax.f32 %v1410, 0.0
      %v1539 = vmax.f32 %v1411, 0.0
      %v1540 = vmax.f32 %v1412, 0.0
      %v1541 = vmax.f32 %v1413, 0.0
      %v1542 = vmax.f32 %v1414, 0.0
      %v1543 = vmax.f32 %v1415, 0.0
      %v1544 = vmax.f32 %v1416, 0.0
      %v1545 = vmax.f32 %v1417, 0.0
      %v1546 = vmax.f32 %v1418, 0.0
      %v1547 = vmax.f32 %v1419, 0.0
      %v1548 = vmax.f32 %v1420, 0.0
      %v1549 = vmax.f32 %v1421, 0.0
      %v1550 = vmax.f32 %v1422, 0.0
      %v1551 = vmax.f32 %v1423, 0.0
      %v1552 = vmax.f32 %v1424, 0.0
      %v1553 = vmax.f32 %v1425, 0.0
      %v1554 = vmax.f32 %v1426, 0.0
      %v1555 = vmax.f32 %v1427, 0.0
      %v1556 = vmax.f32 %v1428, 0.0
      %v1557 = vmax.f32 %v1429, 0.0
      %v1558 = vmax.f32 %v1430, 0.0
      %v1559 = vmax.f32 %v1431, 0.0
      %v1560 = vmax.f32 %v1432, 0.0
      %v1561 = vmax.f32 %v1433, 0.0
      %v1562 = vmax.f32 %v1434, 0.0
      %v1563 = vmax.f32 %v1435, 0.0
      %v1564 = vmax.f32 %v1436, 0.0
      %v1565 = vmax.f32 %v1437, 0.0
      %v1566 = vmax.f32 %v1438, 0.0
      %v1567 = vmax.f32 %v1439, 0.0
      %v1568 = vmax.f32 %v1440, 0.0
      %v1569 = vmax.f32 %v1441, 0.0
      %v1570 = vmax.f32 %v1442, %v1474
      %v1571 = vmax.f32 %v1570, %v1506
      %v1572 = vmax.f32 %v1571, %v1538
      %v1573 = vmax.f32 %v1443, %v1475
      %v1574 = vmax.f32 %v1573, %v1507
      %v1575 = vmax.f32 %v1574, %v1539
      %v1576 = vmax.f32 %v1444, %v1476
      %v1577 = vmax.f32 %v1576, %v1508
      %v1578 = vmax.f32 %v1577, %v1540
      %v1579 = vmax.f32 %v1445, %v1477
      %v1580 = vmax.f32 %v1579, %v1509
      %v1581 = vmax.f32 %v1580, %v1541
      %v1582 = vmax.f32 %v1446, %v1478
      %v1583 = vmax.f32 %v1582, %v1510
      %v1584 = vmax.f32 %v1583, %v1542
      %v1585 = vmax.f32 %v1447, %v1479
      %v1586 = vmax.f32 %v1585, %v1511
      %v1587 = vmax.f32 %v1586, %v1543
      %v1588 = vmax.f32 %v1448, %v1480
      %v1589 = vmax.f32 %v1588, %v1512
      %v1590 = vmax.f32 %v1589, %v1544
      %v1591 = vmax.f32 %v1449, %v1481
      %v1592 = vmax.f32 %v1591, %v1513
      %v1593 = vmax.f32 %v1592, %v1545
      %v1594 = vmax.f32 %v1450, %v1482
      %v1595 = vmax.f32 %v1594, %v1514
      %v1596 = vmax.f32 %v1595, %v1546
      %v1597 = vmax.f32 %v1451, %v1483
      %v1598 = vmax.f32 %v1597, %v1515
      %v1599 = vmax.f32 %v1598, %v1547
      %v1600 = vmax.f32 %v1452, %v1484
      %v1601 = vmax.f32 %v1600, %v1516
      %v1602 = vmax.f32 %v1601, %v1548
      %v1603 = vmax.f32 %v1453, %v1485
      %v1604 = vmax.f32 %v1603, %v1517
      %v1605 = vmax.f32 %v1604, %v1549
      %v1606 = vmax.f32 %v1454, %v1486
      %v1607 = vmax.f32 %v1606, %v1518
      %v1608 = vmax.f32 %v1607, %v1550
      %v1609 = vmax.f32 %v1455, %v1487
      %v1610 = vmax.f32 %v1609, %v1519
      %v1611 = vmax.f32 %v1610, %v1551
      %v1612 = vmax.f32 %v1456, %v1488
      %v1613 = vmax.f32 %v1612, %v1520
      %v1614 = vmax.f32 %v1613, %v1552
      %v1615 = vmax.f32 %v1457, %v1489
      %v1616 = vmax.f32 %v1615, %v1521
      %v1617 = vmax.f32 %v1616, %v1553
      %v1618 = vmax.f32 %v1458, %v1490
      %v1619 = vmax.f32 %v1618, %v1522
      %v1620 = vmax.f32 %v1619, %v1554
      %v1621 = vmax.f32 %v1459, %v1491
      %v1622 = vmax.f32 %v1621, %v1523
      %v1623 = vmax.f32 %v1622, %v1555
      %v1624 = vmax.f32 %v1460, %v1492
      %v1625 = vmax.f32 %v1624, %v1524
      %v1626 = vmax.f32 %v1625, %v1556
      %v1627 = vmax.f32 %v1461, %v1493
      %v1628 = vmax.f32 %v1627, %v1525
      %v1629 = vmax.f32 %v1628, %v1557
      %v1630 = vmax.f32 %v1462, %v1494
      %v1631 = vmax.f32 %v1630, %v1526
      %v1632 = vmax.f32 %v1631, %v1558
      %v1633 = vmax.f32 %v1463, %v1495
      %v1634 = vmax.f32 %v1633, %v1527
      %v1635 = vmax.f32 %v1634, %v1559
      %v1636 = vmax.f32 %v1464, %v1496
      %v1637 = vmax.f32 %v1636, %v1528
      %v1638 = vmax.f32 %v1637, %v1560
      %v1639 = vmax.f32 %v1465, %v1497
      %v1640 = vmax.f32 %v1639, %v1529
      %v1641 = vmax.f32 %v1640, %v1561
      %v1642 = vmax.f32 %v1466, %v1498
      %v1643 = vmax.f32 %v1642, %v1530
      %v1644 = vmax.f32 %v1643, %v1562
      %v1645 = vmax.f32 %v1467, %v1499
      %v1646 = vmax.f32 %v1645, %v1531
      %v1647 = vmax.f32 %v1646, %v1563
      %v1648 = vmax.f32 %v1468, %v1500
      %v1649 = vmax.f32 %v1648, %v1532
      %v1650 = vmax.f32 %v1649, %v1564
      %v1651 = vmax.f32 %v1469, %v1501
      %v1652 = vmax.f32 %v1651, %v1533
      %v1653 = vmax.f32 %v1652, %v1565
      %v1654 = vmax.f32 %v1470, %v1502
      %v1655 = vmax.f32 %v1654, %v1534
      %v1656 = vmax.f32 %v1655, %v1566
      %v1657 = vmax.f32 %v1471, %v1503
      %v1658 = vmax.f32 %v1657, %v1535
      %v1659 = vmax.f32 %v1658, %v1567
      %v1660 = vmax.f32 %v1472, %v1504
      %v1661 = vmax.f32 %v1660, %v1536
      %v1662 = vmax.f32 %v1661, %v1568
      %v1663 = vmax.f32 %v1473, %v1505
      %v1664 = vmax.f32 %v1663, %v1537
      %v1665 = vmax.f32 %v1664, %v1569
      %1666 = vst [vmem:[#allocation2] sm:$0xff] 0.0
      %1667 = vst [vmem:[#allocation2 + $0x8] sm:$0x1] 0.0
      %1668 = vst [vmem:[#allocation2 + $0x10] sm:$0xff] 0.0
      %1669 = vst [vmem:[#allocation2 + $0x18] sm:$0x1] 0.0
      %1670 = vst [vmem:[#allocation2 + $0x20] sm:$0xff] 0.0
      %1671 = vst [vmem:[#allocation2 + $0x28] sm:$0x1] 0.0
      %1672 = vst [vmem:[#allocation2 + $0x30] sm:$0xff] 0.0
      %1673 = vst [vmem:[#allocation2 + $0x38] sm:$0x1] 0.0
      %1674 = vst [vmem:[#allocation2 + $0x40] sm:$0xff] 0.0
      %1675 = vst [vmem:[#allocation2 + $0x48] sm:$0x1] 0.0
      %1676 = vst [vmem:[#allocation2 + $0x50] sm:$0xff] 0.0
      %1677 = vst [vmem:[#allocation2 + $0x58] sm:$0x1] 0.0
      %1678 = vst [vmem:[#allocation2 + $0x60] sm:$0xff] 0.0
      %1679 = vst [vmem:[#allocation2 + $0x68] sm:$0x1] 0.0
      %1680 = vst [vmem:[#allocation2 + $0x70] sm:$0xff] 0.0
      %1681 = vst [vmem:[#allocation2 + $0x78] sm:$0x1] 0.0
      %1682 = vst [vmem:[#allocation2 + $0x80] sm:$0xff] 0.0
      %1683 = vst [vmem:[#allocation2 + $0x88] sm:$0x1] 0.0
      %1684 = vst [vmem:[#allocation2 + $0x90] sm:$0xff] 0.0
      %1685 = vst [vmem:[#allocation2 + $0x98] sm:$0x1] 0.0
      %1686 = vst [vmem:[#allocation2 + $0xa0] sm:$0xff] 0.0
      %1687 = vst [vmem:[#allocation2 + $0xa8] sm:$0x1] 0.0
      %1688 = vst [vmem:[#allocation2 + $0xb0] sm:$0xff] 0.0
      %1689 = vst [vmem:[#allocation2 + $0xb8] sm:$0x1] 0.0
      %1690 = vst [vmem:[#allocation2 + $0xc0] sm:$0xff] 0.0
      %1691 = vst [vmem:[#allocation2 + $0xc8] sm:$0x1] 0.0
      %1692 = vst [vmem:[#allocation2 + $0xd0] sm:$0xff] 0.0
      %1693 = vst [vmem:[#allocation2 + $0xd8] sm:$0x1] 0.0
      %1694 = vst [vmem:[#allocation2 + $0xe0] sm:$0xff] 0.0
      %1695 = vst [vmem:[#allocation2 + $0xe8] sm:$0x1] 0.0
      %1696 = vst [vmem:[#allocation2 + $0xf0] sm:$0xff] 0.0
      %1697 = vst [vmem:[#allocation2 + $0xf8] sm:$0x1] 0.0
      %1698 = vst [vmem:[#allocation2 + $0x100] sm:$0xff] 0.0
      %1699 = vst [vmem:[#allocation2 + $0x108] sm:$0x1] 0.0
      %1700 = vst [vmem:[#allocation2 + $0x110] sm:$0xff] 0.0
      %1701 = vst [vmem:[#allocation2 + $0x118] sm:$0x1] 0.0
      %1702 = vst [vmem:[#allocation2 + $0x120] sm:$0xff] 0.0
      %1703 = vst [vmem:[#allocation2 + $0x128] sm:$0x1] 0.0
      %1704 = vst [vmem:[#allocation2 + $0x130] sm:$0xff] 0.0
      %1705 = vst [vmem:[#allocation2 + $0x138] sm:$0x1] 0.0
      %1706 = vst [vmem:[#allocation2 + $0x140] sm:$0xff] 0.0
      %1707 = vst [vmem:[#allocation2 + $0x148] sm:$0x1] 0.0
      %1708 = vst [vmem:[#allocation2 + $0x150] sm:$0xff] 0.0
      %1709 = vst [vmem:[#allocation2 + $0x158] sm:$0x1] 0.0
      %1710 = vst [vmem:[#allocation2 + $0x160] sm:$0xff] 0.0
      %1711 = vst [vmem:[#allocation2 + $0x168] sm:$0x1] 0.0
      %1712 = vst [vmem:[#allocation2 + $0x170] sm:$0xff] 0.0
      %1713 = vst [vmem:[#allocation2 + $0x178] sm:$0x1] 0.0
      %1714 = vst [vmem:[#allocation2 + $0x180] sm:$0xff] 0.0
      %1715 = vst [vmem:[#allocation2 + $0x188] sm:$0x1] 0.0
      %1716 = vst [vmem:[#allocation2 + $0x190] sm:$0xff] 0.0
      %1717 = vst [vmem:[#allocation2 + $0x198] sm:$0x1] 0.0
      %1718 = vst [vmem:[#allocation2 + $0x1a0] sm:$0xff] 0.0
      %1719 = vst [vmem:[#allocation2 + $0x1a8] sm:$0x1] 0.0
      %1720 = vst [vmem:[#allocation2 + $0x1b0] sm:$0xff] 0.0
      %1721 = vst [vmem:[#allocation2 + $0x1b8] sm:$0x1] 0.0
      %1722 = vst [vmem:[#allocation2 + $0x1c0] sm:$0xff] 0.0
      %1723 = vst [vmem:[#allocation2 + $0x1c8] sm:$0x1] 0.0
      %1724 = vst [vmem:[#allocation2 + $0x1d0] sm:$0xff] 0.0
      %1725 = vst [vmem:[#allocation2 + $0x1d8] sm:$0x1] 0.0
      %1726 = vst [vmem:[#allocation2 + $0x1e0] sm:$0xff] 0.0
      %1727 = vst [vmem:[#allocation2 + $0x1e8] sm:$0x1] 0.0
      %1728 = vst [vmem:[#allocation2 + $0x1f0] sm:$0xff] 0.0
      %1729 = vst [vmem:[#allocation2 + $0x1f8] sm:$0x1] 0.0
      %1730 = vst [vmem:[#allocation2 + $0x200] sm:$0xff] 0.0
      %1731 = vst [vmem:[#allocation2 + $0x208] sm:$0x1] 0.0
      %1732 = vst [vmem:[#allocation2 + $0x210] sm:$0xff] 0.0
      %1733 = vst [vmem:[#allocation2 + $0x218] sm:$0x1] 0.0
      %1734 = vst [vmem:[#allocation2 + $0x220] sm:$0xff] 0.0
      %1735 = vst [vmem:[#allocation2 + $0x228] sm:$0x1] 0.0
      %1736 = vst [vmem:[#allocation2 + $0x230] sm:$0xff] 0.0
      %1737 = vst [vmem:[#allocation2 + $0x238] sm:$0x1] 0.0
      %s1738 = scalar_lea.vmem [#allocation2], 16
      %1739 = vst [vmem:[%s1738 + $0x1] sm:$0xff] %v1572
      %1740 = vst [vmem:[%s1738 + $0x11] sm:$0xff] %v1575
      %1741 = vst [vmem:[%s1738 + $0x21] sm:$0xff] %v1578
      %1742 = vst [vmem:[%s1738 + $0x31] sm:$0xff] %v1581
      %1743 = vst [vmem:[%s1738 + $0x41] sm:$0xff] %v1584
      %1744 = vst [vmem:[%s1738 + $0x51] sm:$0xff] %v1587
      %1745 = vst [vmem:[%s1738 + $0x61] sm:$0xff] %v1590
      %1746 = vst [vmem:[%s1738 + $0x71] sm:$0xff] %v1593
      %1747 = vst [vmem:[%s1738 + $0x91] sm:$0xff] %v1596
      %1748 = vst [vmem:[%s1738 + $0xa1] sm:$0xff] %v1599
      %1749 = vst [vmem:[%s1738 + $0xb1] sm:$0xff] %v1602
      %1750 = vst [vmem:[%s1738 + $0xc1] sm:$0xff] %v1605
      %1751 = vst [vmem:[%s1738 + $0xd1] sm:$0xff] %v1608
      %1752 = vst [vmem:[%s1738 + $0xe1] sm:$0xff] %v1611
      %1753 = vst [vmem:[%s1738 + $0xf1] sm:$0xff] %v1614
      %1754 = vst [vmem:[%s1738 + $0x101] sm:$0xff] %v1617
      %1755 = vst [vmem:[%s1738 + $0x121] sm:$0xff] %v1620
      %1756 = vst [vmem:[%s1738 + $0x131] sm:$0xff] %v1623
      %1757 = vst [vmem:[%s1738 + $0x141] sm:$0xff] %v1626
      %1758 = vst [vmem:[%s1738 + $0x151] sm:$0xff] %v1629
      %1759 = vst [vmem:[%s1738 + $0x161] sm:$0xff] %v1632
      %1760 = vst [vmem:[%s1738 + $0x171] sm:$0xff] %v1635
      %1761 = vst [vmem:[%s1738 + $0x181] sm:$0xff] %v1638
      %1762 = vst [vmem:[%s1738 + $0x191] sm:$0xff] %v1641
      %1763 = vst [vmem:[%s1738 + $0x1b1] sm:$0xff] %v1644
      %1764 = vst [vmem:[%s1738 + $0x1c1] sm:$0xff] %v1647
      %1765 = vst [vmem:[%s1738 + $0x1d1] sm:$0xff] %v1650
      %1766 = vst [vmem:[%s1738 + $0x1e1] sm:$0xff] %v1653
      %1767 = vst [vmem:[%s1738 + $0x1f1] sm:$0xff] %v1656
      %1768 = vst [vmem:[%s1738 + $0x201] sm:$0xff] %v1659
      %1769 = vst [vmem:[%s1738 + $0x211] sm:$0xff] %v1662
      %1770 = vst [vmem:[%s1738 + $0x221] sm:$0xff] %v1665
      %s1771 = scalar_lea.vmem [#allocation2], 432
      %v1772 = vld [vmem:[%s1771] sm:$0xff]
      %v1773 = vld [vmem:[%s1771 + $0x10] sm:$0xff]
      %v1774 = vld [vmem:[%s1771 + $0x20] sm:$0xff]
      %v1775 = vld [vmem:[%s1771 + $0x30] sm:$0xff]
      %v1776 = vld [vmem:[%s1771 + $0x40] sm:$0xff]
      %v1777 = vld [vmem:[%s1771 + $0x50] sm:$0xff]
      %v1778 = vld [vmem:[%s1771 + $0x60] sm:$0xff]
      %v1779 = vld [vmem:[%s1771 + $0x70] sm:$0xff]
      %s1780 = scalar_lea.vmem [#allocation2], 288
      %v1781 = vld [vmem:[%s1780 + $0x1] sm:$0xff]
      %v1782 = vld [vmem:[%s1780 + $0x11] sm:$0xff]
      %v1783 = vld [vmem:[%s1780 + $0x21] sm:$0xff]
      %v1784 = vld [vmem:[%s1780 + $0x31] sm:$0xff]
      %v1785 = vld [vmem:[%s1780 + $0x41] sm:$0xff]
      %v1786 = vld [vmem:[%s1780 + $0x51] sm:$0xff]
      %v1787 = vld [vmem:[%s1780 + $0x61] sm:$0xff]
      %v1788 = vld [vmem:[%s1780 + $0x71] sm:$0xff]
      %v1789 = vld [vmem:[%s1771 + $0x1] sm:$0xff]
      %v1790 = vld [vmem:[%s1771 + $0x11] sm:$0xff]
      %v1791 = vld [vmem:[%s1771 + $0x21] sm:$0xff]
      %v1792 = vld [vmem:[%s1771 + $0x31] sm:$0xff]
      %v1793 = vld [vmem:[%s1771 + $0x41] sm:$0xff]
      %v1794 = vld [vmem:[%s1771 + $0x51] sm:$0xff]
      %v1795 = vld [vmem:[%s1771 + $0x61] sm:$0xff]
      %v1796 = vld [vmem:[%s1771 + $0x71] sm:$0xff]
      %s1797 = scalar_lea.vmem [#allocation2], 160
      %v1798 = vld [vmem:[%s1797] sm:$0xff]
      %v1799 = vld [vmem:[%s1797 + $0x10] sm:$0xff]
      %v1800 = vld [vmem:[%s1797 + $0x20] sm:$0xff]
      %v1801 = vld [vmem:[%s1797 + $0x30] sm:$0xff]
      %v1802 = vld [vmem:[%s1797 + $0x40] sm:$0xff]
      %v1803 = vld [vmem:[%s1797 + $0x50] sm:$0xff]
      %v1804 = vld [vmem:[%s1797 + $0x60] sm:$0xff]
      %v1805 = vld [vmem:[%s1797 + $0x70] sm:$0xff]
      %v1806 = vld [vmem:[%s1738 + $0x1] sm:$0xff]
      %v1807 = vld [vmem:[%s1738 + $0x11] sm:$0xff]
      %v1808 = vld [vmem:[%s1738 + $0x21] sm:$0xff]
      %v1809 = vld [vmem:[%s1738 + $0x31] sm:$0xff]
      %v1810 = vld [vmem:[%s1738 + $0x41] sm:$0xff]
      %v1811 = vld [vmem:[%s1738 + $0x51] sm:$0xff]
      %v1812 = vld [vmem:[%s1738 + $0x61] sm:$0xff]
      %v1813 = vld [vmem:[%s1738 + $0x71] sm:$0xff]
      %v1814 = vld [vmem:[%s1797 + $0x1] sm:$0xff]
      %v1815 = vld [vmem:[%s1797 + $0x11] sm:$0xff]
      %v1816 = vld [vmem:[%s1797 + $0x21] sm:$0xff]
      %v1817 = vld [vmem:[%s1797 + $0x31] sm:$0xff]
      %v1818 = vld [vmem:[%s1797 + $0x41] sm:$0xff]
      %v1819 = vld [vmem:[%s1797 + $0x51] sm:$0xff]
      %v1820 = vld [vmem:[%s1797 + $0x61] sm:$0xff]
      %v1821 = vld [vmem:[%s1797 + $0x71] sm:$0xff]
      %s1822 = scalar_lea.vmem [#allocation2], 448
      %v1823 = vld [vmem:[%s1822] sm:$0xff]
      %v1824 = vld [vmem:[%s1822 + $0x10] sm:$0xff]
      %v1825 = vld [vmem:[%s1822 + $0x20] sm:$0xff]
      %v1826 = vld [vmem:[%s1822 + $0x30] sm:$0xff]
      %v1827 = vld [vmem:[%s1822 + $0x40] sm:$0xff]
      %v1828 = vld [vmem:[%s1822 + $0x50] sm:$0xff]
      %v1829 = vld [vmem:[%s1822 + $0x60] sm:$0xff]
      %v1830 = vld [vmem:[%s1822 + $0x70] sm:$0xff]
      %s1831 = scalar_lea.vmem [#allocation2], 304
      %v1832 = vld [vmem:[%s1831 + $0x1] sm:$0xff]
      %v1833 = vld [vmem:[%s1831 + $0x11] sm:$0xff]
      %v1834 = vld [vmem:[%s1831 + $0x21] sm:$0xff]
      %v1835 = vld [vmem:[%s1831 + $0x31] sm:$0xff]
      %v1836 = vld [vmem:[%s1831 + $0x41] sm:$0xff]
      %v1837 = vld [vmem:[%s1831 + $0x51] sm:$0xff]
      %v1838 = vld [vmem:[%s1831 + $0x61] sm:$0xff]
      %v1839 = vld [vmem:[%s1831 + $0x71] sm:$0xff]
      %v1840 = vld [vmem:[%s1822 + $0x1] sm:$0xff]
      %v1841 = vld [vmem:[%s1822 + $0x11] sm:$0xff]
      %v1842 = vld [vmem:[%s1822 + $0x21] sm:$0xff]
      %v1843 = vld [vmem:[%s1822 + $0x31] sm:$0xff]
      %v1844 = vld [vmem:[%s1822 + $0x41] sm:$0xff]
      %v1845 = vld [vmem:[%s1822 + $0x51] sm:$0xff]
      %v1846 = vld [vmem:[%s1822 + $0x61] sm:$0xff]
      %v1847 = vld [vmem:[%s1822 + $0x71] sm:$0xff]
      %v1848 = vpack.c.bf16 %v1773, %v1772
      %v1849 = vpack.c.bf16 %v1782, %v1781
      %v1850 = vpack.c.bf16 %v1790, %v1789
      %v1851 = vpack.c.bf16 %v1799, %v1798
      %v1852 = vpack.c.bf16 %v1807, %v1806
      %v1853 = vpack.c.bf16 %v1815, %v1814
      %v1854 = vpack.c.bf16 %v1824, %v1823
      %v1855 = vpack.c.bf16 %v1833, %v1832
      %v1856 = vpack.c.bf16 %v1841, %v1840
      %v1857 = vpack.c.bf16 %v1775, %v1774
      %v1858 = vpack.c.bf16 %v1784, %v1783
      %v1859 = vpack.c.bf16 %v1792, %v1791
      %v1860 = vpack.c.bf16 %v1801, %v1800
      %v1861 = vpack.c.bf16 %v1809, %v1808
      %v1862 = vpack.c.bf16 %v1817, %v1816
      %v1863 = vpack.c.bf16 %v1826, %v1825
      %v1864 = vpack.c.bf16 %v1835, %v1834
      %v1865 = vpack.c.bf16 %v1843, %v1842
      %v1866 = vpack.c.bf16 %v1777, %v1776
      %v1867 = vpack.c.bf16 %v1786, %v1785
      %v1868 = vpack.c.bf16 %v1794, %v1793
      %v1869 = vpack.c.bf16 %v1803, %v1802
      %v1870 = vpack.c.bf16 %v1811, %v1810
      %v1871 = vpack.c.bf16 %v1819, %v1818
      %v1872 = vpack.c.bf16 %v1828, %v1827
      %v1873 = vpack.c.bf16 %v1837, %v1836
      %v1874 = vpack.c.bf16 %v1845, %v1844
      %v1875 = vpack.c.bf16 %v1779, %v1778
      %v1876 = vpack.c.bf16 %v1788, %v1787
      %v1877 = vpack.c.bf16 %v1796, %v1795
      %v1878 = vpack.c.bf16 %v1805, %v1804
      %v1879 = vpack.c.bf16 %v1813, %v1812
      %v1880 = vpack.c.bf16 %v1821, %v1820
      %v1881 = vpack.c.bf16 %v1830, %v1829
      %v1882 = vpack.c.bf16 %v1839, %v1838
      %v1883 = vpack.c.bf16 %v1847, %v1846
      %v1884 = vld [vmem:[%s2] sm:$0xf]
      %v1885 = vld [vmem:[%s2 + $0x4] sm:$0xf]
      %v1886 = vld [vmem:[%s2 + $0x8] sm:$0xf]
      %v1887 = vld [vmem:[%s2 + $0xc] sm:$0xf]
      %v1888 = vld [vmem:[%s2 + $0x10] sm:$0xf]
      %v1889 = vld [vmem:[%s2 + $0x14] sm:$0xf]
      %v1890 = vld [vmem:[%s2 + $0x18] sm:$0xf]
      %v1891 = vld [vmem:[%s2 + $0x1c] sm:$0xf]
      %v1892 = vld [vmem:[%s2 + $0x20] sm:$0xf]
      %v1893 = vld [vmem:[%s2 + $0x24] sm:$0xf]
      %v1894 = vld [vmem:[%s2 + $0x28] sm:$0xf]
      %v1895 = vld [vmem:[%s2 + $0x2c] sm:$0xf]
      %v1896 = vld [vmem:[%s2 + $0x30] sm:$0xf]
      %v1897 = vld [vmem:[%s2 + $0x34] sm:$0xf]
      %v1898 = vld [vmem:[%s2 + $0x38] sm:$0xf]
      %v1899 = vld [vmem:[%s2 + $0x3c] sm:$0xf]
      %v1900 = vld [vmem:[%s2 + $0x40] sm:$0xf]
      %v1901 = vld [vmem:[%s2 + $0x44] sm:$0xf]
      %v1902 = vld [vmem:[%s2 + $0x48] sm:$0xf]
      %v1903 = vld [vmem:[%s2 + $0x4c] sm:$0xf]
      %v1904 = vld [vmem:[%s2 + $0x50] sm:$0xf]
      %v1905 = vld [vmem:[%s2 + $0x54] sm:$0xf]
      %v1906 = vld [vmem:[%s2 + $0x58] sm:$0xf]
      %v1907 = vld [vmem:[%s2 + $0x5c] sm:$0xf]
      %v1908 = vld [vmem:[%s2 + $0x60] sm:$0xf]
      %v1909 = vld [vmem:[%s2 + $0x64] sm:$0xf]
      %v1910 = vld [vmem:[%s2 + $0x68] sm:$0xf]
      %v1911 = vld [vmem:[%s2 + $0x6c] sm:$0xf]
      %v1912 = vld [vmem:[%s2 + $0x70] sm:$0xf]
      %v1913 = vld [vmem:[%s2 + $0x74] sm:$0xf]
      %v1914 = vld [vmem:[%s2 + $0x78] sm:$0xf]
      %v1915 = vld [vmem:[%s2 + $0x7c] sm:$0xf]
      %v1916 = vld [vmem:[%s2 + $0x80] sm:$0xf]
      %v1917 = vld [vmem:[%s2 + $0x84] sm:$0xf]
      %v1918 = vld [vmem:[%s2 + $0x88] sm:$0xf]
      %v1919 = vld [vmem:[%s2 + $0x8c] sm:$0xf]
      %v1920 = vld [vmem:[%s2 + $0x90] sm:$0xf]
      %v1921 = vld [vmem:[%s2 + $0x94] sm:$0xf]
      %v1922 = vld [vmem:[%s2 + $0x98] sm:$0xf]
      %v1923 = vld [vmem:[%s2 + $0x9c] sm:$0xf]
      %v1924 = vld [vmem:[%s2 + $0xa0] sm:$0xf]
      %v1925 = vld [vmem:[%s2 + $0xa4] sm:$0xf]
      %v1926 = vld [vmem:[%s2 + $0xa8] sm:$0xf]
      %v1927 = vld [vmem:[%s2 + $0xac] sm:$0xf]
      %v1928 = vld [vmem:[%s2 + $0xb0] sm:$0xf]
      %v1929 = vld [vmem:[%s2 + $0xb4] sm:$0xf]
      %v1930 = vld [vmem:[%s2 + $0xb8] sm:$0xf]
      %v1931 = vld [vmem:[%s2 + $0xbc] sm:$0xf]
      %v1932 = vld [vmem:[%s2 + $0xc0] sm:$0xf]
      %v1933 = vld [vmem:[%s2 + $0xc4] sm:$0xf]
      %v1934 = vld [vmem:[%s2 + $0xc8] sm:$0xf]
      %v1935 = vld [vmem:[%s2 + $0xcc] sm:$0xf]
      %v1936 = vld [vmem:[%s2 + $0xd0] sm:$0xf]
      %v1937 = vld [vmem:[%s2 + $0xd4] sm:$0xf]
      %v1938 = vld [vmem:[%s2 + $0xd8] sm:$0xf]
      %v1939 = vld [vmem:[%s2 + $0xdc] sm:$0xf]
      %v1940 = vld [vmem:[%s2 + $0xe0] sm:$0xf]
      %v1941 = vld [vmem:[%s2 + $0xe4] sm:$0xf]
      %v1942 = vld [vmem:[%s2 + $0xe8] sm:$0xf]
      %v1943 = vld [vmem:[%s2 + $0xec] sm:$0xf]
      %v1944 = vld [vmem:[%s2 + $0xf0] sm:$0xf]
      %v1945 = vld [vmem:[%s2 + $0xf4] sm:$0xf]
      %v1946 = vld [vmem:[%s2 + $0xf8] sm:$0xf]
      %v1947 = vld [vmem:[%s2 + $0xfc] sm:$0xf]
      %v1948 = vld [vmem:[%s2 + $0x100] sm:$0xf]
      %v1949 = vld [vmem:[%s2 + $0x104] sm:$0xf]
      %v1950 = vld [vmem:[%s2 + $0x108] sm:$0xf]
      %v1951 = vld [vmem:[%s2 + $0x10c] sm:$0xf]
      %v1952 = vld [vmem:[%s2 + $0x110] sm:$0xf]
      %v1953 = vld [vmem:[%s2 + $0x114] sm:$0xf]
      %v1954 = vld [vmem:[%s2 + $0x118] sm:$0xf]
      %v1955 = vld [vmem:[%s2 + $0x11c] sm:$0xf]
      %v1956 = vld [vmem:[%s2 + $0x120] sm:$0xf]
      %v1957 = vld [vmem:[%s2 + $0x124] sm:$0xf]
      %v1958 = vld [vmem:[%s2 + $0x128] sm:$0xf]
      %v1959 = vld [vmem:[%s2 + $0x12c] sm:$0xf]
      %v1960 = vld [vmem:[%s2 + $0x130] sm:$0xf]
      %v1961 = vld [vmem:[%s2 + $0x134] sm:$0xf]
      %v1962 = vld [vmem:[%s2 + $0x138] sm:$0xf]
      %v1963 = vld [vmem:[%s2 + $0x13c] sm:$0xf]
      %v1964 = vld [vmem:[%s2 + $0x140] sm:$0xf]
      %v1965 = vld [vmem:[%s2 + $0x144] sm:$0xf]
      %v1966 = vld [vmem:[%s2 + $0x148] sm:$0xf]
      %v1967 = vld [vmem:[%s2 + $0x14c] sm:$0xf]
      %v1968 = vld [vmem:[%s2 + $0x150] sm:$0xf]
      %v1969 = vld [vmem:[%s2 + $0x154] sm:$0xf]
      %v1970 = vld [vmem:[%s2 + $0x158] sm:$0xf]
      %v1971 = vld [vmem:[%s2 + $0x15c] sm:$0xf]
      %v1972 = vld [vmem:[%s2 + $0x160] sm:$0xf]
      %v1973 = vld [vmem:[%s2 + $0x164] sm:$0xf]
      %v1974 = vld [vmem:[%s2 + $0x168] sm:$0xf]
      %v1975 = vld [vmem:[%s2 + $0x16c] sm:$0xf]
      %v1976 = vld [vmem:[%s2 + $0x170] sm:$0xf]
      %v1977 = vld [vmem:[%s2 + $0x174] sm:$0xf]
      %v1978 = vld [vmem:[%s2 + $0x178] sm:$0xf]
      %v1979 = vld [vmem:[%s2 + $0x17c] sm:$0xf]
      %v1980 = vld [vmem:[%s2 + $0x180] sm:$0xf]
      %v1981 = vld [vmem:[%s2 + $0x184] sm:$0xf]
      %v1982 = vld [vmem:[%s2 + $0x188] sm:$0xf]
      %v1983 = vld [vmem:[%s2 + $0x18c] sm:$0xf]
      %v1984 = vld [vmem:[%s2 + $0x190] sm:$0xf]
      %v1985 = vld [vmem:[%s2 + $0x194] sm:$0xf]
      %v1986 = vld [vmem:[%s2 + $0x198] sm:$0xf]
      %v1987 = vld [vmem:[%s2 + $0x19c] sm:$0xf]
      %v1988 = vld [vmem:[%s2 + $0x1a0] sm:$0xf]
      %v1989 = vld [vmem:[%s2 + $0x1a4] sm:$0xf]
      %v1990 = vld [vmem:[%s2 + $0x1a8] sm:$0xf]
      %v1991 = vld [vmem:[%s2 + $0x1ac] sm:$0xf]
      %v1992 = vld [vmem:[%s2 + $0x1b0] sm:$0xf]
      %v1993 = vld [vmem:[%s2 + $0x1b4] sm:$0xf]
      %v1994 = vld [vmem:[%s2 + $0x1b8] sm:$0xf]
      %v1995 = vld [vmem:[%s2 + $0x1bc] sm:$0xf]
      %v1996 = vld [vmem:[%s2 + $0x1c0] sm:$0xf]
      %v1997 = vld [vmem:[%s2 + $0x1c4] sm:$0xf]
      %v1998 = vld [vmem:[%s2 + $0x1c8] sm:$0xf]
      %v1999 = vld [vmem:[%s2 + $0x1cc] sm:$0xf]
      %v2000 = vld [vmem:[%s2 + $0x1d0] sm:$0xf]
      %v2001 = vld [vmem:[%s2 + $0x1d4] sm:$0xf]
      %v2002 = vld [vmem:[%s2 + $0x1d8] sm:$0xf]
      %v2003 = vld [vmem:[%s2 + $0x1dc] sm:$0xf]
      %v2004 = vld [vmem:[%s2 + $0x1e0] sm:$0xf]
      %v2005 = vld [vmem:[%s2 + $0x1e4] sm:$0xf]
      %v2006 = vld [vmem:[%s2 + $0x1e8] sm:$0xf]
      %v2007 = vld [vmem:[%s2 + $0x1ec] sm:$0xf]
      %v2008 = vld [vmem:[%s2 + $0x1f0] sm:$0xf]
      %v2009 = vld [vmem:[%s2 + $0x1f4] sm:$0xf]
      %v2010 = vld [vmem:[%s2 + $0x1f8] sm:$0xf]
      %v2011 = vld [vmem:[%s2 + $0x1fc] sm:$0xf]
      %v2012 = vld [vmem:[%s2 + $0x200] sm:$0xf]
      %v2013 = vld [vmem:[%s2 + $0x204] sm:$0xf]
      %v2014 = vld [vmem:[%s2 + $0x208] sm:$0xf]
      %v2015 = vld [vmem:[%s2 + $0x20c] sm:$0xf]
      %v2016 = vld [vmem:[%s2 + $0x210] sm:$0xf]
      %v2017 = vld [vmem:[%s2 + $0x214] sm:$0xf]
      %v2018 = vld [vmem:[%s2 + $0x218] sm:$0xf]
      %v2019 = vld [vmem:[%s2 + $0x21c] sm:$0xf]
      %v2020 = vld [vmem:[%s2 + $0x220] sm:$0xf]
      %v2021 = vld [vmem:[%s2 + $0x224] sm:$0xf]
      %v2022 = vld [vmem:[%s2 + $0x228] sm:$0xf]
      %v2023 = vld [vmem:[%s2 + $0x22c] sm:$0xf]
      %v2024 = vld [vmem:[%s2 + $0x230] sm:$0xf]
      %v2025 = vld [vmem:[%s2 + $0x234] sm:$0xf]
      %v2026 = vld [vmem:[%s2 + $0x238] sm:$0xf]
      %v2027 = vld [vmem:[%s2 + $0x23c] sm:$0xf]
      %v2172 = vunpack.c.l.b16 %v1884
      %v2173 = vunpack.c.l.b16 %v1885
      %v2174 = vunpack.c.l.b16 %v1886
      %v2175 = vunpack.c.l.b16 %v1887
      %v2176 = vunpack.c.l.b16 %v1888
      %v2177 = vunpack.c.l.b16 %v1889
      %v2178 = vunpack.c.l.b16 %v1890
      %v2179 = vunpack.c.l.b16 %v1891
      %v2180 = vunpack.c.l.b16 %v1892
      %v2181 = vunpack.c.l.b16 %v1893
      %v2182 = vunpack.c.l.b16 %v1894
      %v2183 = vunpack.c.l.b16 %v1895
      %v2184 = vunpack.c.l.b16 %v1896
      %v2185 = vunpack.c.l.b16 %v1897
      %v2186 = vunpack.c.l.b16 %v1898
      %v2187 = vunpack.c.l.b16 %v1899
      %v2188 = vunpack.c.l.b16 %v1900
      %v2189 = vunpack.c.l.b16 %v1901
      %v2190 = vunpack.c.l.b16 %v1902
      %v2191 = vunpack.c.l.b16 %v1903
      %v2192 = vunpack.c.l.b16 %v1904
      %v2193 = vunpack.c.l.b16 %v1905
      %v2194 = vunpack.c.l.b16 %v1906
      %v2195 = vunpack.c.l.b16 %v1907
      %v2196 = vunpack.c.l.b16 %v1908
      %v2197 = vunpack.c.l.b16 %v1909
      %v2198 = vunpack.c.l.b16 %v1910
      %v2199 = vunpack.c.l.b16 %v1911
      %v2200 = vunpack.c.l.b16 %v1912
      %v2201 = vunpack.c.l.b16 %v1913
      %v2202 = vunpack.c.l.b16 %v1914
      %v2203 = vunpack.c.l.b16 %v1915
      %v2204 = vunpack.c.l.b16 %v1916
      %v2205 = vunpack.c.l.b16 %v1917
      %v2206 = vunpack.c.l.b16 %v1918
      %v2207 = vunpack.c.l.b16 %v1919
      %v2208 = vunpack.c.l.b16 %v1920
      %v2209 = vunpack.c.l.b16 %v1921
      %v2210 = vunpack.c.l.b16 %v1922
      %v2211 = vunpack.c.l.b16 %v1923
      %v2212 = vunpack.c.l.b16 %v1924
      %v2213 = vunpack.c.l.b16 %v1925
      %v2214 = vunpack.c.l.b16 %v1926
      %v2215 = vunpack.c.l.b16 %v1927
      %v2216 = vunpack.c.l.b16 %v1928
      %v2217 = vunpack.c.l.b16 %v1929
      %v2218 = vunpack.c.l.b16 %v1930
      %v2219 = vunpack.c.l.b16 %v1931
      %v2220 = vunpack.c.l.b16 %v1932
      %v2221 = vunpack.c.l.b16 %v1933
      %v2222 = vunpack.c.l.b16 %v1934
      %v2223 = vunpack.c.l.b16 %v1935
      %v2224 = vunpack.c.l.b16 %v1936
      %v2225 = vunpack.c.l.b16 %v1937
      %v2226 = vunpack.c.l.b16 %v1938
      %v2227 = vunpack.c.l.b16 %v1939
      %v2228 = vunpack.c.l.b16 %v1940
      %v2229 = vunpack.c.l.b16 %v1941
      %v2230 = vunpack.c.l.b16 %v1942
      %v2231 = vunpack.c.l.b16 %v1943
      %v2232 = vunpack.c.l.b16 %v1944
      %v2233 = vunpack.c.l.b16 %v1945
      %v2234 = vunpack.c.l.b16 %v1946
      %v2235 = vunpack.c.l.b16 %v1947
      %v2236 = vunpack.c.l.b16 %v1948
      %v2237 = vunpack.c.l.b16 %v1949
      %v2238 = vunpack.c.l.b16 %v1950
      %v2239 = vunpack.c.l.b16 %v1951
      %v2240 = vunpack.c.l.b16 %v1952
      %v2241 = vunpack.c.l.b16 %v1953
      %v2242 = vunpack.c.l.b16 %v1954
      %v2243 = vunpack.c.l.b16 %v1955
      %v2244 = vunpack.c.l.b16 %v1956
      %v2245 = vunpack.c.l.b16 %v1957
      %v2246 = vunpack.c.l.b16 %v1958
      %v2247 = vunpack.c.l.b16 %v1959
      %v2248 = vunpack.c.l.b16 %v1960
      %v2249 = vunpack.c.l.b16 %v1961
      %v2250 = vunpack.c.l.b16 %v1962
      %v2251 = vunpack.c.l.b16 %v1963
      %v2252 = vunpack.c.l.b16 %v1964
      %v2253 = vunpack.c.l.b16 %v1965
      %v2254 = vunpack.c.l.b16 %v1966
      %v2255 = vunpack.c.l.b16 %v1967
      %v2256 = vunpack.c.l.b16 %v1968
      %v2257 = vunpack.c.l.b16 %v1969
      %v2258 = vunpack.c.l.b16 %v1970
      %v2259 = vunpack.c.l.b16 %v1971
      %v2260 = vunpack.c.l.b16 %v1972
      %v2261 = vunpack.c.l.b16 %v1973
      %v2262 = vunpack.c.l.b16 %v1974
      %v2263 = vunpack.c.l.b16 %v1975
      %v2264 = vunpack.c.l.b16 %v1976
      %v2265 = vunpack.c.l.b16 %v1977
      %v2266 = vunpack.c.l.b16 %v1978
      %v2267 = vunpack.c.l.b16 %v1979
      %v2268 = vunpack.c.l.b16 %v1980
      %v2269 = vunpack.c.l.b16 %v1981
      %v2270 = vunpack.c.l.b16 %v1982
      %v2271 = vunpack.c.l.b16 %v1983
      %v2272 = vunpack.c.l.b16 %v1984
      %v2273 = vunpack.c.l.b16 %v1985
      %v2274 = vunpack.c.l.b16 %v1986
      %v2275 = vunpack.c.l.b16 %v1987
      %v2276 = vunpack.c.l.b16 %v1988
      %v2277 = vunpack.c.l.b16 %v1989
      %v2278 = vunpack.c.l.b16 %v1990
      %v2279 = vunpack.c.l.b16 %v1991
      %v2280 = vunpack.c.l.b16 %v1992
      %v2281 = vunpack.c.l.b16 %v1993
      %v2282 = vunpack.c.l.b16 %v1994
      %v2283 = vunpack.c.l.b16 %v1995
      %v2284 = vunpack.c.l.b16 %v1996
      %v2285 = vunpack.c.l.b16 %v1997
      %v2286 = vunpack.c.l.b16 %v1998
      %v2287 = vunpack.c.l.b16 %v1999
      %v2288 = vunpack.c.l.b16 %v2000
      %v2289 = vunpack.c.l.b16 %v2001
      %v2290 = vunpack.c.l.b16 %v2002
      %v2291 = vunpack.c.l.b16 %v2003
      %v2292 = vunpack.c.l.b16 %v2004
      %v2293 = vunpack.c.l.b16 %v2005
      %v2294 = vunpack.c.l.b16 %v2006
      %v2295 = vunpack.c.l.b16 %v2007
      %v2296 = vunpack.c.l.b16 %v2008
      %v2297 = vunpack.c.l.b16 %v2009
      %v2298 = vunpack.c.l.b16 %v2010
      %v2299 = vunpack.c.l.b16 %v2011
      %v2300 = vunpack.c.l.b16 %v2012
      %v2301 = vunpack.c.l.b16 %v2013
      %v2302 = vunpack.c.l.b16 %v2014
      %v2303 = vunpack.c.l.b16 %v2015
      %v2304 = vunpack.c.l.b16 %v2016
      %v2305 = vunpack.c.l.b16 %v2017
      %v2306 = vunpack.c.l.b16 %v2018
      %v2307 = vunpack.c.l.b16 %v2019
      %v2308 = vunpack.c.l.b16 %v2020
      %v2309 = vunpack.c.l.b16 %v2021
      %v2310 = vunpack.c.l.b16 %v2022
      %v2311 = vunpack.c.l.b16 %v2023
      %v2312 = vunpack.c.l.b16 %v2024
      %v2313 = vunpack.c.l.b16 %v2025
      %v2314 = vunpack.c.l.b16 %v2026
      %v2315 = vunpack.c.l.b16 %v2027
      %v2316 = vpack.c.b16 %v2173, %v2172
      %v2317 = vpack.c.b16 %v2175, %v2174
      %v2318 = vpack.c.b16 %v2177, %v2176
      %v2319 = vpack.c.b16 %v2179, %v2178
      %v2320 = vpack.c.b16 %v2181, %v2180
      %v2321 = vpack.c.b16 %v2183, %v2182
      %v2322 = vpack.c.b16 %v2185, %v2184
      %v2323 = vpack.c.b16 %v2187, %v2186
      %v2324 = vpack.c.b16 %v2189, %v2188
      %v2325 = vpack.c.b16 %v2191, %v2190
      %v2326 = vpack.c.b16 %v2193, %v2192
      %v2327 = vpack.c.b16 %v2195, %v2194
      %v2328 = vpack.c.b16 %v2197, %v2196
      %v2329 = vpack.c.b16 %v2199, %v2198
      %v2330 = vpack.c.b16 %v2201, %v2200
      %v2331 = vpack.c.b16 %v2203, %v2202
      %v2332 = vpack.c.b16 %v2205, %v2204
      %v2333 = vpack.c.b16 %v2207, %v2206
      %v2334 = vpack.c.b16 %v2209, %v2208
      %v2335 = vpack.c.b16 %v2211, %v2210
      %v2336 = vpack.c.b16 %v2213, %v2212
      %v2337 = vpack.c.b16 %v2215, %v2214
      %v2338 = vpack.c.b16 %v2217, %v2216
      %v2339 = vpack.c.b16 %v2219, %v2218
      %v2340 = vpack.c.b16 %v2221, %v2220
      %v2341 = vpack.c.b16 %v2223, %v2222
      %v2342 = vpack.c.b16 %v2225, %v2224
      %v2343 = vpack.c.b16 %v2227, %v2226
      %v2344 = vpack.c.b16 %v2229, %v2228
      %v2345 = vpack.c.b16 %v2231, %v2230
      %v2346 = vpack.c.b16 %v2233, %v2232
      %v2347 = vpack.c.b16 %v2235, %v2234
      %v2348 = vpack.c.b16 %v2237, %v2236
      %v2349 = vpack.c.b16 %v2239, %v2238
      %v2350 = vpack.c.b16 %v2241, %v2240
      %v2351 = vpack.c.b16 %v2243, %v2242
      %v2352 = vpack.c.b16 %v2245, %v2244
      %v2353 = vpack.c.b16 %v2247, %v2246
      %v2354 = vpack.c.b16 %v2249, %v2248
      %v2355 = vpack.c.b16 %v2251, %v2250
      %v2356 = vpack.c.b16 %v2253, %v2252
      %v2357 = vpack.c.b16 %v2255, %v2254
      %v2358 = vpack.c.b16 %v2257, %v2256
      %v2359 = vpack.c.b16 %v2259, %v2258
      %v2360 = vpack.c.b16 %v2261, %v2260
      %v2361 = vpack.c.b16 %v2263, %v2262
      %v2362 = vpack.c.b16 %v2265, %v2264
      %v2363 = vpack.c.b16 %v2267, %v2266
      %v2364 = vpack.c.b16 %v2269, %v2268
      %v2365 = vpack.c.b16 %v2271, %v2270
      %v2366 = vpack.c.b16 %v2273, %v2272
      %v2367 = vpack.c.b16 %v2275, %v2274
      %v2368 = vpack.c.b16 %v2277, %v2276
      %v2369 = vpack.c.b16 %v2279, %v2278
      %v2370 = vpack.c.b16 %v2281, %v2280
      %v2371 = vpack.c.b16 %v2283, %v2282
      %v2372 = vpack.c.b16 %v2285, %v2284
      %v2373 = vpack.c.b16 %v2287, %v2286
      %v2374 = vpack.c.b16 %v2289, %v2288
      %v2375 = vpack.c.b16 %v2291, %v2290
      %v2376 = vpack.c.b16 %v2293, %v2292
      %v2377 = vpack.c.b16 %v2295, %v2294
      %v2378 = vpack.c.b16 %v2297, %v2296
      %v2379 = vpack.c.b16 %v2299, %v2298
      %v2380 = vpack.c.b16 %v2301, %v2300
      %v2381 = vpack.c.b16 %v2303, %v2302
      %v2382 = vpack.c.b16 %v2305, %v2304
      %v2383 = vpack.c.b16 %v2307, %v2306
      %v2384 = vpack.c.b16 %v2309, %v2308
      %v2385 = vpack.c.b16 %v2311, %v2310
      %v2386 = vpack.c.b16 %v2313, %v2312
      %v2387 = vpack.c.b16 %v2315, %v2314
      %2460 = vmatpush.bf16.msra.mxu0 %v2323
      %2461 = vmatpush.bf16.msra.mxu0 %v2322
      %2462 = vmatpush.bf16.msra.mxu0 %v2321
      %2463 = vmatpush.bf16.msra.mxu0 %v2320
      %2464 = vmatpush.bf16.msra.mxu0 %v2319
      %2465 = vmatpush.bf16.msra.mxu0 %v2318
      %2466 = vmatpush.bf16.msra.mxu0 %v2317
      %2467 = vmatpush.bf16.msra.mxu0 %v2316
      %2468 = vmatmul.bf16.gmra.mxu0 %v1848
      %v2469 = vpop.f32.mrf.mxu0
      %v2470 = vadd.f32 0.0, %v2469
      %v2471 = vpop.f32.mrf.mxu0
      %v2472 = vadd.f32 0.0, %v2471
      %2473 = vmatmul.bf16.gmra.mxu0 %v1857
      %v2474 = vpop.f32.mrf.mxu0
      %v2475 = vadd.f32 0.0, %v2474
      %v2476 = vpop.f32.mrf.mxu0
      %v2477 = vadd.f32 0.0, %v2476
      %2478 = vmatmul.bf16.gmra.mxu0 %v1866
      %v2479 = vpop.f32.mrf.mxu0
      %v2480 = vadd.f32 0.0, %v2479
      %v2481 = vpop.f32.mrf.mxu0
      %v2482 = vadd.f32 0.0, %v2481
      %2483 = vmatmul.bf16.gmra.mxu0 %v1875
      %v2484 = vpop.f32.mrf.mxu0
      %v2485 = vadd.f32 0.0, %v2484
      %v2486 = vpop.f32.mrf.mxu0
      %v2487 = vadd.f32 0.0, %v2486
      %2488 = vdwg.mxu0
      %2489 = vmatpush.bf16.msra.mxu0 %v2331
      %2490 = vmatpush.bf16.msra.mxu0 %v2330
      %2491 = vmatpush.bf16.msra.mxu0 %v2329
      %2492 = vmatpush.bf16.msra.mxu0 %v2328
      %2493 = vmatpush.bf16.msra.mxu0 %v2327
      %2494 = vmatpush.bf16.msra.mxu0 %v2326
      %2495 = vmatpush.bf16.msra.mxu0 %v2325
      %2496 = vmatpush.bf16.msra.mxu0 %v2324
      %2497 = vmatmul.bf16.gmra.mxu0 %v1849
      %v2498 = vpop.f32.mrf.mxu0
      %v2499 = vadd.f32 %v2470, %v2498
      %v2500 = vpop.f32.mrf.mxu0
      %v2501 = vadd.f32 %v2472, %v2500
      %2502 = vmatmul.bf16.gmra.mxu0 %v1858
      %v2503 = vpop.f32.mrf.mxu0
      %v2504 = vadd.f32 %v2475, %v2503
      %v2505 = vpop.f32.mrf.mxu0
      %v2506 = vadd.f32 %v2477, %v2505
      %2507 = vmatmul.bf16.gmra.mxu0 %v1867
      %v2508 = vpop.f32.mrf.mxu0
      %v2509 = vadd.f32 %v2480, %v2508
      %v2510 = vpop.f32.mrf.mxu0
      %v2511 = vadd.f32 %v2482, %v2510
      %2512 = vmatmul.bf16.gmra.mxu0 %v1876
      %v2513 = vpop.f32.mrf.mxu0
      %v2514 = vadd.f32 %v2485, %v2513
      %v2515 = vpop.f32.mrf.mxu0
      %v2516 = vadd.f32 %v2487, %v2515
      %2517 = vdwg.mxu0
      %2518 = vmatpush.bf16.msra.mxu0 %v2339
      %2519 = vmatpush.bf16.msra.mxu0 %v2338
      %2520 = vmatpush.bf16.msra.mxu0 %v2337
      %2521 = vmatpush.bf16.msra.mxu0 %v2336
      %2522 = vmatpush.bf16.msra.mxu0 %v2335
      %2523 = vmatpush.bf16.msra.mxu0 %v2334
      %2524 = vmatpush.bf16.msra.mxu0 %v2333
      %2525 = vmatpush.bf16.msra.mxu0 %v2332
      %2526 = vmatmul.bf16.gmra.mxu0 %v1850
      %v2527 = vpop.f32.mrf.mxu0
      %v2528 = vadd.f32 %v2499, %v2527
      %v2529 = vpop.f32.mrf.mxu0
      %v2530 = vadd.f32 %v2501, %v2529
      %2531 = vmatmul.bf16.gmra.mxu0 %v1859
      %v2532 = vpop.f32.mrf.mxu0
      %v2533 = vadd.f32 %v2504, %v2532
      %v2534 = vpop.f32.mrf.mxu0
      %v2535 = vadd.f32 %v2506, %v2534
      %2536 = vmatmul.bf16.gmra.mxu0 %v1868
      %v2537 = vpop.f32.mrf.mxu0
      %v2538 = vadd.f32 %v2509, %v2537
      %v2539 = vpop.f32.mrf.mxu0
      %v2540 = vadd.f32 %v2511, %v2539
      %2541 = vmatmul.bf16.gmra.mxu0 %v1877
      %v2542 = vpop.f32.mrf.mxu0
      %v2543 = vadd.f32 %v2514, %v2542
      %v2544 = vpop.f32.mrf.mxu0
      %v2545 = vadd.f32 %v2516, %v2544
      %2546 = vdwg.mxu0
      %2547 = vmatpush.bf16.msra.mxu0 %v2347
      %2548 = vmatpush.bf16.msra.mxu0 %v2346
      %2549 = vmatpush.bf16.msra.mxu0 %v2345
      %2550 = vmatpush.bf16.msra.mxu0 %v2344
      %2551 = vmatpush.bf16.msra.mxu0 %v2343
      %2552 = vmatpush.bf16.msra.mxu0 %v2342
      %2553 = vmatpush.bf16.msra.mxu0 %v2341
      %2554 = vmatpush.bf16.msra.mxu0 %v2340
      %2555 = vmatmul.bf16.gmra.mxu0 %v1851
      %v2556 = vpop.f32.mrf.mxu0
      %v2557 = vadd.f32 %v2528, %v2556
      %v2558 = vpop.f32.mrf.mxu0
      %v2559 = vadd.f32 %v2530, %v2558
      %2560 = vmatmul.bf16.gmra.mxu0 %v1860
      %v2561 = vpop.f32.mrf.mxu0
      %v2562 = vadd.f32 %v2533, %v2561
      %v2563 = vpop.f32.mrf.mxu0
      %v2564 = vadd.f32 %v2535, %v2563
      %2565 = vmatmul.bf16.gmra.mxu0 %v1869
      %v2566 = vpop.f32.mrf.mxu0
      %v2567 = vadd.f32 %v2538, %v2566
      %v2568 = vpop.f32.mrf.mxu0
      %v2569 = vadd.f32 %v2540, %v2568
      %2570 = vmatmul.bf16.gmra.mxu0 %v1878
      %v2571 = vpop.f32.mrf.mxu0
      %v2572 = vadd.f32 %v2543, %v2571
      %v2573 = vpop.f32.mrf.mxu0
      %v2574 = vadd.f32 %v2545, %v2573
      %2575 = vdwg.mxu0
      %2576 = vmatpush.bf16.msra.mxu0 %v2355
      %2577 = vmatpush.bf16.msra.mxu0 %v2354
      %2578 = vmatpush.bf16.msra.mxu0 %v2353
      %2579 = vmatpush.bf16.msra.mxu0 %v2352
      %2580 = vmatpush.bf16.msra.mxu0 %v2351
      %2581 = vmatpush.bf16.msra.mxu0 %v2350
      %2582 = vmatpush.bf16.msra.mxu0 %v2349
      %2583 = vmatpush.bf16.msra.mxu0 %v2348
      %2584 = vmatmul.bf16.gmra.mxu0 %v1852
      %v2585 = vpop.f32.mrf.mxu0
      %v2586 = vadd.f32 %v2557, %v2585
      %v2587 = vpop.f32.mrf.mxu0
      %v2588 = vadd.f32 %v2559, %v2587
      %2589 = vmatmul.bf16.gmra.mxu0 %v1861
      %v2590 = vpop.f32.mrf.mxu0
      %v2591 = vadd.f32 %v2562, %v2590
      %v2592 = vpop.f32.mrf.mxu0
      %v2593 = vadd.f32 %v2564, %v2592
      %2594 = vmatmul.bf16.gmra.mxu0 %v1870
      %v2595 = vpop.f32.mrf.mxu0
      %v2596 = vadd.f32 %v2567, %v2595
      %v2597 = vpop.f32.mrf.mxu0
      %v2598 = vadd.f32 %v2569, %v2597
      %2599 = vmatmul.bf16.gmra.mxu0 %v1879
      %v2600 = vpop.f32.mrf.mxu0
      %v2601 = vadd.f32 %v2572, %v2600
      %v2602 = vpop.f32.mrf.mxu0
      %v2603 = vadd.f32 %v2574, %v2602
      %2604 = vdwg.mxu0
      %2605 = vmatpush.bf16.msra.mxu0 %v2363
      %2606 = vmatpush.bf16.msra.mxu0 %v2362
      %2607 = vmatpush.bf16.msra.mxu0 %v2361
      %2608 = vmatpush.bf16.msra.mxu0 %v2360
      %2609 = vmatpush.bf16.msra.mxu0 %v2359
      %2610 = vmatpush.bf16.msra.mxu0 %v2358
      %2611 = vmatpush.bf16.msra.mxu0 %v2357
      %2612 = vmatpush.bf16.msra.mxu0 %v2356
      %2613 = vmatmul.bf16.gmra.mxu0 %v1853
      %v2614 = vpop.f32.mrf.mxu0
      %v2615 = vadd.f32 %v2586, %v2614
      %v2616 = vpop.f32.mrf.mxu0
      %v2617 = vadd.f32 %v2588, %v2616
      %2618 = vmatmul.bf16.gmra.mxu0 %v1862
      %v2619 = vpop.f32.mrf.mxu0
      %v2620 = vadd.f32 %v2591, %v2619
      %v2621 = vpop.f32.mrf.mxu0
      %v2622 = vadd.f32 %v2593, %v2621
      %2623 = vmatmul.bf16.gmra.mxu0 %v1871
      %v2624 = vpop.f32.mrf.mxu0
      %v2625 = vadd.f32 %v2596, %v2624
      %v2626 = vpop.f32.mrf.mxu0
      %v2627 = vadd.f32 %v2598, %v2626
      %2628 = vmatmul.bf16.gmra.mxu0 %v1880
      %v2629 = vpop.f32.mrf.mxu0
      %v2630 = vadd.f32 %v2601, %v2629
      %v2631 = vpop.f32.mrf.mxu0
      %v2632 = vadd.f32 %v2603, %v2631
      %2633 = vdwg.mxu0
      %2634 = vmatpush.bf16.msra.mxu0 %v2371
      %2635 = vmatpush.bf16.msra.mxu0 %v2370
      %2636 = vmatpush.bf16.msra.mxu0 %v2369
      %2637 = vmatpush.bf16.msra.mxu0 %v2368
      %2638 = vmatpush.bf16.msra.mxu0 %v2367
      %2639 = vmatpush.bf16.msra.mxu0 %v2366
      %2640 = vmatpush.bf16.msra.mxu0 %v2365
      %2641 = vmatpush.bf16.msra.mxu0 %v2364
      %2642 = vmatmul.bf16.gmra.mxu0 %v1854
      %v2643 = vpop.f32.mrf.mxu0
      %v2644 = vadd.f32 %v2615, %v2643
      %v2645 = vpop.f32.mrf.mxu0
      %v2646 = vadd.f32 %v2617, %v2645
      %2647 = vmatmul.bf16.gmra.mxu0 %v1863
      %v2648 = vpop.f32.mrf.mxu0
      %v2649 = vadd.f32 %v2620, %v2648
      %v2650 = vpop.f32.mrf.mxu0
      %v2651 = vadd.f32 %v2622, %v2650
      %2652 = vmatmul.bf16.gmra.mxu0 %v1872
      %v2653 = vpop.f32.mrf.mxu0
      %v2654 = vadd.f32 %v2625, %v2653
      %v2655 = vpop.f32.mrf.mxu0
      %v2656 = vadd.f32 %v2627, %v2655
      %2657 = vmatmul.bf16.gmra.mxu0 %v1881
      %v2658 = vpop.f32.mrf.mxu0
      %v2659 = vadd.f32 %v2630, %v2658
      %v2660 = vpop.f32.mrf.mxu0
      %v2661 = vadd.f32 %v2632, %v2660
      %2662 = vdwg.mxu0
      %2663 = vmatpush.bf16.msra.mxu0 %v2379
      %2664 = vmatpush.bf16.msra.mxu0 %v2378
      %2665 = vmatpush.bf16.msra.mxu0 %v2377
      %2666 = vmatpush.bf16.msra.mxu0 %v2376
      %2667 = vmatpush.bf16.msra.mxu0 %v2375
      %2668 = vmatpush.bf16.msra.mxu0 %v2374
      %2669 = vmatpush.bf16.msra.mxu0 %v2373
      %2670 = vmatpush.bf16.msra.mxu0 %v2372
      %2671 = vmatmul.bf16.gmra.mxu0 %v1855
      %v2672 = vpop.f32.mrf.mxu0
      %v2673 = vadd.f32 %v2644, %v2672
      %v2674 = vpop.f32.mrf.mxu0
      %v2675 = vadd.f32 %v2646, %v2674
      %2676 = vmatmul.bf16.gmra.mxu0 %v1864
      %v2677 = vpop.f32.mrf.mxu0
      %v2678 = vadd.f32 %v2649, %v2677
      %v2679 = vpop.f32.mrf.mxu0
      %v2680 = vadd.f32 %v2651, %v2679
      %2681 = vmatmul.bf16.gmra.mxu0 %v1873
      %v2682 = vpop.f32.mrf.mxu0
      %v2683 = vadd.f32 %v2654, %v2682
      %v2684 = vpop.f32.mrf.mxu0
      %v2685 = vadd.f32 %v2656, %v2684
      %2686 = vmatmul.bf16.gmra.mxu0 %v1882
      %v2687 = vpop.f32.mrf.mxu0
      %v2688 = vadd.f32 %v2659, %v2687
      %v2689 = vpop.f32.mrf.mxu0
      %v2690 = vadd.f32 %v2661, %v2689
      %2691 = vdwg.mxu0
      %2692 = vmatpush.bf16.msra.mxu0 %v2387
      %2693 = vmatpush.bf16.msra.mxu0 %v2386
      %2694 = vmatpush.bf16.msra.mxu0 %v2385
      %2695 = vmatpush.bf16.msra.mxu0 %v2384
      %2696 = vmatpush.bf16.msra.mxu0 %v2383
      %2697 = vmatpush.bf16.msra.mxu0 %v2382
      %2698 = vmatpush.bf16.msra.mxu0 %v2381
      %2699 = vmatpush.bf16.msra.mxu0 %v2380
      %2700 = vmatmul.bf16.gmra.mxu0 %v1856
      %v2701 = vpop.f32.mrf.mxu0
      %v2702 = vadd.f32 %v2673, %v2701
      %v2703 = vpop.f32.mrf.mxu0
      %v2704 = vadd.f32 %v2675, %v2703
      %2705 = vmatmul.bf16.gmra.mxu0 %v1865
      %v2706 = vpop.f32.mrf.mxu0
      %v2707 = vadd.f32 %v2678, %v2706
      %v2708 = vpop.f32.mrf.mxu0
      %v2709 = vadd.f32 %v2680, %v2708
      %2710 = vmatmul.bf16.gmra.mxu0 %v1874
      %v2711 = vpop.f32.mrf.mxu0
      %v2712 = vadd.f32 %v2683, %v2711
      %v2713 = vpop.f32.mrf.mxu0
      %v2714 = vadd.f32 %v2685, %v2713
      %2715 = vmatmul.bf16.gmra.mxu0 %v1883
      %v2716 = vpop.f32.mrf.mxu0
      %v2717 = vadd.f32 %v2688, %v2716
      %v2718 = vpop.f32.mrf.mxu0
      %v2719 = vadd.f32 %v2690, %v2718
      %2720 = vdwg.mxu0
      %v2721 = vld [vmem:[%s5 + $0x1] sm:$0x1]
      %v2722 = vld [vmem:[%s6 + $0x1] sm:$0x1]
      %v2723 = vperm.slane %v2721, 0
      %v2724 = vmul.f32 %v2702, %v2723
      %v2725 = vmul.f32 %v2704, %v2723
      %v2726 = vmul.f32 %v2707, %v2723
      %v2727 = vmul.f32 %v2709, %v2723
      %v2728 = vmul.f32 %v2712, %v2723
      %v2729 = vmul.f32 %v2714, %v2723
      %v2730 = vmul.f32 %v2717, %v2723
      %v2731 = vmul.f32 %v2719, %v2723
      %v2732 = vperm.slane %v2722, 0
      %v2733 = vadd.f32 %v2724, %v2732
      %v2734 = vadd.f32 %v2725, %v2732
      %v2735 = vadd.f32 %v2726, %v2732
      %v2736 = vadd.f32 %v2727, %v2732
      %v2737 = vadd.f32 %v2728, %v2732
      %v2738 = vadd.f32 %v2729, %v2732
      %v2739 = vadd.f32 %v2730, %v2732
      %v2740 = vadd.f32 %v2731, %v2732
      %v2741 = vmax.f32 %v2733, 0.0
      %v2742 = vmax.f32 %v2734, 0.0
      %v2743 = vmax.f32 %v2735, 0.0
      %v2744 = vmax.f32 %v2736, 0.0
      %v2745 = vmax.f32 %v2737, 0.0
      %v2746 = vmax.f32 %v2738, 0.0
      %v2747 = vmax.f32 %v2739, 0.0
      %v2748 = vmax.f32 %v2740, 0.0
      %v2757 = vrot.slane %v2741, 2
      %v2758 = vrot.slane %v2741, 4
      %v2759 = vrot.slane %v2741, 6
      %v2760 = vrot.slane %v2742, 2
      %v2761 = vrot.slane %v2742, 4
      %v2762 = vrot.slane %v2742, 6
      %v2763 = vrot.slane %v2743, 2
      %v2764 = vrot.slane %v2743, 4
      %v2765 = vrot.slane %v2743, 6
      %v2766 = vrot.slane %v2744, 2
      %v2767 = vrot.slane %v2744, 4
      %v2768 = vrot.slane %v2744, 6
      %v2769 = vrot.slane %v2745, 2
      %v2770 = vrot.slane %v2745, 4
      %v2771 = vrot.slane %v2745, 6
      %v2772 = vrot.slane %v2746, 2
      %v2773 = vrot.slane %v2746, 4
      %v2774 = vrot.slane %v2746, 6
      %v2775 = vrot.slane %v2747, 2
      %v2776 = vrot.slane %v2747, 4
      %v2777 = vrot.slane %v2747, 6
      %v2778 = vrot.slane %v2748, 2
      %v2779 = vrot.slane %v2748, 4
      %v2780 = vrot.slane %v2748, 6
      %vm2805 = vcmask 1041408
      %v2806 = vsel %vm2805, %v2741, -inf
      %v2807 = vrot.slane %v2806, 4
      %v2808 = vmax.f32 %v2806, %v2807
      %v2809 = vrot.slane %v2808, 2
      %v2810 = vmax.f32 %v2808, %v2809
      %v2811 = vrot.slane %v2810, 1
      %v2812 = vmax.f32 %v2810, %v2811
      %v2813 = vsel %vm2805, %v2757, -inf
      %v2814 = vrot.slane %v2813, 4
      %v2815 = vmax.f32 %v2813, %v2814
      %v2816 = vrot.slane %v2815, 2
      %v2817 = vmax.f32 %v2815, %v2816
      %v2818 = vrot.slane %v2817, 1
      %v2819 = vmax.f32 %v2817, %v2818
      %v2820 = vsel %vm2805, %v2758, -inf
      %v2821 = vrot.slane %v2820, 4
      %v2822 = vmax.f32 %v2820, %v2821
      %v2823 = vrot.slane %v2822, 2
      %v2824 = vmax.f32 %v2822, %v2823
      %v2825 = vrot.slane %v2824, 1
      %v2826 = vmax.f32 %v2824, %v2825
      %v2827 = vsel %vm2805, %v2759, -inf
      %v2828 = vrot.slane %v2827, 4
      %v2829 = vmax.f32 %v2827, %v2828
      %v2830 = vrot.slane %v2829, 2
      %v2831 = vmax.f32 %v2829, %v2830
      %v2832 = vrot.slane %v2831, 1
      %v2833 = vmax.f32 %v2831, %v2832
      %v2834 = vsel %vm2805, %v2742, -inf
      %v2835 = vrot.slane %v2834, 4
      %v2836 = vmax.f32 %v2834, %v2835
      %v2837 = vrot.slane %v2836, 2
      %v2838 = vmax.f32 %v2836, %v2837
      %v2839 = vrot.slane %v2838, 1
      %v2840 = vmax.f32 %v2838, %v2839
      %v2841 = vsel %vm2805, %v2760, -inf
      %v2842 = vrot.slane %v2841, 4
      %v2843 = vmax.f32 %v2841, %v2842
      %v2844 = vrot.slane %v2843, 2
      %v2845 = vmax.f32 %v2843, %v2844
      %v2846 = vrot.slane %v2845, 1
      %v2847 = vmax.f32 %v2845, %v2846
      %v2848 = vsel %vm2805, %v2761, -inf
      %v2849 = vrot.slane %v2848, 4
      %v2850 = vmax.f32 %v2848, %v2849
      %v2851 = vrot.slane %v2850, 2
      %v2852 = vmax.f32 %v2850, %v2851
      %v2853 = vrot.slane %v2852, 1
      %v2854 = vmax.f32 %v2852, %v2853
      %v2855 = vsel %vm2805, %v2762, -inf
      %v2856 = vrot.slane %v2855, 4
      %v2857 = vmax.f32 %v2855, %v2856
      %v2858 = vrot.slane %v2857, 2
      %v2859 = vmax.f32 %v2857, %v2858
      %v2860 = vrot.slane %v2859, 1
      %v2861 = vmax.f32 %v2859, %v2860
      %v2862 = vsel %vm2805, %v2743, -inf
      %v2863 = vrot.slane %v2862, 4
      %v2864 = vmax.f32 %v2862, %v2863
      %v2865 = vrot.slane %v2864, 2
      %v2866 = vmax.f32 %v2864, %v2865
      %v2867 = vrot.slane %v2866, 1
      %v2868 = vmax.f32 %v2866, %v2867
      %v2869 = vsel %vm2805, %v2763, -inf
      %v2870 = vrot.slane %v2869, 4
      %v2871 = vmax.f32 %v2869, %v2870
      %v2872 = vrot.slane %v2871, 2
      %v2873 = vmax.f32 %v2871, %v2872
      %v2874 = vrot.slane %v2873, 1
      %v2875 = vmax.f32 %v2873, %v2874
      %v2876 = vsel %vm2805, %v2764, -inf
      %v2877 = vrot.slane %v2876, 4
      %v2878 = vmax.f32 %v2876, %v2877
      %v2879 = vrot.slane %v2878, 2
      %v2880 = vmax.f32 %v2878, %v2879
      %v2881 = vrot.slane %v2880, 1
      %v2882 = vmax.f32 %v2880, %v2881
      %v2883 = vsel %vm2805, %v2765, -inf
      %v2884 = vrot.slane %v2883, 4
      %v2885 = vmax.f32 %v2883, %v2884
      %v2886 = vrot.slane %v2885, 2
      %v2887 = vmax.f32 %v2885, %v2886
      %v2888 = vrot.slane %v2887, 1
      %v2889 = vmax.f32 %v2887, %v2888
      %v2890 = vsel %vm2805, %v2744, -inf
      %v2891 = vrot.slane %v2890, 4
      %v2892 = vmax.f32 %v2890, %v2891
      %v2893 = vrot.slane %v2892, 2
      %v2894 = vmax.f32 %v2892, %v2893
      %v2895 = vrot.slane %v2894, 1
      %v2896 = vmax.f32 %v2894, %v2895
      %v2897 = vsel %vm2805, %v2766, -inf
      %v2898 = vrot.slane %v2897, 4
      %v2899 = vmax.f32 %v2897, %v2898
      %v2900 = vrot.slane %v2899, 2
      %v2901 = vmax.f32 %v2899, %v2900
      %v2902 = vrot.slane %v2901, 1
      %v2903 = vmax.f32 %v2901, %v2902
      %v2904 = vsel %vm2805, %v2767, -inf
      %v2905 = vrot.slane %v2904, 4
      %v2906 = vmax.f32 %v2904, %v2905
      %v2907 = vrot.slane %v2906, 2
      %v2908 = vmax.f32 %v2906, %v2907
      %v2909 = vrot.slane %v2908, 1
      %v2910 = vmax.f32 %v2908, %v2909
      %v2911 = vsel %vm2805, %v2768, -inf
      %v2912 = vrot.slane %v2911, 4
      %v2913 = vmax.f32 %v2911, %v2912
      %v2914 = vrot.slane %v2913, 2
      %v2915 = vmax.f32 %v2913, %v2914
      %v2916 = vrot.slane %v2915, 1
      %v2917 = vmax.f32 %v2915, %v2916
      %v2918 = vsel %vm2805, %v2745, -inf
      %v2919 = vrot.slane %v2918, 4
      %v2920 = vmax.f32 %v2918, %v2919
      %v2921 = vrot.slane %v2920, 2
      %v2922 = vmax.f32 %v2920, %v2921
      %v2923 = vrot.slane %v2922, 1
      %v2924 = vmax.f32 %v2922, %v2923
      %v2925 = vsel %vm2805, %v2769, -inf
      %v2926 = vrot.slane %v2925, 4
      %v2927 = vmax.f32 %v2925, %v2926
      %v2928 = vrot.slane %v2927, 2
      %v2929 = vmax.f32 %v2927, %v2928
      %v2930 = vrot.slane %v2929, 1
      %v2931 = vmax.f32 %v2929, %v2930
      %v2932 = vsel %vm2805, %v2770, -inf
      %v2933 = vrot.slane %v2932, 4
      %v2934 = vmax.f32 %v2932, %v2933
      %v2935 = vrot.slane %v2934, 2
      %v2936 = vmax.f32 %v2934, %v2935
      %v2937 = vrot.slane %v2936, 1
      %v2938 = vmax.f32 %v2936, %v2937
      %v2939 = vsel %vm2805, %v2771, -inf
      %v2940 = vrot.slane %v2939, 4
      %v2941 = vmax.f32 %v2939, %v2940
      %v2942 = vrot.slane %v2941, 2
      %v2943 = vmax.f32 %v2941, %v2942
      %v2944 = vrot.slane %v2943, 1
      %v2945 = vmax.f32 %v2943, %v2944
      %v2946 = vsel %vm2805, %v2746, -inf
      %v2947 = vrot.slane %v2946, 4
      %v2948 = vmax.f32 %v2946, %v2947
      %v2949 = vrot.slane %v2948, 2
      %v2950 = vmax.f32 %v2948, %v2949
      %v2951 = vrot.slane %v2950, 1
      %v2952 = vmax.f32 %v2950, %v2951
      %v2953 = vsel %vm2805, %v2772, -inf
      %v2954 = vrot.slane %v2953, 4
      %v2955 = vmax.f32 %v2953, %v2954
      %v2956 = vrot.slane %v2955, 2
      %v2957 = vmax.f32 %v2955, %v2956
      %v2958 = vrot.slane %v2957, 1
      %v2959 = vmax.f32 %v2957, %v2958
      %v2960 = vsel %vm2805, %v2773, -inf
      %v2961 = vrot.slane %v2960, 4
      %v2962 = vmax.f32 %v2960, %v2961
      %v2963 = vrot.slane %v2962, 2
      %v2964 = vmax.f32 %v2962, %v2963
      %v2965 = vrot.slane %v2964, 1
      %v2966 = vmax.f32 %v2964, %v2965
      %v2967 = vsel %vm2805, %v2774, -inf
      %v2968 = vrot.slane %v2967, 4
      %v2969 = vmax.f32 %v2967, %v2968
      %v2970 = vrot.slane %v2969, 2
      %v2971 = vmax.f32 %v2969, %v2970
      %v2972 = vrot.slane %v2971, 1
      %v2973 = vmax.f32 %v2971, %v2972
      %v2974 = vsel %vm2805, %v2747, -inf
      %v2975 = vrot.slane %v2974, 4
      %v2976 = vmax.f32 %v2974, %v2975
      %v2977 = vrot.slane %v2976, 2
      %v2978 = vmax.f32 %v2976, %v2977
      %v2979 = vrot.slane %v2978, 1
      %v2980 = vmax.f32 %v2978, %v2979
      %v2981 = vsel %vm2805, %v2775, -inf
      %v2982 = vrot.slane %v2981, 4
      %v2983 = vmax.f32 %v2981, %v2982
      %v2984 = vrot.slane %v2983, 2
      %v2985 = vmax.f32 %v2983, %v2984
      %v2986 = vrot.slane %v2985, 1
      %v2987 = vmax.f32 %v2985, %v2986
      %v2988 = vsel %vm2805, %v2776, -inf
      %v2989 = vrot.slane %v2988, 4
      %v2990 = vmax.f32 %v2988, %v2989
      %v2991 = vrot.slane %v2990, 2
      %v2992 = vmax.f32 %v2990, %v2991
      %v2993 = vrot.slane %v2992, 1
      %v2994 = vmax.f32 %v2992, %v2993
      %v2995 = vsel %vm2805, %v2777, -inf
      %v2996 = vrot.slane %v2995, 4
      %v2997 = vmax.f32 %v2995, %v2996
      %v2998 = vrot.slane %v2997, 2
      %v2999 = vmax.f32 %v2997, %v2998
      %v3000 = vrot.slane %v2999, 1
      %v3001 = vmax.f32 %v2999, %v3000
      %v3002 = vsel %vm2805, %v2748, -inf
      %v3003 = vrot.slane %v3002, 4
      %v3004 = vmax.f32 %v3002, %v3003
      %v3005 = vrot.slane %v3004, 2
      %v3006 = vmax.f32 %v3004, %v3005
      %v3007 = vrot.slane %v3006, 1
      %v3008 = vmax.f32 %v3006, %v3007
      %v3009 = vsel %vm2805, %v2778, -inf
      %v3010 = vrot.slane %v3009, 4
      %v3011 = vmax.f32 %v3009, %v3010
      %v3012 = vrot.slane %v3011, 2
      %v3013 = vmax.f32 %v3011, %v3012
      %v3014 = vrot.slane %v3013, 1
      %v3015 = vmax.f32 %v3013, %v3014
      %v3016 = vsel %vm2805, %v2779, -inf
      %v3017 = vrot.slane %v3016, 4
      %v3018 = vmax.f32 %v3016, %v3017
      %v3019 = vrot.slane %v3018, 2
      %v3020 = vmax.f32 %v3018, %v3019
      %v3021 = vrot.slane %v3020, 1
      %v3022 = vmax.f32 %v3020, %v3021
      %v3023 = vsel %vm2805, %v2780, -inf
      %v3024 = vrot.slane %v3023, 4
      %v3025 = vmax.f32 %v3023, %v3024
      %v3026 = vrot.slane %v3025, 2
      %v3027 = vmax.f32 %v3025, %v3026
      %v3028 = vrot.slane %v3027, 1
      %v3029 = vmax.f32 %v3027, %v3028
      %v3030 = vmax.f32 %v2812, %v2840
      %v3031 = vmax.f32 %v2819, %v2847
      %v3032 = vmax.f32 %v2826, %v2854
      %v3033 = vmax.f32 %v2833, %v2861
      %v3034 = vmax.f32 %v2868, %v2896
      %v3035 = vmax.f32 %v2875, %v2903
      %v3036 = vmax.f32 %v2882, %v2910
      %v3037 = vmax.f32 %v2889, %v2917
      %v3038 = vmax.f32 %v2924, %v2952
      %v3039 = vmax.f32 %v2931, %v2959
      %v3040 = vmax.f32 %v2938, %v2966
      %v3041 = vmax.f32 %v2945, %v2973
      %v3042 = vmax.f32 %v2980, %v3008
      %v3043 = vmax.f32 %v2987, %v3015
      %v3044 = vmax.f32 %v2994, %v3022
      %v3045 = vmax.f32 %v3001, %v3029
      %3046 = vst [vmem:[#allocation3] sm:$0x3f] 0.0
      %3047 = vst [vmem:[#allocation3 + $0x8] sm:$0x3f] 0.0
      %3048 = vst [vmem:[#allocation3 + $0x10] sm:$0x3f] 0.0
      %3049 = vst [vmem:[#allocation3 + $0x18] sm:$0x3f] 0.0
      %3050 = vst [vmem:[#allocation3 + $0x20] sm:$0x3f] 0.0
      %3051 = vst [vmem:[#allocation3 + $0x28] sm:$0x3f] 0.0
      %vm3068 = vcmask 1041409
      %v3069 = vsel %vm3068, %v3031, %v3030
      %vm3070 = vcmask 1042434
      %v3071 = vsel %vm3070, %v3032, %v3069
      %vm3072 = vcmask 1043459
      %v3073 = vsel %vm3072, %v3033, %v3071
      %v3074 = vsel %vm3068, %v3035, %v3034
      %v3075 = vsel %vm3070, %v3036, %v3074
      %v3076 = vsel %vm3072, %v3037, %v3075
      %v3077 = vsel %vm3068, %v3039, %v3038
      %v3078 = vsel %vm3070, %v3040, %v3077
      %v3079 = vsel %vm3072, %v3041, %v3078
      %v3080 = vsel %vm3068, %v3043, %v3042
      %v3081 = vsel %vm3070, %v3044, %v3080
      %v3082 = vsel %vm3072, %v3045, %v3081
      %s3087 = scalar_lea.vmem [#allocation3], 8
      %3088 = vst [vmem:[%s3087 + $0x1] sm:$0xf] %v3073
      %3089 = vst [vmem:[%s3087 + $0x9] sm:$0xf] %v3076
      %3090 = vst [vmem:[%s3087 + $0x11] sm:$0xf] %v3079
      %3091 = vst [vmem:[%s3087 + $0x19] sm:$0xf] %v3082
      %v3092 = vld [vmem:[#allocation3] sm:$0x1]
      %v3093 = vld [vmem:[#allocation3 + $0x1] sm:$0x1]
      %v3094 = vld [vmem:[#allocation3 + $0x2] sm:$0x1]
      %v3095 = vld [vmem:[%s3087] sm:$0x1]
      %v3096 = vld [vmem:[%s3087 + $0x1] sm:$0x1]
      %v3097 = vld [vmem:[%s3087 + $0x2] sm:$0x1]
      %s3098 = scalar_lea.vmem [#allocation3], 16
      %v3099 = vld [vmem:[%s3098] sm:$0x1]
      %v3100 = vld [vmem:[%s3098 + $0x1] sm:$0x1]
      %v3101 = vld [vmem:[%s3098 + $0x2] sm:$0x1]
      %v3102 = vld [vmem:[#allocation3 + $0x3] sm:$0x1]
      %v3103 = vld [vmem:[#allocation3 + $0x4] sm:$0x1]
      %v3104 = vld [vmem:[%s3087 + $0x3] sm:$0x1]
      %v3105 = vld [vmem:[%s3087 + $0x4] sm:$0x1]
      %v3106 = vld [vmem:[%s3098 + $0x3] sm:$0x1]
      %v3107 = vld [vmem:[%s3098 + $0x4] sm:$0x1]
      %s3108 = scalar_lea.vmem [#allocation3], 24
      %v3109 = vld [vmem:[%s3108] sm:$0x1]
      %v3110 = vld [vmem:[%s3108 + $0x1] sm:$0x1]
      %v3111 = vld [vmem:[%s3108 + $0x2] sm:$0x1]
      %s3112 = scalar_lea.vmem [#allocation3], 32
      %v3113 = vld [vmem:[%s3112] sm:$0x1]
      %v3114 = vld [vmem:[%s3112 + $0x1] sm:$0x1]
      %v3115 = vld [vmem:[%s3112 + $0x2] sm:$0x1]
      %v3116 = vld [vmem:[%s3108 + $0x3] sm:$0x1]
      %v3117 = vld [vmem:[%s3108 + $0x4] sm:$0x1]
      %v3118 = vld [vmem:[%s3112 + $0x3] sm:$0x1]
      %v3119 = vld [vmem:[%s3112 + $0x4] sm:$0x1]
      %v3129 = vrot.slane %v3094, 7
      %v3130 = vrot.slane %v3102, 7
      %v3131 = vrot.slane %v3103, 7
      %v3132 = vrot.slane %v3097, 7
      %v3133 = vrot.slane %v3104, 7
      %v3134 = vrot.slane %v3105, 7
      %v3135 = vrot.slane %v3101, 7
      %v3136 = vrot.slane %v3106, 7
      %v3137 = vrot.slane %v3107, 7
      %v3155 = vrot.slane %v3099, 6
      %v3156 = vrot.slane %v3100, 6
      %v3157 = vrot.slane %v3101, 6
      %v3158 = vrot.slane %v3109, 6
      %v3159 = vrot.slane %v3110, 6
      %v3160 = vrot.slane %v3111, 6
      %v3161 = vrot.slane %v3113, 6
      %v3162 = vrot.slane %v3114, 6
      %v3163 = vrot.slane %v3115, 6
      %v3177 = vrot.slane %v3101, 5
      %v3178 = vrot.slane %v3106, 5
      %v3179 = vrot.slane %v3107, 5
      %v3180 = vrot.slane %v3111, 5
      %v3181 = vrot.slane %v3116, 5
      %v3182 = vrot.slane %v3117, 5
      %v3183 = vrot.slane %v3115, 5
      %v3184 = vrot.slane %v3118, 5
      %v3185 = vrot.slane %v3119, 5
      %vm3195 = vcmask 1040384
      %v3196 = vsel %vm3195, %v3092, %v3129
      %v3197 = vsel %vm3195, %v3093, %v3130
      %v3198 = vsel %vm3195, %v3094, %v3131
      %v3199 = vsel %vm3195, %v3095, %v3132
      %v3200 = vsel %vm3195, %v3096, %v3133
      %v3201 = vsel %vm3195, %v3097, %v3134
      %v3202 = vsel %vm3195, %v3099, %v3135
      %v3203 = vsel %vm3195, %v3100, %v3136
      %v3204 = vsel %vm3195, %v3101, %v3137
      %v3205 = vsel %vm2805, %v3196, %v3155
      %v3206 = vsel %vm2805, %v3197, %v3156
      %v3207 = vsel %vm2805, %v3198, %v3157
      %v3208 = vsel %vm2805, %v3199, %v3158
      %v3209 = vsel %vm2805, %v3200, %v3159
      %v3210 = vsel %vm2805, %v3201, %v3160
      %v3211 = vsel %vm2805, %v3202, %v3161
      %v3212 = vsel %vm2805, %v3203, %v3162
      %v3213 = vsel %vm2805, %v3204, %v3163
      %vm3214 = vcmask 1042432
      %v3215 = vsel %vm3214, %v3205, %v3177
      %v3216 = vsel %vm3214, %v3206, %v3178
      %v3217 = vsel %vm3214, %v3207, %v3179
      %v3218 = vsel %vm3214, %v3208, %v3180
      %v3219 = vsel %vm3214, %v3209, %v3181
      %v3220 = vsel %vm3214, %v3210, %v3182
      %v3221 = vsel %vm3214, %v3211, %v3183
      %v3222 = vsel %vm3214, %v3212, %v3184
      %v3223 = vsel %vm3214, %v3213, %v3185
      %v3224 = vpack.c.bf16 %v3215, %v3215
      %v3225 = vpack.c.bf16 %v3216, %v3216
      %v3226 = vpack.c.bf16 %v3217, %v3217
      %v3227 = vpack.c.bf16 %v3218, %v3218
      %v3228 = vpack.c.bf16 %v3219, %v3219
      %v3229 = vpack.c.bf16 %v3220, %v3220
      %v3230 = vpack.c.bf16 %v3221, %v3221
      %v3231 = vpack.c.bf16 %v3222, %v3222
      %v3232 = vpack.c.bf16 %v3223, %v3223
      %v3233 = vld [vmem:[%s3] sm:$0xf]
      %v3234 = vld [vmem:[%s3 + $0x4] sm:$0xf]
      %v3235 = vld [vmem:[%s3 + $0x8] sm:$0xf]
      %v3236 = vld [vmem:[%s3 + $0xc] sm:$0xf]
      %v3237 = vld [vmem:[%s3 + $0x10] sm:$0xf]
      %v3238 = vld [vmem:[%s3 + $0x14] sm:$0xf]
      %v3239 = vld [vmem:[%s3 + $0x18] sm:$0xf]
      %v3240 = vld [vmem:[%s3 + $0x1c] sm:$0xf]
      %v3241 = vld [vmem:[%s3 + $0x20] sm:$0xf]
      %v3242 = vld [vmem:[%s3 + $0x24] sm:$0xf]
      %v3243 = vld [vmem:[%s3 + $0x28] sm:$0xf]
      %v3244 = vld [vmem:[%s3 + $0x2c] sm:$0xf]
      %v3245 = vld [vmem:[%s3 + $0x30] sm:$0xf]
      %v3246 = vld [vmem:[%s3 + $0x34] sm:$0xf]
      %v3247 = vld [vmem:[%s3 + $0x38] sm:$0xf]
      %v3248 = vld [vmem:[%s3 + $0x3c] sm:$0xf]
      %v3249 = vld [vmem:[%s3 + $0x40] sm:$0xf]
      %v3250 = vld [vmem:[%s3 + $0x44] sm:$0xf]
      %v3251 = vld [vmem:[%s3 + $0x48] sm:$0xf]
      %v3252 = vld [vmem:[%s3 + $0x4c] sm:$0xf]
      %v3253 = vld [vmem:[%s3 + $0x50] sm:$0xf]
      %v3254 = vld [vmem:[%s3 + $0x54] sm:$0xf]
      %v3255 = vld [vmem:[%s3 + $0x58] sm:$0xf]
      %v3256 = vld [vmem:[%s3 + $0x5c] sm:$0xf]
      %v3257 = vld [vmem:[%s3 + $0x60] sm:$0xf]
      %v3258 = vld [vmem:[%s3 + $0x64] sm:$0xf]
      %v3259 = vld [vmem:[%s3 + $0x68] sm:$0xf]
      %v3260 = vld [vmem:[%s3 + $0x6c] sm:$0xf]
      %v3261 = vld [vmem:[%s3 + $0x70] sm:$0xf]
      %v3262 = vld [vmem:[%s3 + $0x74] sm:$0xf]
      %v3263 = vld [vmem:[%s3 + $0x78] sm:$0xf]
      %v3264 = vld [vmem:[%s3 + $0x7c] sm:$0xf]
      %v3265 = vld [vmem:[%s3 + $0x80] sm:$0xf]
      %v3266 = vld [vmem:[%s3 + $0x84] sm:$0xf]
      %v3267 = vld [vmem:[%s3 + $0x88] sm:$0xf]
      %v3268 = vld [vmem:[%s3 + $0x8c] sm:$0xf]
      %v3269 = vld [vmem:[%s3 + $0x90] sm:$0xf]
      %v3270 = vld [vmem:[%s3 + $0x94] sm:$0xf]
      %v3271 = vld [vmem:[%s3 + $0x98] sm:$0xf]
      %v3272 = vld [vmem:[%s3 + $0x9c] sm:$0xf]
      %v3273 = vld [vmem:[%s3 + $0xa0] sm:$0xf]
      %v3274 = vld [vmem:[%s3 + $0xa4] sm:$0xf]
      %v3275 = vld [vmem:[%s3 + $0xa8] sm:$0xf]
      %v3276 = vld [vmem:[%s3 + $0xac] sm:$0xf]
      %v3277 = vld [vmem:[%s3 + $0xb0] sm:$0xf]
      %v3278 = vld [vmem:[%s3 + $0xb4] sm:$0xf]
      %v3279 = vld [vmem:[%s3 + $0xb8] sm:$0xf]
      %v3280 = vld [vmem:[%s3 + $0xbc] sm:$0xf]
      %v3281 = vld [vmem:[%s3 + $0xc0] sm:$0xf]
      %v3282 = vld [vmem:[%s3 + $0xc4] sm:$0xf]
      %v3283 = vld [vmem:[%s3 + $0xc8] sm:$0xf]
      %v3284 = vld [vmem:[%s3 + $0xcc] sm:$0xf]
      %v3285 = vld [vmem:[%s3 + $0xd0] sm:$0xf]
      %v3286 = vld [vmem:[%s3 + $0xd4] sm:$0xf]
      %v3287 = vld [vmem:[%s3 + $0xd8] sm:$0xf]
      %v3288 = vld [vmem:[%s3 + $0xdc] sm:$0xf]
      %v3289 = vld [vmem:[%s3 + $0xe0] sm:$0xf]
      %v3290 = vld [vmem:[%s3 + $0xe4] sm:$0xf]
      %v3291 = vld [vmem:[%s3 + $0xe8] sm:$0xf]
      %v3292 = vld [vmem:[%s3 + $0xec] sm:$0xf]
      %v3293 = vld [vmem:[%s3 + $0xf0] sm:$0xf]
      %v3294 = vld [vmem:[%s3 + $0xf4] sm:$0xf]
      %v3295 = vld [vmem:[%s3 + $0xf8] sm:$0xf]
      %v3296 = vld [vmem:[%s3 + $0xfc] sm:$0xf]
      %v3297 = vld [vmem:[%s3 + $0x100] sm:$0xf]
      %v3298 = vld [vmem:[%s3 + $0x104] sm:$0xf]
      %v3299 = vld [vmem:[%s3 + $0x108] sm:$0xf]
      %v3300 = vld [vmem:[%s3 + $0x10c] sm:$0xf]
      %v3301 = vld [vmem:[%s3 + $0x110] sm:$0xf]
      %v3302 = vld [vmem:[%s3 + $0x114] sm:$0xf]
      %v3303 = vld [vmem:[%s3 + $0x118] sm:$0xf]
      %v3304 = vld [vmem:[%s3 + $0x11c] sm:$0xf]
      %v3305 = vld [vmem:[%s3 + $0x120] sm:$0xf]
      %v3306 = vld [vmem:[%s3 + $0x124] sm:$0xf]
      %v3307 = vld [vmem:[%s3 + $0x128] sm:$0xf]
      %v3308 = vld [vmem:[%s3 + $0x12c] sm:$0xf]
      %v3309 = vld [vmem:[%s3 + $0x130] sm:$0xf]
      %v3310 = vld [vmem:[%s3 + $0x134] sm:$0xf]
      %v3311 = vld [vmem:[%s3 + $0x138] sm:$0xf]
      %v3312 = vld [vmem:[%s3 + $0x13c] sm:$0xf]
      %v3313 = vld [vmem:[%s3 + $0x140] sm:$0xf]
      %v3314 = vld [vmem:[%s3 + $0x144] sm:$0xf]
      %v3315 = vld [vmem:[%s3 + $0x148] sm:$0xf]
      %v3316 = vld [vmem:[%s3 + $0x14c] sm:$0xf]
      %v3317 = vld [vmem:[%s3 + $0x150] sm:$0xf]
      %v3318 = vld [vmem:[%s3 + $0x154] sm:$0xf]
      %v3319 = vld [vmem:[%s3 + $0x158] sm:$0xf]
      %v3320 = vld [vmem:[%s3 + $0x15c] sm:$0xf]
      %v3321 = vld [vmem:[%s3 + $0x160] sm:$0xf]
      %v3322 = vld [vmem:[%s3 + $0x164] sm:$0xf]
      %v3323 = vld [vmem:[%s3 + $0x168] sm:$0xf]
      %v3324 = vld [vmem:[%s3 + $0x16c] sm:$0xf]
      %v3325 = vld [vmem:[%s3 + $0x170] sm:$0xf]
      %v3326 = vld [vmem:[%s3 + $0x174] sm:$0xf]
      %v3327 = vld [vmem:[%s3 + $0x178] sm:$0xf]
      %v3328 = vld [vmem:[%s3 + $0x17c] sm:$0xf]
      %v3329 = vld [vmem:[%s3 + $0x180] sm:$0xf]
      %v3330 = vld [vmem:[%s3 + $0x184] sm:$0xf]
      %v3331 = vld [vmem:[%s3 + $0x188] sm:$0xf]
      %v3332 = vld [vmem:[%s3 + $0x18c] sm:$0xf]
      %v3333 = vld [vmem:[%s3 + $0x190] sm:$0xf]
      %v3334 = vld [vmem:[%s3 + $0x194] sm:$0xf]
      %v3335 = vld [vmem:[%s3 + $0x198] sm:$0xf]
      %v3336 = vld [vmem:[%s3 + $0x19c] sm:$0xf]
      %v3337 = vld [vmem:[%s3 + $0x1a0] sm:$0xf]
      %v3338 = vld [vmem:[%s3 + $0x1a4] sm:$0xf]
      %v3339 = vld [vmem:[%s3 + $0x1a8] sm:$0xf]
      %v3340 = vld [vmem:[%s3 + $0x1ac] sm:$0xf]
      %v3341 = vld [vmem:[%s3 + $0x1b0] sm:$0xf]
      %v3342 = vld [vmem:[%s3 + $0x1b4] sm:$0xf]
      %v3343 = vld [vmem:[%s3 + $0x1b8] sm:$0xf]
      %v3344 = vld [vmem:[%s3 + $0x1bc] sm:$0xf]
      %v3345 = vld [vmem:[%s3 + $0x1c0] sm:$0xf]
      %v3346 = vld [vmem:[%s3 + $0x1c4] sm:$0xf]
      %v3347 = vld [vmem:[%s3 + $0x1c8] sm:$0xf]
      %v3348 = vld [vmem:[%s3 + $0x1cc] sm:$0xf]
      %v3349 = vld [vmem:[%s3 + $0x1d0] sm:$0xf]
      %v3350 = vld [vmem:[%s3 + $0x1d4] sm:$0xf]
      %v3351 = vld [vmem:[%s3 + $0x1d8] sm:$0xf]
      %v3352 = vld [vmem:[%s3 + $0x1dc] sm:$0xf]
      %v3353 = vld [vmem:[%s3 + $0x1e0] sm:$0xf]
      %v3354 = vld [vmem:[%s3 + $0x1e4] sm:$0xf]
      %v3355 = vld [vmem:[%s3 + $0x1e8] sm:$0xf]
      %v3356 = vld [vmem:[%s3 + $0x1ec] sm:$0xf]
      %v3357 = vld [vmem:[%s3 + $0x1f0] sm:$0xf]
      %v3358 = vld [vmem:[%s3 + $0x1f4] sm:$0xf]
      %v3359 = vld [vmem:[%s3 + $0x1f8] sm:$0xf]
      %v3360 = vld [vmem:[%s3 + $0x1fc] sm:$0xf]
      %v3361 = vld [vmem:[%s3 + $0x200] sm:$0xf]
      %v3362 = vld [vmem:[%s3 + $0x204] sm:$0xf]
      %v3363 = vld [vmem:[%s3 + $0x208] sm:$0xf]
      %v3364 = vld [vmem:[%s3 + $0x20c] sm:$0xf]
      %v3365 = vld [vmem:[%s3 + $0x210] sm:$0xf]
      %v3366 = vld [vmem:[%s3 + $0x214] sm:$0xf]
      %v3367 = vld [vmem:[%s3 + $0x218] sm:$0xf]
      %v3368 = vld [vmem:[%s3 + $0x21c] sm:$0xf]
      %v3369 = vld [vmem:[%s3 + $0x220] sm:$0xf]
      %v3370 = vld [vmem:[%s3 + $0x224] sm:$0xf]
      %v3371 = vld [vmem:[%s3 + $0x228] sm:$0xf]
      %v3372 = vld [vmem:[%s3 + $0x22c] sm:$0xf]
      %v3373 = vld [vmem:[%s3 + $0x230] sm:$0xf]
      %v3374 = vld [vmem:[%s3 + $0x234] sm:$0xf]
      %v3375 = vld [vmem:[%s3 + $0x238] sm:$0xf]
      %v3376 = vld [vmem:[%s3 + $0x23c] sm:$0xf]
      %v3521 = vunpack.c.l.b16 %v3233
      %v3522 = vunpack.c.l.b16 %v3234
      %v3523 = vunpack.c.l.b16 %v3235
      %v3524 = vunpack.c.l.b16 %v3236
      %v3525 = vunpack.c.l.b16 %v3237
      %v3526 = vunpack.c.l.b16 %v3238
      %v3527 = vunpack.c.l.b16 %v3239
      %v3528 = vunpack.c.l.b16 %v3240
      %v3529 = vunpack.c.l.b16 %v3241
      %v3530 = vunpack.c.l.b16 %v3242
      %v3531 = vunpack.c.l.b16 %v3243
      %v3532 = vunpack.c.l.b16 %v3244
      %v3533 = vunpack.c.l.b16 %v3245
      %v3534 = vunpack.c.l.b16 %v3246
      %v3535 = vunpack.c.l.b16 %v3247
      %v3536 = vunpack.c.l.b16 %v3248
      %v3537 = vunpack.c.l.b16 %v3249
      %v3538 = vunpack.c.l.b16 %v3250
      %v3539 = vunpack.c.l.b16 %v3251
      %v3540 = vunpack.c.l.b16 %v3252
      %v3541 = vunpack.c.l.b16 %v3253
      %v3542 = vunpack.c.l.b16 %v3254
      %v3543 = vunpack.c.l.b16 %v3255
      %v3544 = vunpack.c.l.b16 %v3256
      %v3545 = vunpack.c.l.b16 %v3257
      %v3546 = vunpack.c.l.b16 %v3258
      %v3547 = vunpack.c.l.b16 %v3259
      %v3548 = vunpack.c.l.b16 %v3260
      %v3549 = vunpack.c.l.b16 %v3261
      %v3550 = vunpack.c.l.b16 %v3262
      %v3551 = vunpack.c.l.b16 %v3263
      %v3552 = vunpack.c.l.b16 %v3264
      %v3553 = vunpack.c.l.b16 %v3265
      %v3554 = vunpack.c.l.b16 %v3266
      %v3555 = vunpack.c.l.b16 %v3267
      %v3556 = vunpack.c.l.b16 %v3268
      %v3557 = vunpack.c.l.b16 %v3269
      %v3558 = vunpack.c.l.b16 %v3270
      %v3559 = vunpack.c.l.b16 %v3271
      %v3560 = vunpack.c.l.b16 %v3272
      %v3561 = vunpack.c.l.b16 %v3273
      %v3562 = vunpack.c.l.b16 %v3274
      %v3563 = vunpack.c.l.b16 %v3275
      %v3564 = vunpack.c.l.b16 %v3276
      %v3565 = vunpack.c.l.b16 %v3277
      %v3566 = vunpack.c.l.b16 %v3278
      %v3567 = vunpack.c.l.b16 %v3279
      %v3568 = vunpack.c.l.b16 %v3280
      %v3569 = vunpack.c.l.b16 %v3281
      %v3570 = vunpack.c.l.b16 %v3282
      %v3571 = vunpack.c.l.b16 %v3283
      %v3572 = vunpack.c.l.b16 %v3284
      %v3573 = vunpack.c.l.b16 %v3285
      %v3574 = vunpack.c.l.b16 %v3286
      %v3575 = vunpack.c.l.b16 %v3287
      %v3576 = vunpack.c.l.b16 %v3288
      %v3577 = vunpack.c.l.b16 %v3289
      %v3578 = vunpack.c.l.b16 %v3290
      %v3579 = vunpack.c.l.b16 %v3291
      %v3580 = vunpack.c.l.b16 %v3292
      %v3581 = vunpack.c.l.b16 %v3293
      %v3582 = vunpack.c.l.b16 %v3294
      %v3583 = vunpack.c.l.b16 %v3295
      %v3584 = vunpack.c.l.b16 %v3296
      %v3585 = vunpack.c.l.b16 %v3297
      %v3586 = vunpack.c.l.b16 %v3298
      %v3587 = vunpack.c.l.b16 %v3299
      %v3588 = vunpack.c.l.b16 %v3300
      %v3589 = vunpack.c.l.b16 %v3301
      %v3590 = vunpack.c.l.b16 %v3302
      %v3591 = vunpack.c.l.b16 %v3303
      %v3592 = vunpack.c.l.b16 %v3304
      %v3593 = vunpack.c.l.b16 %v3305
      %v3594 = vunpack.c.l.b16 %v3306
      %v3595 = vunpack.c.l.b16 %v3307
      %v3596 = vunpack.c.l.b16 %v3308
      %v3597 = vunpack.c.l.b16 %v3309
      %v3598 = vunpack.c.l.b16 %v3310
      %v3599 = vunpack.c.l.b16 %v3311
      %v3600 = vunpack.c.l.b16 %v3312
      %v3601 = vunpack.c.l.b16 %v3313
      %v3602 = vunpack.c.l.b16 %v3314
      %v3603 = vunpack.c.l.b16 %v3315
      %v3604 = vunpack.c.l.b16 %v3316
      %v3605 = vunpack.c.l.b16 %v3317
      %v3606 = vunpack.c.l.b16 %v3318
      %v3607 = vunpack.c.l.b16 %v3319
      %v3608 = vunpack.c.l.b16 %v3320
      %v3609 = vunpack.c.l.b16 %v3321
      %v3610 = vunpack.c.l.b16 %v3322
      %v3611 = vunpack.c.l.b16 %v3323
      %v3612 = vunpack.c.l.b16 %v3324
      %v3613 = vunpack.c.l.b16 %v3325
      %v3614 = vunpack.c.l.b16 %v3326
      %v3615 = vunpack.c.l.b16 %v3327
      %v3616 = vunpack.c.l.b16 %v3328
      %v3617 = vunpack.c.l.b16 %v3329
      %v3618 = vunpack.c.l.b16 %v3330
      %v3619 = vunpack.c.l.b16 %v3331
      %v3620 = vunpack.c.l.b16 %v3332
      %v3621 = vunpack.c.l.b16 %v3333
      %v3622 = vunpack.c.l.b16 %v3334
      %v3623 = vunpack.c.l.b16 %v3335
      %v3624 = vunpack.c.l.b16 %v3336
      %v3625 = vunpack.c.l.b16 %v3337
      %v3626 = vunpack.c.l.b16 %v3338
      %v3627 = vunpack.c.l.b16 %v3339
      %v3628 = vunpack.c.l.b16 %v3340
      %v3629 = vunpack.c.l.b16 %v3341
      %v3630 = vunpack.c.l.b16 %v3342
      %v3631 = vunpack.c.l.b16 %v3343
      %v3632 = vunpack.c.l.b16 %v3344
      %v3633 = vunpack.c.l.b16 %v3345
      %v3634 = vunpack.c.l.b16 %v3346
      %v3635 = vunpack.c.l.b16 %v3347
      %v3636 = vunpack.c.l.b16 %v3348
      %v3637 = vunpack.c.l.b16 %v3349
      %v3638 = vunpack.c.l.b16 %v3350
      %v3639 = vunpack.c.l.b16 %v3351
      %v3640 = vunpack.c.l.b16 %v3352
      %v3641 = vunpack.c.l.b16 %v3353
      %v3642 = vunpack.c.l.b16 %v3354
      %v3643 = vunpack.c.l.b16 %v3355
      %v3644 = vunpack.c.l.b16 %v3356
      %v3645 = vunpack.c.l.b16 %v3357
      %v3646 = vunpack.c.l.b16 %v3358
      %v3647 = vunpack.c.l.b16 %v3359
      %v3648 = vunpack.c.l.b16 %v3360
      %v3649 = vunpack.c.l.b16 %v3361
      %v3650 = vunpack.c.l.b16 %v3362
      %v3651 = vunpack.c.l.b16 %v3363
      %v3652 = vunpack.c.l.b16 %v3364
      %v3653 = vunpack.c.l.b16 %v3365
      %v3654 = vunpack.c.l.b16 %v3366
      %v3655 = vunpack.c.l.b16 %v3367
      %v3656 = vunpack.c.l.b16 %v3368
      %v3657 = vunpack.c.l.b16 %v3369
      %v3658 = vunpack.c.l.b16 %v3370
      %v3659 = vunpack.c.l.b16 %v3371
      %v3660 = vunpack.c.l.b16 %v3372
      %v3661 = vunpack.c.l.b16 %v3373
      %v3662 = vunpack.c.l.b16 %v3374
      %v3663 = vunpack.c.l.b16 %v3375
      %v3664 = vunpack.c.l.b16 %v3376
      %v3665 = vpack.c.b16 %v3522, %v3521
      %v3666 = vpack.c.b16 %v3524, %v3523
      %v3667 = vpack.c.b16 %v3526, %v3525
      %v3668 = vpack.c.b16 %v3528, %v3527
      %v3669 = vpack.c.b16 %v3530, %v3529
      %v3670 = vpack.c.b16 %v3532, %v3531
      %v3671 = vpack.c.b16 %v3534, %v3533
      %v3672 = vpack.c.b16 %v3536, %v3535
      %v3673 = vpack.c.b16 %v3538, %v3537
      %v3674 = vpack.c.b16 %v3540, %v3539
      %v3675 = vpack.c.b16 %v3542, %v3541
      %v3676 = vpack.c.b16 %v3544, %v3543
      %v3677 = vpack.c.b16 %v3546, %v3545
      %v3678 = vpack.c.b16 %v3548, %v3547
      %v3679 = vpack.c.b16 %v3550, %v3549
      %v3680 = vpack.c.b16 %v3552, %v3551
      %v3681 = vpack.c.b16 %v3554, %v3553
      %v3682 = vpack.c.b16 %v3556, %v3555
      %v3683 = vpack.c.b16 %v3558, %v3557
      %v3684 = vpack.c.b16 %v3560, %v3559
      %v3685 = vpack.c.b16 %v3562, %v3561
      %v3686 = vpack.c.b16 %v3564, %v3563
      %v3687 = vpack.c.b16 %v3566, %v3565
      %v3688 = vpack.c.b16 %v3568, %v3567
      %v3689 = vpack.c.b16 %v3570, %v3569
      %v3690 = vpack.c.b16 %v3572, %v3571
      %v3691 = vpack.c.b16 %v3574, %v3573
      %v3692 = vpack.c.b16 %v3576, %v3575
      %v3693 = vpack.c.b16 %v3578, %v3577
      %v3694 = vpack.c.b16 %v3580, %v3579
      %v3695 = vpack.c.b16 %v3582, %v3581
      %v3696 = vpack.c.b16 %v3584, %v3583
      %v3697 = vpack.c.b16 %v3586, %v3585
      %v3698 = vpack.c.b16 %v3588, %v3587
      %v3699 = vpack.c.b16 %v3590, %v3589
      %v3700 = vpack.c.b16 %v3592, %v3591
      %v3701 = vpack.c.b16 %v3594, %v3593
      %v3702 = vpack.c.b16 %v3596, %v3595
      %v3703 = vpack.c.b16 %v3598, %v3597
      %v3704 = vpack.c.b16 %v3600, %v3599
      %v3705 = vpack.c.b16 %v3602, %v3601
      %v3706 = vpack.c.b16 %v3604, %v3603
      %v3707 = vpack.c.b16 %v3606, %v3605
      %v3708 = vpack.c.b16 %v3608, %v3607
      %v3709 = vpack.c.b16 %v3610, %v3609
      %v3710 = vpack.c.b16 %v3612, %v3611
      %v3711 = vpack.c.b16 %v3614, %v3613
      %v3712 = vpack.c.b16 %v3616, %v3615
      %v3713 = vpack.c.b16 %v3618, %v3617
      %v3714 = vpack.c.b16 %v3620, %v3619
      %v3715 = vpack.c.b16 %v3622, %v3621
      %v3716 = vpack.c.b16 %v3624, %v3623
      %v3717 = vpack.c.b16 %v3626, %v3625
      %v3718 = vpack.c.b16 %v3628, %v3627
      %v3719 = vpack.c.b16 %v3630, %v3629
      %v3720 = vpack.c.b16 %v3632, %v3631
      %v3721 = vpack.c.b16 %v3634, %v3633
      %v3722 = vpack.c.b16 %v3636, %v3635
      %v3723 = vpack.c.b16 %v3638, %v3637
      %v3724 = vpack.c.b16 %v3640, %v3639
      %v3725 = vpack.c.b16 %v3642, %v3641
      %v3726 = vpack.c.b16 %v3644, %v3643
      %v3727 = vpack.c.b16 %v3646, %v3645
      %v3728 = vpack.c.b16 %v3648, %v3647
      %v3729 = vpack.c.b16 %v3650, %v3649
      %v3730 = vpack.c.b16 %v3652, %v3651
      %v3731 = vpack.c.b16 %v3654, %v3653
      %v3732 = vpack.c.b16 %v3656, %v3655
      %v3733 = vpack.c.b16 %v3658, %v3657
      %v3734 = vpack.c.b16 %v3660, %v3659
      %v3735 = vpack.c.b16 %v3662, %v3661
      %v3736 = vpack.c.b16 %v3664, %v3663
      %3809 = vmatpush.bf16.msra.mxu0 %v3672
      %3810 = vmatpush.bf16.msra.mxu0 %v3671
      %3811 = vmatpush.bf16.msra.mxu0 %v3670
      %3812 = vmatpush.bf16.msra.mxu0 %v3669
      %3813 = vmatpush.bf16.msra.mxu0 %v3668
      %3814 = vmatpush.bf16.msra.mxu0 %v3667
      %3815 = vmatpush.bf16.msra.mxu0 %v3666
      %3816 = vmatpush.bf16.msra.mxu0 %v3665
      %3817 = vmatmul.bf16.gmra.mxu0 %v3224
      %v3818 = vpop.f32.mrf.mxu0
      %v3819 = vadd.f32 0.0, %v3818
      %v3820 = vpop.f32.mrf.mxu0
      %3821 = vdwg.mxu0
      %3822 = vmatpush.bf16.msra.mxu0 %v3680
      %3823 = vmatpush.bf16.msra.mxu0 %v3679
      %3824 = vmatpush.bf16.msra.mxu0 %v3678
      %3825 = vmatpush.bf16.msra.mxu0 %v3677
      %3826 = vmatpush.bf16.msra.mxu0 %v3676
      %3827 = vmatpush.bf16.msra.mxu0 %v3675
      %3828 = vmatpush.bf16.msra.mxu0 %v3674
      %3829 = vmatpush.bf16.msra.mxu0 %v3673
      %3830 = vmatmul.bf16.gmra.mxu0 %v3225
      %v3831 = vpop.f32.mrf.mxu0
      %v3832 = vadd.f32 %v3819, %v3831
      %v3833 = vpop.f32.mrf.mxu0
      %3834 = vdwg.mxu0
      %3835 = vmatpush.bf16.msra.mxu0 %v3688
      %3836 = vmatpush.bf16.msra.mxu0 %v3687
      %3837 = vmatpush.bf16.msra.mxu0 %v3686
      %3838 = vmatpush.bf16.msra.mxu0 %v3685
      %3839 = vmatpush.bf16.msra.mxu0 %v3684
      %3840 = vmatpush.bf16.msra.mxu0 %v3683
      %3841 = vmatpush.bf16.msra.mxu0 %v3682
      %3842 = vmatpush.bf16.msra.mxu0 %v3681
      %3843 = vmatmul.bf16.gmra.mxu0 %v3226
      %v3844 = vpop.f32.mrf.mxu0
      %v3845 = vadd.f32 %v3832, %v3844
      %v3846 = vpop.f32.mrf.mxu0
      %3847 = vdwg.mxu0
      %3848 = vmatpush.bf16.msra.mxu0 %v3696
      %3849 = vmatpush.bf16.msra.mxu0 %v3695
      %3850 = vmatpush.bf16.msra.mxu0 %v3694
      %3851 = vmatpush.bf16.msra.mxu0 %v3693
      %3852 = vmatpush.bf16.msra.mxu0 %v3692
      %3853 = vmatpush.bf16.msra.mxu0 %v3691
      %3854 = vmatpush.bf16.msra.mxu0 %v3690
      %3855 = vmatpush.bf16.msra.mxu0 %v3689
      %3856 = vmatmul.bf16.gmra.mxu0 %v3227
      %v3857 = vpop.f32.mrf.mxu0
      %v3858 = vadd.f32 %v3845, %v3857
      %v3859 = vpop.f32.mrf.mxu0
      %3860 = vdwg.mxu0
      %3861 = vmatpush.bf16.msra.mxu0 %v3704
      %3862 = vmatpush.bf16.msra.mxu0 %v3703
      %3863 = vmatpush.bf16.msra.mxu0 %v3702
      %3864 = vmatpush.bf16.msra.mxu0 %v3701
      %3865 = vmatpush.bf16.msra.mxu0 %v3700
      %3866 = vmatpush.bf16.msra.mxu0 %v3699
      %3867 = vmatpush.bf16.msra.mxu0 %v3698
      %3868 = vmatpush.bf16.msra.mxu0 %v3697
      %3869 = vmatmul.bf16.gmra.mxu0 %v3228
      %v3870 = vpop.f32.mrf.mxu0
      %v3871 = vadd.f32 %v3858, %v3870
      %v3872 = vpop.f32.mrf.mxu0
      %3873 = vdwg.mxu0
      %3874 = vmatpush.bf16.msra.mxu0 %v3712
      %3875 = vmatpush.bf16.msra.mxu0 %v3711
      %3876 = vmatpush.bf16.msra.mxu0 %v3710
      %3877 = vmatpush.bf16.msra.mxu0 %v3709
      %3878 = vmatpush.bf16.msra.mxu0 %v3708
      %3879 = vmatpush.bf16.msra.mxu0 %v3707
      %3880 = vmatpush.bf16.msra.mxu0 %v3706
      %3881 = vmatpush.bf16.msra.mxu0 %v3705
      %3882 = vmatmul.bf16.gmra.mxu0 %v3229
      %v3883 = vpop.f32.mrf.mxu0
      %v3884 = vadd.f32 %v3871, %v3883
      %v3885 = vpop.f32.mrf.mxu0
      %3886 = vdwg.mxu0
      %3887 = vmatpush.bf16.msra.mxu0 %v3720
      %3888 = vmatpush.bf16.msra.mxu0 %v3719
      %3889 = vmatpush.bf16.msra.mxu0 %v3718
      %3890 = vmatpush.bf16.msra.mxu0 %v3717
      %3891 = vmatpush.bf16.msra.mxu0 %v3716
      %3892 = vmatpush.bf16.msra.mxu0 %v3715
      %3893 = vmatpush.bf16.msra.mxu0 %v3714
      %3894 = vmatpush.bf16.msra.mxu0 %v3713
      %3895 = vmatmul.bf16.gmra.mxu0 %v3230
      %v3896 = vpop.f32.mrf.mxu0
      %v3897 = vadd.f32 %v3884, %v3896
      %v3898 = vpop.f32.mrf.mxu0
      %3899 = vdwg.mxu0
      %3900 = vmatpush.bf16.msra.mxu0 %v3728
      %3901 = vmatpush.bf16.msra.mxu0 %v3727
      %3902 = vmatpush.bf16.msra.mxu0 %v3726
      %3903 = vmatpush.bf16.msra.mxu0 %v3725
      %3904 = vmatpush.bf16.msra.mxu0 %v3724
      %3905 = vmatpush.bf16.msra.mxu0 %v3723
      %3906 = vmatpush.bf16.msra.mxu0 %v3722
      %3907 = vmatpush.bf16.msra.mxu0 %v3721
      %3908 = vmatmul.bf16.gmra.mxu0 %v3231
      %v3909 = vpop.f32.mrf.mxu0
      %v3910 = vadd.f32 %v3897, %v3909
      %v3911 = vpop.f32.mrf.mxu0
      %3912 = vdwg.mxu0
      %3913 = vmatpush.bf16.msra.mxu0 %v3736
      %3914 = vmatpush.bf16.msra.mxu0 %v3735
      %3915 = vmatpush.bf16.msra.mxu0 %v3734
      %3916 = vmatpush.bf16.msra.mxu0 %v3733
      %3917 = vmatpush.bf16.msra.mxu0 %v3732
      %3918 = vmatpush.bf16.msra.mxu0 %v3731
      %3919 = vmatpush.bf16.msra.mxu0 %v3730
      %3920 = vmatpush.bf16.msra.mxu0 %v3729
      %3921 = vmatmul.bf16.gmra.mxu0 %v3232
      %v3922 = vpop.f32.mrf.mxu0
      %v3923 = vadd.f32 %v3910, %v3922
      %v3924 = vpop.f32.mrf.mxu0
      %3925 = vdwg.mxu0
      %v3926 = vld [vmem:[%s5 + $0x2] sm:$0x1]
      %v3927 = vld [vmem:[%s6 + $0x2] sm:$0x1]
      %v3928 = vperm.slane %v3926, 0
      %v3929 = vmul.f32 %v3923, %v3928
      %v3930 = vperm.slane %v3927, 0
      %v3931 = vadd.f32 %v3929, %v3930
      %v3932 = vmax.f32 %v3931, 0.0
      %vm3933 = vcmask 1043456
      %v3934 = vsel %vm3933, %v3932, -inf
      %v3935 = vrot.slane %v3934, 4
      %v3936 = vmax.f32 %v3934, %v3935
      %v3937 = vrot.slane %v3936, 2
      %v3938 = vmax.f32 %v3936, %v3937
      %v3939 = vrot.slane %v3938, 1
      %v3940 = vmax.f32 %v3938, %v3939
      %v3941 = vpack.c.bf16 %v3940, %v3940
      %v3942 = vld [vmem:[%s4] sm:$0xf]
      %v3943 = vld [vmem:[%s4 + $0x4] sm:$0xf]
      %v3944 = vld [vmem:[%s4 + $0x8] sm:$0xf]
      %v3945 = vld [vmem:[%s4 + $0xc] sm:$0xf]
      %v3946 = vld [vmem:[%s4 + $0x10] sm:$0xf]
      %v3947 = vld [vmem:[%s4 + $0x14] sm:$0xf]
      %v3948 = vld [vmem:[%s4 + $0x18] sm:$0xf]
      %v3949 = vld [vmem:[%s4 + $0x1c] sm:$0xf]
      %v3950 = vld [vmem:[%s4 + $0x20] sm:$0xf]
      %v3951 = vld [vmem:[%s4 + $0x24] sm:$0xf]
      %v3952 = vld [vmem:[%s4 + $0x28] sm:$0xf]
      %v3953 = vld [vmem:[%s4 + $0x2c] sm:$0xf]
      %v3954 = vld [vmem:[%s4 + $0x30] sm:$0xf]
      %v3955 = vld [vmem:[%s4 + $0x34] sm:$0xf]
      %v3956 = vld [vmem:[%s4 + $0x38] sm:$0xf]
      %v3957 = vld [vmem:[%s4 + $0x3c] sm:$0xf]
      %v3974 = vunpack.c.l.b16 %v3942
      %v3975 = vunpack.c.l.b16 %v3943
      %v3976 = vunpack.c.l.b16 %v3944
      %v3977 = vunpack.c.l.b16 %v3945
      %v3978 = vunpack.c.l.b16 %v3946
      %v3979 = vunpack.c.l.b16 %v3947
      %v3980 = vunpack.c.l.b16 %v3948
      %v3981 = vunpack.c.l.b16 %v3949
      %v3982 = vunpack.c.l.b16 %v3950
      %v3983 = vunpack.c.l.b16 %v3951
      %v3984 = vunpack.c.l.b16 %v3952
      %v3985 = vunpack.c.l.b16 %v3953
      %v3986 = vunpack.c.l.b16 %v3954
      %v3987 = vunpack.c.l.b16 %v3955
      %v3988 = vunpack.c.l.b16 %v3956
      %v3989 = vunpack.c.l.b16 %v3957
      %v3990 = vpack.c.b16 %v3975, %v3974
      %v3991 = vpack.c.b16 %v3977, %v3976
      %v3992 = vpack.c.b16 %v3979, %v3978
      %v3993 = vpack.c.b16 %v3981, %v3980
      %v3994 = vpack.c.b16 %v3983, %v3982
      %v3995 = vpack.c.b16 %v3985, %v3984
      %v3996 = vpack.c.b16 %v3987, %v3986
      %v3997 = vpack.c.b16 %v3989, %v3988
      %4006 = vmatpush.bf16.msra.mxu0 %v3997
      %4007 = vmatpush.bf16.msra.mxu0 %v3996
      %4008 = vmatpush.bf16.msra.mxu0 %v3995
      %4009 = vmatpush.bf16.msra.mxu0 %v3994
      %4010 = vmatpush.bf16.msra.mxu0 %v3993
      %4011 = vmatpush.bf16.msra.mxu0 %v3992
      %4012 = vmatpush.bf16.msra.mxu0 %v3991
      %4013 = vmatpush.bf16.msra.mxu0 %v3990
      %4014 = vmatmul.bf16.gmra.mxu0 %v3941
      %v4015 = vpop.f32.mrf.mxu0
      %v4016 = vadd.f32 0.0, %v4015
      %v4017 = vpop.f32.mrf.mxu0
      %4018 = vdwg.mxu0
      %v4019 = vld [vmem:[%s5 + $0x3] sm:$0x1]
      %v4020 = vld [vmem:[%s6 + $0x3] sm:$0x1]
      %v4021 = vmul.f32 %v4016, %v4019
      %v4022 = vadd.f32 %v4021, %v4020
      %v4023 = vmax.f32 %v4022, 0.0
      %v4024 = vmul.f32 %v4023, %v4023
      %v4025 = vsel %vm3195, %v4024, 0.0
      %4026 = vadd.xlane.f32.xlu0 %v4025
      %v4027 = vpop.xlane.xlu0 %4026
      %v4028 = vmax.f32 %v4027, 1e-24
      %v4029 = vrsqrt.pop %v4028
      %v4030 = vmul.f32 %v4029, %v4028
      %v4031 = vmul.f32 %v4030, %v4029
      %v4032 = vmul.f32 0.5, %v4031
      %v4033 = vsub.f32 1.5, %v4032
      %v4034 = vmul.f32 %v4029, %v4033
      %vm4035 = vweird.f32 %v4028
      %vm4036 = vweird.f32 %v4029
      %vm4037 = vmor %vm4035, %vm4036
      %v4038 = vsel %vm4037, %v4029, %v4034
      %v4039 = vmul.f32 %v4023, %v4038
      %v4040 = vperm.slane %v4039, 0
      %4041 = vst [vmem:[%s276] sm:$0xff] %v4040
      %p4042 = scmp.lt.s32.totalorder %s18, 1
      %s4043 = scalar_select %p4042, %s18, 1
      %s4044 = smul.addr %s4043, 8
      %s4045 = scalar_lea.vmem %s7, %s4044
      // Predicated region
      $region49: #{_lambda_.1} parent=47 // pred_check
        %p4046 = pneg %p188
      $region50: #{_lambda_.1} parent=47 // pred_check_branch
        %4048 = sbr.rel (%p4046) target = $region52
      $region51: #{_lambda_.1} parent=47 // pred_region
        _
      $region52: #{_lambda_.1} parent=47 // pred_fallthru
        _
    $region48: #{_lambda_.1} parent=5 // pred_fallthru
      _
    %p4049 = scmp.le.s32.totalorder 2, %s13
    // Predicated region
    $region53: #{_lambda_.1} parent=5 // pred_check
      %p4050 = pneg %p4049
    $region54: #{_lambda_.1} parent=5 // pred_check_branch
      %4052 = sbr.rel (%p4050) target = $region56
    $region55: #{_lambda_.1} parent=5 // pred_region
      %s4053 = ssub.s32 %s13, 2
      // Predicated region
      $region57: #{_lambda_.1} parent=55 // pred_check
        %p4054 = pneg %p194
      $region58: #{_lambda_.1} parent=55 // pred_check_branch
        %4056 = sbr.rel (%p4054) target = $region60
      $region59: #{_lambda_.1} parent=55 // pred_region
        %p4057 = scmp.lt.s32.totalorder %s19, 1
        %s4058 = scalar_select %p4057, %s19, 1
        %s4059 = smul.addr %s4058, 8
        %s4060 = scalar_lea.vmem %s7, %s4059
      $region60: #{_lambda_.1} parent=55 // pred_fallthru
        _
    $region56: #{_lambda_.1} parent=5 // pred_fallthru
      _
  $region6: #{_lambda_.1} parent=0 // loop_footer
    %s17 = sadd.s32 1, %s13
  $region7: #{_lambda_.1} parent=0 // loop_footer_branch
    %12 = sbr.rel target = $region3
  $region8: #{_lambda_.1} parent=0 // loop_exit
    _

</llo_original>
